<compile_context>
chip_gen: v5e
topology: v5e:2x2
jax: 0.10.0
libtpu: 0.0.40
codegen_flags: <defaults>
</compile_context>

<pallas_src>
import functools

import numpy as np
import jax
import jax.numpy as jnp
from jax.experimental import pallas as pl
from jax.experimental.pallas import tpu as pltpu

EPS = 1e-5
USE_BF16_MXU = True   # bf16 MXU operands + f32 accumulation (BN re-normalizes after each conv)


def _residual_layer_kernel(x_ref, w_ref, g_ref, b_ref, p_ref, o_ref, *,
                           n_blocks, nhwc, mxu_dtype):
    """Whole ResidualLayer (n_blocks blocks) over the full batch, resident in vregs/VMEM.

    x_ref : (N*H, W*C)                lane-dense activation slab (f32)
    w_ref : (n_blocks*2*3, W*C, W*C)  banded conv weights, one per (block, conv, dy) tap
    g_ref : (n_blocks*2, 1, W*C)      BN gamma, pre-tiled over the W lane positions
    b_ref : (n_blocks*2, 1, W*C)      BN beta,  pre-tiled
    p_ref : (W*C, W*C)                per-channel sum-and-broadcast operator kron(1_WxW, I_C)
    o_ref : (N*H, W*C)                output slab (dense, unmasked store)
    """
    N, H, W, C = nhwc
    NH, WC = N * H, W * C
    NHW = N * H * W
    f32 = jnp.float32

    # Hoisted once: row-shift validity masks (zero padding at H borders, no cross-batch leak).
    y_img = jax.lax.broadcasted_iota(jnp.int32, (NH, WC), 0) % H
    valid_prev = y_img != 0          # row r may read row r-1 (same image)
    valid_next = y_img != (H - 1)    # row r may read row r+1 (same image)

    p_mat = p_ref[...]               # (WC, WC) f32
    inv_cnt = 1.0 / float(NHW)

    def conv3x3(act, blk, ci):
        # 3x3 SAME conv entirely in the (NH, WC) layout:
        #   dy taps  -> sublane roll (+ border mask)      [XLU + VPU, off the critical slot]
        #   dx taps + Cin->Cout -> banded (WC,WC) matmuls [MXU, 256-lane-dense output]
        zero = jnp.zeros_like(act)
        x_prev = jnp.where(valid_prev, pltpu.roll(act, shift=1, axis=0), zero)       # r <- r-1
        x_next = jnp.where(valid_next, pltpu.roll(act, shift=NH - 1, axis=0), zero)  # r <- r+1
        base = (blk * 2 + ci) * 3
        y = jnp.dot(x_prev.astype(mxu_dtype), w_ref[base + 0, :, :],
                    preferred_element_type=f32)
        y = y + jnp.dot(act.astype(mxu_dtype), w_ref[base + 1, :, :],
                        preferred_element_type=f32)
        y = y + jnp.dot(x_next.astype(mxu_dtype), w_ref[base + 2, :, :],
                        preferred_element_type=f32)
        return y                                                    # (NH, WC) f32

    def batchnorm(y, blk, ci):
        # Training-mode BatchNorm2d: biased batch stats over (N,H,W), two-pass variance,
        # all lane-dense.  The reduction over the W lane positions per channel (and the
        # broadcast back to all positions) is one tiny f32 matmul against p_mat.
        idx = blk * 2 + ci
        s1 = jnp.sum(y, axis=0, keepdims=True)                                   # (1, WC)
        mean = jnp.dot(s1, p_mat, preferred_element_type=f32) * inv_cnt          # (1, WC)
        d = y - mean
        s2 = jnp.sum(d * d, axis=0, keepdims=True)                               # (1, WC)
        var = jnp.dot(s2, p_mat, preferred_element_type=f32) * inv_cnt           # (1, WC)
        scale = g_ref[idx, :, :] * jax.lax.rsqrt(var + EPS)                      # (1, WC)
        return d * scale + b_ref[idx, :, :]

    act = x_ref[...].astype(f32)                       # (NH, WC), stays in this layout
    for blk in range(n_blocks):                        # statically unrolled over blocks
        residual = act
        y = jnp.maximum(batchnorm(conv3x3(act, blk, 0), blk, 0), 0.0)   # conv1-bn1-relu
        y = batchnorm(conv3x3(y, blk, 1), blk, 1)                       # conv2-bn2
        act = jnp.maximum(y + residual, 0.0)                            # + residual, relu

    o_ref[...] = act.astype(o_ref.dtype)               # dense (32, 256) store


def _banded_conv_weight(w_hwio, W):
    """(3,3,Cin,Cout) HWIO conv weight -> (3, W*C, W*C) banded matrices (one per dy).

    banded[dy][x_in*C+ci, x_out*C+co] = w[dy, x_in-x_out+1, ci, co] for |x_in-x_out| <= 1,
    so `row_shifted_slab @ banded[dy]` realises the dx taps and the W-border zero padding.
    """
    kh, kw, cin, cout = w_hwio.shape
    assert (kh, kw) == (3, 3) and cin == cout
    C = cin
    w_np = np.asarray(w_hwio, np.float32)
    wb = np.zeros((3, W * C, W * C), np.float32)
    for dy in range(3):
        for dx in range(3):
            for xo in range(W):
                xi = xo + dx - 1
                if 0 <= xi < W:
                    wb[dy, xi * C:(xi + 1) * C, xo * C:(xo + 1) * C] = w_np[dy, dx]
    return wb


def _pack_params(layer_params, W, C):
    """Host-side packing: banded bf16 conv weights, lane-tiled gamma/beta, channel operator."""
    w_dtype = jnp.bfloat16 if USE_BF16_MXU else jnp.float32
    ws, gs, bs = [], [], []
    for (w1, g1, b1, w2, g2, b2) in layer_params:
        ws.append(_banded_conv_weight(w1, W))
        ws.append(_banded_conv_weight(w2, W))
        gs.append(np.tile(np.asarray(g1, np.float32).reshape(1, C), (1, W)))
        gs.append(np.tile(np.asarray(g2, np.float32).reshape(1, C), (1, W)))
        bs.append(np.tile(np.asarray(b1, np.float32).reshape(1, C), (1, W)))
        bs.append(np.tile(np.asarray(b2, np.float32).reshape(1, C), (1, W)))
    w_all = jnp.asarray(np.concatenate(ws, axis=0), dtype=w_dtype)      # (nb*2*3, WC, WC)
    g_all = jnp.asarray(np.stack(gs), dtype=jnp.float32)                # (nb*2, 1, WC)
    b_all = jnp.asarray(np.stack(bs), dtype=jnp.float32)                # (nb*2, 1, WC)
    p_mat = jnp.asarray(np.kron(np.ones((W, W), np.float32),
                                np.eye(C, dtype=np.float32)))           # (WC, WC)
    return w_all, g_all, b_all, p_mat


def residual_layer_forward(x_nhwc, layer_params):
    """ResidualLayer.forward for NHWC input, fused into one pallas_call."""
    N, H, W, C = x_nhwc.shape
    NH, WC = N * H, W * C
    n_blocks = len(layer_params)
    w_all, g_all, b_all, p_mat = _pack_params(layer_params, W, C)
    x2d = x_nhwc.reshape(NH, WC)                       # lane-dense slab (last dim mult of 128)

    kernel = functools.partial(
        _residual_layer_kernel,
        n_blocks=n_blocks, nhwc=(N, H, W, C),
        mxu_dtype=jnp.bfloat16 if USE_BF16_MXU else jnp.float32)

    out2d = pl.pallas_call(
        kernel,
        out_shape=jax.ShapeDtypeStruct((NH, WC), x_nhwc.dtype),
        grid=(1,),
        in_specs=[
            pl.BlockSpec((NH, WC), lambda i: (0, 0)),                        # activation slab
            pl.BlockSpec((n_blocks * 2 * 3, WC, WC), lambda i: (0, 0, 0)),   # banded conv weights
            pl.BlockSpec((n_blocks * 2, 1, WC), lambda i: (0, 0, 0)),        # bn gamma (tiled)
            pl.BlockSpec((n_blocks * 2, 1, WC), lambda i: (0, 0, 0)),        # bn beta  (tiled)
            pl.BlockSpec((WC, WC), lambda i: (0, 0)),                        # channel operator
        ],
        out_specs=pl.BlockSpec((NH, WC), lambda i: (0, 0)),
        compiler_params=pltpu.CompilerParams(dimension_semantics=("arbitrary",)),
    )(x2d, w_all, g_all, b_all, p_mat)

    return out2d.reshape(N, H, W, C)


def init_residual_layer_params(key, in_channels, out_channels, n=1):
    # The PyTorch ResidualBlock has no projection shortcut, so the residual add
    # requires in_channels == out_channels (same constraint as the reference code).
    assert in_channels == out_channels, "ResidualBlock (no shortcut) needs Cin == Cout"
    params = []
    for i in range(n):
        key, k1, k2, k3, k4 = jax.random.split(key, 5)
        cin = in_channels if i == 0 else out_channels
        cout = out_channels
        bound = (1.0 / (cin * 9)) ** 0.5
        w1 = jax.random.uniform(k1, (3, 3, cin, cout), jnp.float32, -bound, bound)
        w2 = jax.random.uniform(k2, (3, 3, cout, cout), jnp.float32, -bound, bound)
        g1 = 1.0 + 0.1 * jax.random.normal(k3, (1, cout), jnp.float32)
        b1 = 0.1 * jax.random.normal(k4, (1, cout), jnp.float32)
        key, k5, k6 = jax.random.split(key, 3)
        g2 = 1.0 + 0.1 * jax.random.normal(k5, (1, cout), jnp.float32)
        b2 = 0.1 * jax.random.normal(k6, (1, cout), jnp.float32)
        params.append((w1, g1, b1, w2, g2, b2))
    return params


def reference_forward(x, layer_params):
    """Pure-JAX reference (lax.conv, two-pass BN) for correctness checking."""
    def bn(y, g, b):
        mean = jnp.mean(y, axis=(0, 1, 2), keepdims=True)
        var = jnp.mean((y - mean) ** 2, axis=(0, 1, 2), keepdims=True)
        return ((y - mean) * jax.lax.rsqrt(var + EPS) * g.reshape(1, 1, 1, -1)
                + b.reshape(1, 1, 1, -1))

    for (w1, g1, b1, w2, g2, b2) in layer_params:
        res = x
        y = jax.lax.conv_general_dilated(
            x, w1, (1, 1), "SAME",
            dimension_numbers=("NHWC", "HWIO", "NHWC"),
            precision=jax.lax.Precision.HIGHEST)
        y = jnp.maximum(bn(y, g1, b1), 0.0)
        y = jax.lax.conv_general_dilated(
            y, w2, (1, 1), "SAME",
            dimension_numbers=("NHWC", "HWIO", "NHWC"),
            precision=jax.lax.Precision.HIGHEST)
        y = bn(y, g2, b2)
        x = jnp.maximum(y + res, 0.0)
    return x


if __name__ == "__main__":
    # ResidualLayer(in_channels=16, out_channels=16, n=2) on a small input.
    N, H, W, C = 2, 16, 16, 16
    n_blocks = 2

    key = jax.random.PRNGKey(0)
    key, kx, kp = jax.random.split(key, 3)
    x_nchw = jax.random.normal(kx, (N, C, H, W), jnp.float32)   # PyTorch-style NCHW input
    x = jnp.transpose(x_nchw, (0, 2, 3, 1))                     # -> NHWC for the kernel

    layer_params = init_residual_layer_params(kp, C, C, n=n_blocks)

    out = jax.block_until_ready(residual_layer_forward(x, layer_params))
    ref = jax.block_until_ready(reference_forward(x, layer_params))

    max_err = float(jnp.max(jnp.abs(out - ref)))
    assert out.shape == (N, H, W, C)
    tol = 5e-2 if USE_BF16_MXU else 1e-3   # bf16 MXU operands vs f32-HIGHEST reference
    assert max_err < tol, f"mismatch vs reference: max abs err = {max_err}"
    print("KERNEL_OK")
</pallas_src>

<mosaic_0001>
module attributes {stable_mosaic.version = 11 : i64} {
  func.func @_residual_layer_kernel(%arg0: i32, %arg1: memref<32x256xf32, #tpu.memory_space<vmem>>, %arg2: memref<12x256x256xbf16, #tpu.memory_space<vmem>>, %arg3: memref<4x1x256xf32, #tpu.memory_space<vmem>>, %arg4: memref<4x1x256xf32, #tpu.memory_space<vmem>>, %arg5: memref<256x256xf32, #tpu.memory_space<vmem>>, %arg6: memref<32x256xf32, #tpu.memory_space<vmem>>) attributes {dimension_semantics = [#tpu.dimension_semantics<arbitrary>], iteration_bounds = array<i64: 1>, scalar_prefetch = 0 : i64, scratch_operands = 0 : i64, tpu.core_type = #tpu.core_type<tc>, window_params = [{pipeline_mode = #tpu.pipeline_mode<synchronous>, transform_indices = @transform_0, window_bounds = array<i64: 32, 256>}, {pipeline_mode = #tpu.pipeline_mode<synchronous>, transform_indices = @transform_1, window_bounds = array<i64: 12, 256, 256>}, {pipeline_mode = #tpu.pipeline_mode<synchronous>, transform_indices = @transform_2, window_bounds = array<i64: 4, 1, 256>}, {pipeline_mode = #tpu.pipeline_mode<synchronous>, transform_indices = @transform_3, window_bounds = array<i64: 4, 1, 256>}, {pipeline_mode = #tpu.pipeline_mode<synchronous>, transform_indices = @transform_4, window_bounds = array<i64: 256, 256>}, {pipeline_mode = #tpu.pipeline_mode<synchronous>, transform_indices = @transform_5, window_bounds = array<i64: 32, 256>}]} {
    %0 = tpu.iota {dimensions = array<i32: 0>} : vector<32x256xi32>
    %c16_i32 = arith.constant 16 : i32
    %c0_i32 = arith.constant 0 : i32
    %1 = arith.cmpi eq, %c16_i32, %c0_i32 : i32
    %c1_i32 = arith.constant 1 : i32
    %2 = arith.select %1, %c1_i32, %c16_i32 : i32
    %3 = vector.broadcast %2 : i32 to vector<32x256xi32>
    %4 = arith.remsi %0, %3 : vector<32x256xi32>
    %c0_i32_0 = arith.constant 0 : i32
    %5 = vector.broadcast %c0_i32_0 : i32 to vector<32x256xi32>
    %6 = arith.cmpi ne, %4, %5 : vector<32x256xi32>
    %c0_i32_1 = arith.constant 0 : i32
    %7 = vector.broadcast %c0_i32_1 : i32 to vector<32x256xi32>
    %8 = arith.cmpi slt, %4, %7 : vector<32x256xi32>
    %c0_i32_2 = arith.constant 0 : i32
    %9 = arith.cmpi slt, %2, %c0_i32_2 : i32
    %10 = vector.broadcast %9 : i1 to vector<32x256xi1>
    %11 = vector.broadcast %10 : vector<32x256xi1> to vector<32x256xi1>
    %12 = arith.xori %8, %11 : vector<32x256xi1>
    %13 = arith.andi %12, %6 : vector<32x256xi1>
    %14 = vector.broadcast %2 : i32 to vector<32x256xi32>
    %15 = arith.addi %4, %14 : vector<32x256xi32>
    %16 = arith.select %13, %15, %4 : vector<32x256xi1>, vector<32x256xi32>
    %c0_i32_3 = arith.constant 0 : i32
    %17 = vector.broadcast %c0_i32_3 : i32 to vector<32x256xi32>
    %18 = arith.cmpi ne, %16, %17 : vector<32x256xi32>
    %c15_i32 = arith.constant 15 : i32
    %19 = vector.broadcast %c15_i32 : i32 to vector<32x256xi32>
    %20 = arith.cmpi ne, %16, %19 : vector<32x256xi32>
    %c0 = arith.constant 0 : index
    %c0_4 = arith.constant 0 : index
    %21 = vector.load %arg5[%c0, %c0_4] : memref<256x256xf32, #tpu.memory_space<vmem>>, vector<256x256xf32>
    %c0_5 = arith.constant 0 : index
    %c0_6 = arith.constant 0 : index
    %22 = vector.load %arg1[%c0_5, %c0_6] : memref<32x256xf32, #tpu.memory_space<vmem>>, vector<32x256xf32>
    %cst = arith.constant 0.000000e+00 : f32
    %23 = vector.broadcast %cst : f32 to vector<32x256xf32>
    %c1_i32_7 = arith.constant 1 : i32
    %24 = tpu.dynamic_rotate %22 by %c1_i32_7 dim 0 : vector<32x256xf32>, i32 -> vector<32x256xf32>
    %25 = arith.select %18, %24, %23 : vector<32x256xi1>, vector<32x256xf32>
    %c31_i32 = arith.constant 31 : i32
    %26 = tpu.dynamic_rotate %22 by %c31_i32 dim 0 : vector<32x256xf32>, i32 -> vector<32x256xf32>
    %27 = arith.select %20, %26, %23 : vector<32x256xi1>, vector<32x256xf32>
    %28 = arith.truncf %25 : vector<32x256xf32> to vector<32x256xbf16>
    %c0_8 = arith.constant 0 : index
    %c0_9 = arith.constant 0 : index
    %c0_10 = arith.constant 0 : index
    %29 = vector.load %arg2[%c0_8, %c0_9, %c0_10] : memref<12x256x256xbf16, #tpu.memory_space<vmem>>, vector<1x256x256xbf16>
    %30 = vector.shape_cast %29 : vector<1x256x256xbf16> to vector<256x256xbf16>
    %cst_11 = arith.constant dense<0.000000e+00> : vector<32x256xf32>
    %31 = tpu.matmul %28, %30, %cst_11 {dimension_numbers = #tpu.dot_dimension_numbers<[1], [0], [0], [1], [0, 0, 1, 1], [], []>} : vector<32x256xbf16>, vector<256x256xbf16>, vector<32x256xf32> -> vector<32x256xf32>
    %32 = arith.truncf %22 : vector<32x256xf32> to vector<32x256xbf16>
    %c1 = arith.constant 1 : index
    %c0_12 = arith.constant 0 : index
    %c0_13 = arith.constant 0 : index
    %33 = vector.load %arg2[%c1, %c0_12, %c0_13] : memref<12x256x256xbf16, #tpu.memory_space<vmem>>, vector<1x256x256xbf16>
    %34 = vector.shape_cast %33 : vector<1x256x256xbf16> to vector<256x256xbf16>
    %cst_14 = arith.constant dense<0.000000e+00> : vector<32x256xf32>
    %35 = tpu.matmul %32, %34, %cst_14 {dimension_numbers = #tpu.dot_dimension_numbers<[1], [0], [0], [1], [0, 0, 1, 1], [], []>} : vector<32x256xbf16>, vector<256x256xbf16>, vector<32x256xf32> -> vector<32x256xf32>
    %36 = arith.addf %31, %35 : vector<32x256xf32>
    %37 = arith.truncf %27 : vector<32x256xf32> to vector<32x256xbf16>
    %c2 = arith.constant 2 : index
    %c0_15 = arith.constant 0 : index
    %c0_16 = arith.constant 0 : index
    %38 = vector.load %arg2[%c2, %c0_15, %c0_16] : memref<12x256x256xbf16, #tpu.memory_space<vmem>>, vector<1x256x256xbf16>
    %39 = vector.shape_cast %38 : vector<1x256x256xbf16> to vector<256x256xbf16>
    %cst_17 = arith.constant dense<0.000000e+00> : vector<32x256xf32>
    %40 = tpu.matmul %37, %39, %cst_17 {dimension_numbers = #tpu.dot_dimension_numbers<[1], [0], [0], [1], [0, 0, 1, 1], [], []>} : vector<32x256xbf16>, vector<256x256xbf16>, vector<32x256xf32> -> vector<32x256xf32>
    %41 = arith.addf %36, %40 : vector<32x256xf32>
    %cst_18 = arith.constant dense<0.000000e+00> : vector<256xf32>
    %42 = vector.multi_reduction <add>, %41, %cst_18 [0] : vector<32x256xf32> to vector<256xf32>
    %43 = vector.shape_cast %42 : vector<256xf32> to vector<1x256xf32>
    %cst_19 = arith.constant dense<0.000000e+00> : vector<1x256xf32>
    %44 = tpu.matmul %43, %21, %cst_19 {dimension_numbers = #tpu.dot_dimension_numbers<[1], [0], [0], [1], [0, 0, 1, 1], [], []>} : vector<1x256xf32>, vector<256x256xf32>, vector<1x256xf32> -> vector<1x256xf32>
    %cst_20 = arith.constant 0.001953125 : f32
    %45 = vector.broadcast %cst_20 : f32 to vector<1x256xf32>
    %46 = arith.mulf %44, %45 : vector<1x256xf32>
    %47 = vector.broadcast %46 : vector<1x256xf32> to vector<32x256xf32>
    %48 = arith.subf %41, %47 : vector<32x256xf32>
    %49 = arith.mulf %48, %48 : vector<32x256xf32>
    %cst_21 = arith.constant dense<0.000000e+00> : vector<256xf32>
    %50 = vector.multi_reduction <add>, %49, %cst_21 [0] : vector<32x256xf32> to vector<256xf32>
    %51 = vector.shape_cast %50 : vector<256xf32> to vector<1x256xf32>
    %cst_22 = arith.constant dense<0.000000e+00> : vector<1x256xf32>
    %52 = tpu.matmul %51, %21, %cst_22 {dimension_numbers = #tpu.dot_dimension_numbers<[1], [0], [0], [1], [0, 0, 1, 1], [], []>} : vector<1x256xf32>, vector<256x256xf32>, vector<1x256xf32> -> vector<1x256xf32>
    %cst_23 = arith.constant 0.001953125 : f32
    %53 = vector.broadcast %cst_23 : f32 to vector<1x256xf32>
    %54 = arith.mulf %52, %53 : vector<1x256xf32>
    %c0_24 = arith.constant 0 : index
    %c0_25 = arith.constant 0 : index
    %c0_26 = arith.constant 0 : index
    %55 = vector.load %arg3[%c0_24, %c0_25, %c0_26] : memref<4x1x256xf32, #tpu.memory_space<vmem>>, vector<1x1x256xf32>
    %56 = vector.shape_cast %55 : vector<1x1x256xf32> to vector<1x256xf32>
    %cst_27 = arith.constant 9.99999974E-6 : f32
    %57 = vector.broadcast %cst_27 : f32 to vector<1x256xf32>
    %58 = arith.addf %54, %57 : vector<1x256xf32>
    %59 = math.rsqrt %58 : vector<1x256xf32>
    %60 = arith.mulf %56, %59 : vector<1x256xf32>
    %61 = vector.broadcast %60 : vector<1x256xf32> to vector<32x256xf32>
    %62 = arith.mulf %48, %61 : vector<32x256xf32>
    %c0_28 = arith.constant 0 : index
    %c0_29 = arith.constant 0 : index
    %c0_30 = arith.constant 0 : index
    %63 = vector.load %arg4[%c0_28, %c0_29, %c0_30] : memref<4x1x256xf32, #tpu.memory_space<vmem>>, vector<1x1x256xf32>
    %64 = vector.shape_cast %63 : vector<1x1x256xf32> to vector<1x256xf32>
    %65 = vector.broadcast %64 : vector<1x256xf32> to vector<32x256xf32>
    %66 = arith.addf %62, %65 : vector<32x256xf32>
    %cst_31 = arith.constant 0.000000e+00 : f32
    %67 = vector.broadcast %cst_31 : f32 to vector<32x256xf32>
    %68 = arith.maximumf %66, %67 : vector<32x256xf32>
    %cst_32 = arith.constant 0.000000e+00 : f32
    %69 = vector.broadcast %cst_32 : f32 to vector<32x256xf32>
    %c1_i32_33 = arith.constant 1 : i32
    %70 = tpu.dynamic_rotate %68 by %c1_i32_33 dim 0 : vector<32x256xf32>, i32 -> vector<32x256xf32>
    %71 = arith.select %18, %70, %69 : vector<32x256xi1>, vector<32x256xf32>
    %c31_i32_34 = arith.constant 31 : i32
    %72 = tpu.dynamic_rotate %68 by %c31_i32_34 dim 0 : vector<32x256xf32>, i32 -> vector<32x256xf32>
    %73 = arith.select %20, %72, %69 : vector<32x256xi1>, vector<32x256xf32>
    %74 = arith.truncf %71 : vector<32x256xf32> to vector<32x256xbf16>
    %c3 = arith.constant 3 : index
    %c0_35 = arith.constant 0 : index
    %c0_36 = arith.constant 0 : index
    %75 = vector.load %arg2[%c3, %c0_35, %c0_36] : memref<12x256x256xbf16, #tpu.memory_space<vmem>>, vector<1x256x256xbf16>
    %76 = vector.shape_cast %75 : vector<1x256x256xbf16> to vector<256x256xbf16>
    %cst_37 = arith.constant dense<0.000000e+00> : vector<32x256xf32>
    %77 = tpu.matmul %74, %76, %cst_37 {dimension_numbers = #tpu.dot_dimension_numbers<[1], [0], [0], [1], [0, 0, 1, 1], [], []>} : vector<32x256xbf16>, vector<256x256xbf16>, vector<32x256xf32> -> vector<32x256xf32>
    %78 = arith.truncf %68 : vector<32x256xf32> to vector<32x256xbf16>
    %c4 = arith.constant 4 : index
    %c0_38 = arith.constant 0 : index
    %c0_39 = arith.constant 0 : index
    %79 = vector.load %arg2[%c4, %c0_38, %c0_39] : memref<12x256x256xbf16, #tpu.memory_space<vmem>>, vector<1x256x256xbf16>
    %80 = vector.shape_cast %79 : vector<1x256x256xbf16> to vector<256x256xbf16>
    %cst_40 = arith.constant dense<0.000000e+00> : vector<32x256xf32>
    %81 = tpu.matmul %78, %80, %cst_40 {dimension_numbers = #tpu.dot_dimension_numbers<[1], [0], [0], [1], [0, 0, 1, 1], [], []>} : vector<32x256xbf16>, vector<256x256xbf16>, vector<32x256xf32> -> vector<32x256xf32>
    %82 = arith.addf %77, %81 : vector<32x256xf32>
    %83 = arith.truncf %73 : vector<32x256xf32> to vector<32x256xbf16>
    %c5 = arith.constant 5 : index
    %c0_41 = arith.constant 0 : index
    %c0_42 = arith.constant 0 : index
    %84 = vector.load %arg2[%c5, %c0_41, %c0_42] : memref<12x256x256xbf16, #tpu.memory_space<vmem>>, vector<1x256x256xbf16>
    %85 = vector.shape_cast %84 : vector<1x256x256xbf16> to vector<256x256xbf16>
    %cst_43 = arith.constant dense<0.000000e+00> : vector<32x256xf32>
    %86 = tpu.matmul %83, %85, %cst_43 {dimension_numbers = #tpu.dot_dimension_numbers<[1], [0], [0], [1], [0, 0, 1, 1], [], []>} : vector<32x256xbf16>, vector<256x256xbf16>, vector<32x256xf32> -> vector<32x256xf32>
    %87 = arith.addf %82, %86 : vector<32x256xf32>
    %cst_44 = arith.constant dense<0.000000e+00> : vector<256xf32>
    %88 = vector.multi_reduction <add>, %87, %cst_44 [0] : vector<32x256xf32> to vector<256xf32>
    %89 = vector.shape_cast %88 : vector<256xf32> to vector<1x256xf32>
    %cst_45 = arith.constant dense<0.000000e+00> : vector<1x256xf32>
    %90 = tpu.matmul %89, %21, %cst_45 {dimension_numbers = #tpu.dot_dimension_numbers<[1], [0], [0], [1], [0, 0, 1, 1], [], []>} : vector<1x256xf32>, vector<256x256xf32>, vector<1x256xf32> -> vector<1x256xf32>
    %cst_46 = arith.constant 0.001953125 : f32
    %91 = vector.broadcast %cst_46 : f32 to vector<1x256xf32>
    %92 = arith.mulf %90, %91 : vector<1x256xf32>
    %93 = vector.broadcast %92 : vector<1x256xf32> to vector<32x256xf32>
    %94 = arith.subf %87, %93 : vector<32x256xf32>
    %95 = arith.mulf %94, %94 : vector<32x256xf32>
    %cst_47 = arith.constant dense<0.000000e+00> : vector<256xf32>
    %96 = vector.multi_reduction <add>, %95, %cst_47 [0] : vector<32x256xf32> to vector<256xf32>
    %97 = vector.shape_cast %96 : vector<256xf32> to vector<1x256xf32>
    %cst_48 = arith.constant dense<0.000000e+00> : vector<1x256xf32>
    %98 = tpu.matmul %97, %21, %cst_48 {dimension_numbers = #tpu.dot_dimension_numbers<[1], [0], [0], [1], [0, 0, 1, 1], [], []>} : vector<1x256xf32>, vector<256x256xf32>, vector<1x256xf32> -> vector<1x256xf32>
    %cst_49 = arith.constant 0.001953125 : f32
    %99 = vector.broadcast %cst_49 : f32 to vector<1x256xf32>
    %100 = arith.mulf %98, %99 : vector<1x256xf32>
    %c1_50 = arith.constant 1 : index
    %c0_51 = arith.constant 0 : index
    %c0_52 = arith.constant 0 : index
    %101 = vector.load %arg3[%c1_50, %c0_51, %c0_52] : memref<4x1x256xf32, #tpu.memory_space<vmem>>, vector<1x1x256xf32>
    %102 = vector.shape_cast %101 : vector<1x1x256xf32> to vector<1x256xf32>
    %cst_53 = arith.constant 9.99999974E-6 : f32
    %103 = vector.broadcast %cst_53 : f32 to vector<1x256xf32>
    %104 = arith.addf %100, %103 : vector<1x256xf32>
    %105 = math.rsqrt %104 : vector<1x256xf32>
    %106 = arith.mulf %102, %105 : vector<1x256xf32>
    %107 = vector.broadcast %106 : vector<1x256xf32> to vector<32x256xf32>
    %108 = arith.mulf %94, %107 : vector<32x256xf32>
    %c1_54 = arith.constant 1 : index
    %c0_55 = arith.constant 0 : index
    %c0_56 = arith.constant 0 : index
    %109 = vector.load %arg4[%c1_54, %c0_55, %c0_56] : memref<4x1x256xf32, #tpu.memory_space<vmem>>, vector<1x1x256xf32>
    %110 = vector.shape_cast %109 : vector<1x1x256xf32> to vector<1x256xf32>
    %111 = vector.broadcast %110 : vector<1x256xf32> to vector<32x256xf32>
    %112 = arith.addf %108, %111 : vector<32x256xf32>
    %113 = arith.addf %112, %22 : vector<32x256xf32>
    %cst_57 = arith.constant 0.000000e+00 : f32
    %114 = vector.broadcast %cst_57 : f32 to vector<32x256xf32>
    %115 = arith.maximumf %113, %114 : vector<32x256xf32>
    %cst_58 = arith.constant 0.000000e+00 : f32
    %116 = vector.broadcast %cst_58 : f32 to vector<32x256xf32>
    %c1_i32_59 = arith.constant 1 : i32
    %117 = tpu.dynamic_rotate %115 by %c1_i32_59 dim 0 : vector<32x256xf32>, i32 -> vector<32x256xf32>
    %118 = arith.select %18, %117, %116 : vector<32x256xi1>, vector<32x256xf32>
    %c31_i32_60 = arith.constant 31 : i32
    %119 = tpu.dynamic_rotate %115 by %c31_i32_60 dim 0 : vector<32x256xf32>, i32 -> vector<32x256xf32>
    %120 = arith.select %20, %119, %116 : vector<32x256xi1>, vector<32x256xf32>
    %121 = arith.truncf %118 : vector<32x256xf32> to vector<32x256xbf16>
    %c6 = arith.constant 6 : index
    %c0_61 = arith.constant 0 : index
    %c0_62 = arith.constant 0 : index
    %122 = vector.load %arg2[%c6, %c0_61, %c0_62] : memref<12x256x256xbf16, #tpu.memory_space<vmem>>, vector<1x256x256xbf16>
    %123 = vector.shape_cast %122 : vector<1x256x256xbf16> to vector<256x256xbf16>
    %cst_63 = arith.constant dense<0.000000e+00> : vector<32x256xf32>
    %124 = tpu.matmul %121, %123, %cst_63 {dimension_numbers = #tpu.dot_dimension_numbers<[1], [0], [0], [1], [0, 0, 1, 1], [], []>} : vector<32x256xbf16>, vector<256x256xbf16>, vector<32x256xf32> -> vector<32x256xf32>
    %125 = arith.truncf %115 : vector<32x256xf32> to vector<32x256xbf16>
    %c7 = arith.constant 7 : index
    %c0_64 = arith.constant 0 : index
    %c0_65 = arith.constant 0 : index
    %126 = vector.load %arg2[%c7, %c0_64, %c0_65] : memref<12x256x256xbf16, #tpu.memory_space<vmem>>, vector<1x256x256xbf16>
    %127 = vector.shape_cast %126 : vector<1x256x256xbf16> to vector<256x256xbf16>
    %cst_66 = arith.constant dense<0.000000e+00> : vector<32x256xf32>
    %128 = tpu.matmul %125, %127, %cst_66 {dimension_numbers = #tpu.dot_dimension_numbers<[1], [0], [0], [1], [0, 0, 1, 1], [], []>} : vector<32x256xbf16>, vector<256x256xbf16>, vector<32x256xf32> -> vector<32x256xf32>
    %129 = arith.addf %124, %128 : vector<32x256xf32>
    %130 = arith.truncf %120 : vector<32x256xf32> to vector<32x256xbf16>
    %c8 = arith.constant 8 : index
    %c0_67 = arith.constant 0 : index
    %c0_68 = arith.constant 0 : index
    %131 = vector.load %arg2[%c8, %c0_67, %c0_68] : memref<12x256x256xbf16, #tpu.memory_space<vmem>>, vector<1x256x256xbf16>
    %132 = vector.shape_cast %131 : vector<1x256x256xbf16> to vector<256x256xbf16>
    %cst_69 = arith.constant dense<0.000000e+00> : vector<32x256xf32>
    %133 = tpu.matmul %130, %132, %cst_69 {dimension_numbers = #tpu.dot_dimension_numbers<[1], [0], [0], [1], [0, 0, 1, 1], [], []>} : vector<32x256xbf16>, vector<256x256xbf16>, vector<32x256xf32> -> vector<32x256xf32>
    %134 = arith.addf %129, %133 : vector<32x256xf32>
    %cst_70 = arith.constant dense<0.000000e+00> : vector<256xf32>
    %135 = vector.multi_reduction <add>, %134, %cst_70 [0] : vector<32x256xf32> to vector<256xf32>
    %136 = vector.shape_cast %135 : vector<256xf32> to vector<1x256xf32>
    %cst_71 = arith.constant dense<0.000000e+00> : vector<1x256xf32>
    %137 = tpu.matmul %136, %21, %cst_71 {dimension_numbers = #tpu.dot_dimension_numbers<[1], [0], [0], [1], [0, 0, 1, 1], [], []>} : vector<1x256xf32>, vector<256x256xf32>, vector<1x256xf32> -> vector<1x256xf32>
    %cst_72 = arith.constant 0.001953125 : f32
    %138 = vector.broadcast %cst_72 : f32 to vector<1x256xf32>
    %139 = arith.mulf %137, %138 : vector<1x256xf32>
    %140 = vector.broadcast %139 : vector<1x256xf32> to vector<32x256xf32>
    %141 = arith.subf %134, %140 : vector<32x256xf32>
    %142 = arith.mulf %141, %141 : vector<32x256xf32>
    %cst_73 = arith.constant dense<0.000000e+00> : vector<256xf32>
    %143 = vector.multi_reduction <add>, %142, %cst_73 [0] : vector<32x256xf32> to vector<256xf32>
    %144 = vector.shape_cast %143 : vector<256xf32> to vector<1x256xf32>
    %cst_74 = arith.constant dense<0.000000e+00> : vector<1x256xf32>
    %145 = tpu.matmul %144, %21, %cst_74 {dimension_numbers = #tpu.dot_dimension_numbers<[1], [0], [0], [1], [0, 0, 1, 1], [], []>} : vector<1x256xf32>, vector<256x256xf32>, vector<1x256xf32> -> vector<1x256xf32>
    %cst_75 = arith.constant 0.001953125 : f32
    %146 = vector.broadcast %cst_75 : f32 to vector<1x256xf32>
    %147 = arith.mulf %145, %146 : vector<1x256xf32>
    %c2_76 = arith.constant 2 : index
    %c0_77 = arith.constant 0 : index
    %c0_78 = arith.constant 0 : index
    %148 = vector.load %arg3[%c2_76, %c0_77, %c0_78] : memref<4x1x256xf32, #tpu.memory_space<vmem>>, vector<1x1x256xf32>
    %149 = vector.shape_cast %148 : vector<1x1x256xf32> to vector<1x256xf32>
    %cst_79 = arith.constant 9.99999974E-6 : f32
    %150 = vector.broadcast %cst_79 : f32 to vector<1x256xf32>
    %151 = arith.addf %147, %150 : vector<1x256xf32>
    %152 = math.rsqrt %151 : vector<1x256xf32>
    %153 = arith.mulf %149, %152 : vector<1x256xf32>
    %154 = vector.broadcast %153 : vector<1x256xf32> to vector<32x256xf32>
    %155 = arith.mulf %141, %154 : vector<32x256xf32>
    %c2_80 = arith.constant 2 : index
    %c0_81 = arith.constant 0 : index
    %c0_82 = arith.constant 0 : index
    %156 = vector.load %arg4[%c2_80, %c0_81, %c0_82] : memref<4x1x256xf32, #tpu.memory_space<vmem>>, vector<1x1x256xf32>
    %157 = vector.shape_cast %156 : vector<1x1x256xf32> to vector<1x256xf32>
    %158 = vector.broadcast %157 : vector<1x256xf32> to vector<32x256xf32>
    %159 = arith.addf %155, %158 : vector<32x256xf32>
    %cst_83 = arith.constant 0.000000e+00 : f32
    %160 = vector.broadcast %cst_83 : f32 to vector<32x256xf32>
    %161 = arith.maximumf %159, %160 : vector<32x256xf32>
    %cst_84 = arith.constant 0.000000e+00 : f32
    %162 = vector.broadcast %cst_84 : f32 to vector<32x256xf32>
    %c1_i32_85 = arith.constant 1 : i32
    %163 = tpu.dynamic_rotate %161 by %c1_i32_85 dim 0 : vector<32x256xf32>, i32 -> vector<32x256xf32>
    %164 = arith.select %18, %163, %162 : vector<32x256xi1>, vector<32x256xf32>
    %c31_i32_86 = arith.constant 31 : i32
    %165 = tpu.dynamic_rotate %161 by %c31_i32_86 dim 0 : vector<32x256xf32>, i32 -> vector<32x256xf32>
    %166 = arith.select %20, %165, %162 : vector<32x256xi1>, vector<32x256xf32>
    %167 = arith.truncf %164 : vector<32x256xf32> to vector<32x256xbf16>
    %c9 = arith.constant 9 : index
    %c0_87 = arith.constant 0 : index
    %c0_88 = arith.constant 0 : index
    %168 = vector.load %arg2[%c9, %c0_87, %c0_88] : memref<12x256x256xbf16, #tpu.memory_space<vmem>>, vector<1x256x256xbf16>
    %169 = vector.shape_cast %168 : vector<1x256x256xbf16> to vector<256x256xbf16>
    %cst_89 = arith.constant dense<0.000000e+00> : vector<32x256xf32>
    %170 = tpu.matmul %167, %169, %cst_89 {dimension_numbers = #tpu.dot_dimension_numbers<[1], [0], [0], [1], [0, 0, 1, 1], [], []>} : vector<32x256xbf16>, vector<256x256xbf16>, vector<32x256xf32> -> vector<32x256xf32>
    %171 = arith.truncf %161 : vector<32x256xf32> to vector<32x256xbf16>
    %c10 = arith.constant 10 : index
    %c0_90 = arith.constant 0 : index
    %c0_91 = arith.constant 0 : index
    %172 = vector.load %arg2[%c10, %c0_90, %c0_91] : memref<12x256x256xbf16, #tpu.memory_space<vmem>>, vector<1x256x256xbf16>
    %173 = vector.shape_cast %172 : vector<1x256x256xbf16> to vector<256x256xbf16>
    %cst_92 = arith.constant dense<0.000000e+00> : vector<32x256xf32>
    %174 = tpu.matmul %171, %173, %cst_92 {dimension_numbers = #tpu.dot_dimension_numbers<[1], [0], [0], [1], [0, 0, 1, 1], [], []>} : vector<32x256xbf16>, vector<256x256xbf16>, vector<32x256xf32> -> vector<32x256xf32>
    %175 = arith.addf %170, %174 : vector<32x256xf32>
    %176 = arith.truncf %166 : vector<32x256xf32> to vector<32x256xbf16>
    %c11 = arith.constant 11 : index
    %c0_93 = arith.constant 0 : index
    %c0_94 = arith.constant 0 : index
    %177 = vector.load %arg2[%c11, %c0_93, %c0_94] : memref<12x256x256xbf16, #tpu.memory_space<vmem>>, vector<1x256x256xbf16>
    %178 = vector.shape_cast %177 : vector<1x256x256xbf16> to vector<256x256xbf16>
    %cst_95 = arith.constant dense<0.000000e+00> : vector<32x256xf32>
    %179 = tpu.matmul %176, %178, %cst_95 {dimension_numbers = #tpu.dot_dimension_numbers<[1], [0], [0], [1], [0, 0, 1, 1], [], []>} : vector<32x256xbf16>, vector<256x256xbf16>, vector<32x256xf32> -> vector<32x256xf32>
    %180 = arith.addf %175, %179 : vector<32x256xf32>
    %cst_96 = arith.constant dense<0.000000e+00> : vector<256xf32>
    %181 = vector.multi_reduction <add>, %180, %cst_96 [0] : vector<32x256xf32> to vector<256xf32>
    %182 = vector.shape_cast %181 : vector<256xf32> to vector<1x256xf32>
    %cst_97 = arith.constant dense<0.000000e+00> : vector<1x256xf32>
    %183 = tpu.matmul %182, %21, %cst_97 {dimension_numbers = #tpu.dot_dimension_numbers<[1], [0], [0], [1], [0, 0, 1, 1], [], []>} : vector<1x256xf32>, vector<256x256xf32>, vector<1x256xf32> -> vector<1x256xf32>
    %cst_98 = arith.constant 0.001953125 : f32
    %184 = vector.broadcast %cst_98 : f32 to vector<1x256xf32>
    %185 = arith.mulf %183, %184 : vector<1x256xf32>
    %186 = vector.broadcast %185 : vector<1x256xf32> to vector<32x256xf32>
    %187 = arith.subf %180, %186 : vector<32x256xf32>
    %188 = arith.mulf %187, %187 : vector<32x256xf32>
    %cst_99 = arith.constant dense<0.000000e+00> : vector<256xf32>
    %189 = vector.multi_reduction <add>, %188, %cst_99 [0] : vector<32x256xf32> to vector<256xf32>
    %190 = vector.shape_cast %189 : vector<256xf32> to vector<1x256xf32>
    %cst_100 = arith.constant dense<0.000000e+00> : vector<1x256xf32>
    %191 = tpu.matmul %190, %21, %cst_100 {dimension_numbers = #tpu.dot_dimension_numbers<[1], [0], [0], [1], [0, 0, 1, 1], [], []>} : vector<1x256xf32>, vector<256x256xf32>, vector<1x256xf32> -> vector<1x256xf32>
    %cst_101 = arith.constant 0.001953125 : f32
    %192 = vector.broadcast %cst_101 : f32 to vector<1x256xf32>
    %193 = arith.mulf %191, %192 : vector<1x256xf32>
    %c3_102 = arith.constant 3 : index
    %c0_103 = arith.constant 0 : index
    %c0_104 = arith.constant 0 : index
    %194 = vector.load %arg3[%c3_102, %c0_103, %c0_104] : memref<4x1x256xf32, #tpu.memory_space<vmem>>, vector<1x1x256xf32>
    %195 = vector.shape_cast %194 : vector<1x1x256xf32> to vector<1x256xf32>
    %cst_105 = arith.constant 9.99999974E-6 : f32
    %196 = vector.broadcast %cst_105 : f32 to vector<1x256xf32>
    %197 = arith.addf %193, %196 : vector<1x256xf32>
    %198 = math.rsqrt %197 : vector<1x256xf32>
    %199 = arith.mulf %195, %198 : vector<1x256xf32>
    %200 = vector.broadcast %199 : vector<1x256xf32> to vector<32x256xf32>
    %201 = arith.mulf %187, %200 : vector<32x256xf32>
    %c3_106 = arith.constant 3 : index
    %c0_107 = arith.constant 0 : index
    %c0_108 = arith.constant 0 : index
    %202 = vector.load %arg4[%c3_106, %c0_107, %c0_108] : memref<4x1x256xf32, #tpu.memory_space<vmem>>, vector<1x1x256xf32>
    %203 = vector.shape_cast %202 : vector<1x1x256xf32> to vector<1x256xf32>
    %204 = vector.broadcast %203 : vector<1x256xf32> to vector<32x256xf32>
    %205 = arith.addf %201, %204 : vector<32x256xf32>
    %206 = arith.addf %205, %115 : vector<32x256xf32>
    %cst_109 = arith.constant 0.000000e+00 : f32
    %207 = vector.broadcast %cst_109 : f32 to vector<32x256xf32>
    %208 = arith.maximumf %206, %207 : vector<32x256xf32>
    %c0_110 = arith.constant 0 : index
    %c0_111 = arith.constant 0 : index
    %209 = vector.load %arg6[%c0_110, %c0_111] : memref<32x256xf32, #tpu.memory_space<vmem>>, vector<32x256xf32>
    tpu.vector_store %arg6[%c0_110, %c0_111], %208 {strides = array<i32>} : memref<32x256xf32, #tpu.memory_space<vmem>>, vector<32x256xf32>,
    return
  }
  func.func @transform_0(%arg0: i32) -> (i32, i32) {
    %c0_i32 = arith.constant 0 : i32
    %c0_i32_0 = arith.constant 0 : i32
    %c0_i32_1 = arith.constant 0 : i32
    return %c0_i32, %c0_i32_0 : i32, i32
  }
  func.func @transform_1(%arg0: i32) -> (i32, i32, i32) {
    %c0_i32 = arith.constant 0 : i32
    %c0_i32_0 = arith.constant 0 : i32
    %c0_i32_1 = arith.constant 0 : i32
    %c0_i32_2 = arith.constant 0 : i32
    return %c0_i32, %c0_i32_0, %c0_i32_1 : i32, i32, i32
  }
  func.func @transform_2(%arg0: i32) -> (i32, i32, i32) {
    %c0_i32 = arith.constant 0 : i32
    %c0_i32_0 = arith.constant 0 : i32
    %c0_i32_1 = arith.constant 0 : i32
    %c0_i32_2 = arith.constant 0 : i32
    return %c0_i32, %c0_i32_0, %c0_i32_1 : i32, i32, i32
  }
  func.func @transform_3(%arg0: i32) -> (i32, i32, i32) {
    %c0_i32 = arith.constant 0 : i32
    %c0_i32_0 = arith.constant 0 : i32
    %c0_i32_1 = arith.constant 0 : i32
    %c0_i32_2 = arith.constant 0 : i32
    return %c0_i32, %c0_i32_0, %c0_i32_1 : i32, i32, i32
  }
  func.func @transform_4(%arg0: i32) -> (i32, i32) {
    %c0_i32 = arith.constant 0 : i32
    %c0_i32_0 = arith.constant 0 : i32
    %c0_i32_1 = arith.constant 0 : i32
    return %c0_i32, %c0_i32_0 : i32, i32
  }
  func.func @transform_5(%arg0: i32) -> (i32, i32) {
    %c0_i32 = arith.constant 0 : i32
    %c0_i32_0 = arith.constant 0 : i32
    %c0_i32_1 = arith.constant 0 : i32
    return %c0_i32, %c0_i32_0 : i32, i32
  }
}

</mosaic_0001>

<llo_original>
// kernel: tpu_custom_call.1
$region0: #{tpu_custom_call.1}
  #allocation0 [shape = 'u32[]', space=smem, size = 0x4, offset = 0x4, fixed_abs, tag = 'smem constant byte address 0x4 - core index']
  #allocation1 [shape = 'u32[72,128]{1,0:T(1,128)}', space=vmem, size = 0x9000, scoped, tag = 'internal scratch']
  %s0 = inlined_call_operand.hbm [shape: f32[32,256], index: 0, kind: input, shape index: {}]
  %s1 = inlined_call_operand.hbm [shape: bf16[12,256,256], index: 1, kind: input, shape index: {}]
  %s2 = inlined_call_operand.hbm [shape: f32[4,1,256], index: 2, kind: input, shape index: {}]
  %s3 = inlined_call_operand.hbm [shape: f32[4,1,256], index: 3, kind: input, shape index: {}]
  %s4 = inlined_call_operand.hbm [shape: f32[256,256], index: 4, kind: input, shape index: {}]
  %s5 = inlined_call_operand.hbm [shape: f32[32,256], index: 5, kind: output, shape index: {}]
  %s6 = sld [smem:[#allocation0]]
  $region50: #{tpu_custom_call.1} parent=0
    _
  %s8 = ssub.s32 1, %s6
  %s9 = scalar_select 0, %s8, %s6
  $region1: #{tpu_custom_call.1} parent=0
    #allocation2 [shape = 'u8[32768]{0}', space=vmem, size = 0x8000, scoped, tag = 'input window, operand 0, single buffered']
    #allocation3 [shape = 's32[1]{0}', space=sflag, size = 0x4, scoped, tag = 'scoped memory for tpu_custom_call.1']
    #allocation4 [shape = 's32[1]{0}', space=sflag, size = 0x4, scoped, tag = 'scoped memory for tpu_custom_call.1']
    #allocation5 [shape = 'u8[1572864]{0}', space=vmem, size = 0x180000, scoped, tag = 'input window, operand 1, single buffered']
    #allocation6 [shape = 's32[1]{0}', space=sflag, size = 0x4, scoped, tag = 'scoped memory for tpu_custom_call.1']
    #allocation7 [shape = 'u8[4096]{0}', space=vmem, size = 0x1000, scoped, tag = 'input window, operand 2, single buffered']
    #allocation8 [shape = 'u8[4096]{0}', space=vmem, size = 0x1000, scoped, tag = 'input window, operand 3, single buffered']
    #allocation9 [shape = 's32[1]{0}', space=sflag, size = 0x4, scoped, tag = 'scoped memory for tpu_custom_call.1']
    #allocation10 [shape = 'u8[262144]{0}', space=vmem, size = 0x40000, scoped, tag = 'input window, operand 4, single buffered']
    #allocation11 [shape = 'u8[32768]{0}', space=vmem, size = 0x8000, scoped, tag = 'output window, operand 0, single buffered']
    %10 = vsyncpa [#allocation3], 0
    %11 = vsyncpa [#allocation6], 0
    %12 = vsyncpa [#allocation9], 0
    %13 = vsyncpa [#allocation4], 0
    // Predicated region
    $region2: #{tpu_custom_call.1} parent=1 // pred_check
      _
    $region3: #{tpu_custom_call.1} parent=1 // pred_check_branch
      %15 = sbr.rel (0) target = $region5
    $region4: #{tpu_custom_call.1} parent=1 // pred_region
      %17 = vsyncadd [#allocation3], 0
      %s18 = sshll.u32 %s0, 4
      %s19 = int_to_ptr.hbm [resolvable:$true] %s18
      %s20 = sshll.u32 [#allocation2], 4
      %s21 = int_to_ptr.vmem [resolvable:$true] %s20
      %26 = dma.hbm_to_vmem [thread:$0]  %s19, 1024, %s21, [#allocation3], 256, 256, 16
    $region5: #{tpu_custom_call.1} parent=1 // pred_fallthru
      _
    // Predicated region
    $region6: #{tpu_custom_call.1} parent=1 // pred_check
      _
    $region7: #{tpu_custom_call.1} parent=1 // pred_check_branch
      %28 = sbr.rel (0) target = $region9
    $region8: #{tpu_custom_call.1} parent=1 // pred_region
      %30 = vsyncadd [#allocation6], 0
      %s31 = sshll.u32 %s1, 4
      %s32 = int_to_ptr.hbm [resolvable:$true] %s31
      %s33 = sshll.u32 [#allocation5], 4
      %s34 = int_to_ptr.vmem [resolvable:$true] %s33
      %39 = dma.hbm_to_vmem [thread:$0]  %s32, 49152, %s34, [#allocation6], 128, 128, 8
    $region9: #{tpu_custom_call.1} parent=1 // pred_fallthru
      _
    // Predicated region
    $region10: #{tpu_custom_call.1} parent=1 // pred_check
      _
    $region11: #{tpu_custom_call.1} parent=1 // pred_check_branch
      %41 = sbr.rel (0) target = $region13
    $region12: #{tpu_custom_call.1} parent=1 // pred_region
      %43 = vsyncadd [#allocation6], 0
      %s44 = sshll.u32 %s2, 4
      %s45 = int_to_ptr.hbm [resolvable:$true] %s44
      %s46 = sshll.u32 [#allocation7], 4
      %s47 = int_to_ptr.vmem [resolvable:$true] %s46
      %52 = dma.hbm_to_vmem [thread:$0]  %s45, 128, %s47, [#allocation6], 32, 32, 2
    $region13: #{tpu_custom_call.1} parent=1 // pred_fallthru
      _
    // Predicated region
    $region14: #{tpu_custom_call.1} parent=1 // pred_check
      _
    $region15: #{tpu_custom_call.1} parent=1 // pred_check_branch
      %54 = sbr.rel (0) target = $region17
    $region16: #{tpu_custom_call.1} parent=1 // pred_region
      %56 = vsyncadd [#allocation9], 0
      %s57 = sshll.u32 %s3, 4
      %s58 = int_to_ptr.hbm [resolvable:$true] %s57
      %s59 = sshll.u32 [#allocation8], 4
      %s60 = int_to_ptr.vmem [resolvable:$true] %s59
      %65 = dma.hbm_to_vmem [thread:$0]  %s58, 128, %s60, [#allocation9], 32, 32, 2
    $region17: #{tpu_custom_call.1} parent=1 // pred_fallthru
      _
    // Predicated region
    $region18: #{tpu_custom_call.1} parent=1 // pred_check
      _
    $region19: #{tpu_custom_call.1} parent=1 // pred_check_branch
      %67 = sbr.rel (0) target = $region21
    $region20: #{tpu_custom_call.1} parent=1 // pred_region
      %69 = vsyncadd [#allocation9], 0
      %s70 = sshll.u32 %s4, 4
      %s71 = int_to_ptr.hbm [resolvable:$true] %s70
      %s72 = sshll.u32 [#allocation10], 4
      %s73 = int_to_ptr.vmem [resolvable:$true] %s72
      %78 = dma.hbm_to_vmem [thread:$0]  %s71, 8192, %s73, [#allocation9], 256, 256, 16
    $region21: #{tpu_custom_call.1} parent=1 // pred_fallthru
      _
    // Predicated region
    $region22: #{tpu_custom_call.1} parent=1 // pred_check
      _
    $region23: #{tpu_custom_call.1} parent=1 // pred_check_branch
      %80 = sbr.rel (0) target = $region25
    $region24: #{tpu_custom_call.1} parent=1 // pred_region
      %82 = dma.done [#allocation3], 1024
    $region25: #{tpu_custom_call.1} parent=1 // pred_fallthru
      _
    // Predicated region
    $region26: #{tpu_custom_call.1} parent=1 // pred_check
      _
    $region27: #{tpu_custom_call.1} parent=1 // pred_check_branch
      %84 = sbr.rel (0) target = $region29
    $region28: #{tpu_custom_call.1} parent=1 // pred_region
      %86 = dma.done [#allocation6], 49152
    $region29: #{tpu_custom_call.1} parent=1 // pred_fallthru
      _
    // Predicated region
    $region30: #{tpu_custom_call.1} parent=1 // pred_check
      _
    $region31: #{tpu_custom_call.1} parent=1 // pred_check_branch
      %88 = sbr.rel (0) target = $region33
    $region32: #{tpu_custom_call.1} parent=1 // pred_region
      %90 = dma.done [#allocation6], 128
    $region33: #{tpu_custom_call.1} parent=1 // pred_fallthru
      _
    // Predicated region
    $region34: #{tpu_custom_call.1} parent=1 // pred_check
      _
    $region35: #{tpu_custom_call.1} parent=1 // pred_check_branch
      %92 = sbr.rel (0) target = $region37
    $region36: #{tpu_custom_call.1} parent=1 // pred_region
      %94 = dma.done [#allocation9], 128
    $region37: #{tpu_custom_call.1} parent=1 // pred_fallthru
      _
    // Predicated region
    $region38: #{tpu_custom_call.1} parent=1 // pred_check
      _
    $region39: #{tpu_custom_call.1} parent=1 // pred_check_branch
      %96 = sbr.rel (0) target = $region41
    $region40: #{tpu_custom_call.1} parent=1 // pred_region
      %98 = dma.done [#allocation9], 8192
    $region41: #{tpu_custom_call.1} parent=1 // pred_fallthru
      _
    %v99 = vlaneseq
    %v100 = vshrl.u32 %v99, 7
    %v101 = vadd.s32 %v100, 8
    %v102 = vadd.s32 %v100, 16
    %v103 = vadd.s32 %v100, 24
    %vm104 = vcmp.lt.s32.totalorder %v100, 0
    %v105 = vsub.s32 0, %v100
    %v106 = vsel %vm104, %v105, %v100
    %v107 = vshrl.u32 %v106, 4
    %v108 = vand.u32 %v106, 15
    %v109 = vsub.s32 0, %v108
    %v110 = vsel %vm104, %v109, %v108
    %vm111 = vcmp.lt.s32.totalorder %v101, 0
    %v112 = vsub.s32 0, %v101
    %v113 = vsel %vm111, %v112, %v101
    %v114 = vshrl.u32 %v113, 4
    %v115 = vand.u32 %v113, 15
    %v116 = vsub.s32 0, %v115
    %v117 = vsel %vm111, %v116, %v115
    %vm118 = vcmp.lt.s32.totalorder %v102, 0
    %v119 = vsub.s32 0, %v102
    %v120 = vsel %vm118, %v119, %v102
    %v121 = vshrl.u32 %v120, 4
    %v122 = vand.u32 %v120, 15
    %v123 = vsub.s32 0, %v122
    %v124 = vsel %vm118, %v123, %v122
    %vm125 = vcmp.lt.s32.totalorder %v103, 0
    %v126 = vsub.s32 0, %v103
    %v127 = vsel %vm125, %v126, %v103
    %v128 = vshrl.u32 %v127, 4
    %v129 = vand.u32 %v127, 15
    %v130 = vsub.s32 0, %v129
    %v131 = vsel %vm125, %v130, %v129
    %vm132 = vcmp.ne.s32.totalorder %v110, 0
    %vm133 = vcmp.ne.s32.totalorder %v117, 0
    %vm134 = vcmp.ne.s32.totalorder %v124, 0
    %vm135 = vcmp.ne.s32.totalorder %v131, 0
    %vm136 = vcmp.lt.s32.totalorder %v110, 0
    %vm137 = vcmp.lt.s32.totalorder %v117, 0
    %vm138 = vcmp.lt.s32.totalorder %v124, 0
    %vm139 = vcmp.lt.s32.totalorder %v131, 0
    %vm140 = vmand %vm136, %vm132
    %vm141 = vmand %vm137, %vm133
    %vm142 = vmand %vm138, %vm134
    %vm143 = vmand %vm139, %vm135
    %v144 = vadd.s32 %v110, 16
    %v145 = vadd.s32 %v117, 16
    %v146 = vadd.s32 %v124, 16
    %v147 = vadd.s32 %v131, 16
    %v148 = vsel %vm140, %v144, %v110
    %v149 = vsel %vm141, %v145, %v117
    %v150 = vsel %vm142, %v146, %v124
    %v151 = vsel %vm143, %v147, %v131
    %vm152 = vcmp.ne.s32.totalorder %v148, 0
    %vm153 = vcmp.ne.s32.totalorder %v149, 0
    %vm154 = vcmp.ne.s32.totalorder %v150, 0
    %vm155 = vcmp.ne.s32.totalorder %v151, 0
    %vm156 = vcmp.ne.s32.totalorder %v148, 15
    %vm157 = vcmp.ne.s32.totalorder %v149, 15
    %vm158 = vcmp.ne.s32.totalorder %v150, 15
    %vm159 = vcmp.ne.s32.totalorder %v151, 15
    %v160 = vld [vmem:[#allocation10] sm:$0xff]
    %v161 = vld [vmem:[#allocation10 + $0x8] sm:$0xff]
    %v162 = vld [vmem:[#allocation10 + $0x10] sm:$0xff]
    %v163 = vld [vmem:[#allocation10 + $0x18] sm:$0xff]
    %v164 = vld [vmem:[#allocation10 + $0x20] sm:$0xff]
    %v165 = vld [vmem:[#allocation10 + $0x28] sm:$0xff]
    %v166 = vld [vmem:[#allocation10 + $0x30] sm:$0xff]
    %v167 = vld [vmem:[#allocation10 + $0x38] sm:$0xff]
    %v168 = vld [vmem:[#allocation10 + $0x40] sm:$0xff]
    %v169 = vld [vmem:[#allocation10 + $0x48] sm:$0xff]
    %v170 = vld [vmem:[#allocation10 + $0x50] sm:$0xff]
    %v171 = vld [vmem:[#allocation10 + $0x58] sm:$0xff]
    %v172 = vld [vmem:[#allocation10 + $0x60] sm:$0xff]
    %v173 = vld [vmem:[#allocation10 + $0x68] sm:$0xff]
    %v174 = vld [vmem:[#allocation10 + $0x70] sm:$0xff]
    %v175 = vld [vmem:[#allocation10 + $0x78] sm:$0xff]
    %v176 = vld [vmem:[#allocation10 + $0x80] sm:$0xff]
    %v177 = vld [vmem:[#allocation10 + $0x88] sm:$0xff]
    %v178 = vld [vmem:[#allocation10 + $0x90] sm:$0xff]
    %v179 = vld [vmem:[#allocation10 + $0x98] sm:$0xff]
    %v180 = vld [vmem:[#allocation10 + $0xa0] sm:$0xff]
    %v181 = vld [vmem:[#allocation10 + $0xa8] sm:$0xff]
    %v182 = vld [vmem:[#allocation10 + $0xb0] sm:$0xff]
    %v183 = vld [vmem:[#allocation10 + $0xb8] sm:$0xff]
    %v184 = vld [vmem:[#allocation10 + $0xc0] sm:$0xff]
    %v185 = vld [vmem:[#allocation10 + $0xc8] sm:$0xff]
    %v186 = vld [vmem:[#allocation10 + $0xd0] sm:$0xff]
    %v187 = vld [vmem:[#allocation10 + $0xd8] sm:$0xff]
    %v188 = vld [vmem:[#allocation10 + $0xe0] sm:$0xff]
    %v189 = vld [vmem:[#allocation10 + $0xe8] sm:$0xff]
    %v190 = vld [vmem:[#allocation10 + $0xf0] sm:$0xff]
    %v191 = vld [vmem:[#allocation10 + $0xf8] sm:$0xff]
    %v192 = vld [vmem:[#allocation10 + $0x100] sm:$0xff]
    %v193 = vld [vmem:[#allocation10 + $0x108] sm:$0xff]
    %v194 = vld [vmem:[#allocation10 + $0x110] sm:$0xff]
    %v195 = vld [vmem:[#allocation10 + $0x118] sm:$0xff]
    %v196 = vld [vmem:[#allocation10 + $0x120] sm:$0xff]
    %v197 = vld [vmem:[#allocation10 + $0x128] sm:$0xff]
    %v198 = vld [vmem:[#allocation10 + $0x130] sm:$0xff]
    %v199 = vld [vmem:[#allocation10 + $0x138] sm:$0xff]
    %v200 = vld [vmem:[#allocation10 + $0x140] sm:$0xff]
    %v201 = vld [vmem:[#allocation10 + $0x148] sm:$0xff]
    %v202 = vld [vmem:[#allocation10 + $0x150] sm:$0xff]
    %v203 = vld [vmem:[#allocation10 + $0x158] sm:$0xff]
    %v204 = vld [vmem:[#allocation10 + $0x160] sm:$0xff]
    %v205 = vld [vmem:[#allocation10 + $0x168] sm:$0xff]
    %v206 = vld [vmem:[#allocation10 + $0x170] sm:$0xff]
    %v207 = vld [vmem:[#allocation10 + $0x178] sm:$0xff]
    %v208 = vld [vmem:[#allocation10 + $0x180] sm:$0xff]
    %v209 = vld [vmem:[#allocation10 + $0x188] sm:$0xff]
    %v210 = vld [vmem:[#allocation10 + $0x190] sm:$0xff]
    %v211 = vld [vmem:[#allocation10 + $0x198] sm:$0xff]
    %v212 = vld [vmem:[#allocation10 + $0x1a0] sm:$0xff]
    %v213 = vld [vmem:[#allocation10 + $0x1a8] sm:$0xff]
    %v214 = vld [vmem:[#allocation10 + $0x1b0] sm:$0xff]
    %v215 = vld [vmem:[#allocation10 + $0x1b8] sm:$0xff]
    %v216 = vld [vmem:[#allocation10 + $0x1c0] sm:$0xff]
    %v217 = vld [vmem:[#allocation10 + $0x1c8] sm:$0xff]
    %v218 = vld [vmem:[#allocation10 + $0x1d0] sm:$0xff]
    %v219 = vld [vmem:[#allocation10 + $0x1d8] sm:$0xff]
    %v220 = vld [vmem:[#allocation10 + $0x1e0] sm:$0xff]
    %v221 = vld [vmem:[#allocation10 + $0x1e8] sm:$0xff]
    %v222 = vld [vmem:[#allocation10 + $0x1f0] sm:$0xff]
    %v223 = vld [vmem:[#allocation10 + $0x1f8] sm:$0xff]
    %v224 = vld [vmem:[#allocation2] sm:$0xff]
    %v225 = vld [vmem:[#allocation2 + $0x8] sm:$0xff]
    %v226 = vld [vmem:[#allocation2 + $0x10] sm:$0xff]
    %v227 = vld [vmem:[#allocation2 + $0x18] sm:$0xff]
    %v228 = vld [vmem:[#allocation2 + $0x20] sm:$0xff]
    %v229 = vld [vmem:[#allocation2 + $0x28] sm:$0xff]
    %v230 = vld [vmem:[#allocation2 + $0x30] sm:$0xff]
    %v231 = vld [vmem:[#allocation2 + $0x38] sm:$0xff]
    %v232 = vrot.slane %v224, 7
    %v233 = vrot.slane %v225, 7
    %v234 = vrot.slane %v226, 7
    %v235 = vrot.slane %v227, 7
    %v236 = vrot.slane %v228, 7
    %v237 = vrot.slane %v229, 7
    %v238 = vrot.slane %v230, 7
    %v239 = vrot.slane %v231, 7
    %vm240 = vcmp.lt.s32.totalorder %v100, 1
    %v241 = vsel %vm240, %v236, %v238
    %v242 = vsel %vm240, %v237, %v239
    %v243 = vsel %vm240, %v234, %v236
    %v244 = vsel %vm240, %v235, %v237
    %v245 = vsel %vm240, %v232, %v234
    %v246 = vsel %vm240, %v233, %v235
    %v247 = vsel %vm240, %v238, %v232
    %v248 = vsel %vm240, %v239, %v233
    %v249 = vsel %vm152, %v247, 0.0
    %v250 = vsel %vm152, %v248, 0.0
    %v251 = vsel %vm153, %v245, 0.0
    %v252 = vsel %vm153, %v246, 0.0
    %v253 = vsel %vm154, %v243, 0.0
    %v254 = vsel %vm154, %v244, 0.0
    %v255 = vsel %vm155, %v241, 0.0
    %v256 = vsel %vm155, %v242, 0.0
    %v257 = vrot.slane %v224, 1
    %v258 = vrot.slane %v225, 1
    %v259 = vrot.slane %v226, 1
    %v260 = vrot.slane %v227, 1
    %v261 = vrot.slane %v228, 1
    %v262 = vrot.slane %v229, 1
    %v263 = vrot.slane %v230, 1
    %v264 = vrot.slane %v231, 1
    %vm265 = vcmp.lt.s32.totalorder %v100, 7
    %v266 = vsel %vm265, %v261, %v263
    %v267 = vsel %vm265, %v262, %v264
    %v268 = vsel %vm265, %v259, %v261
    %v269 = vsel %vm265, %v260, %v262
    %v270 = vsel %vm265, %v257, %v259
    %v271 = vsel %vm265, %v258, %v260
    %v272 = vsel %vm265, %v263, %v257
    %v273 = vsel %vm265, %v264, %v258
    %v274 = vsel %vm156, %v270, 0.0
    %v275 = vsel %vm156, %v271, 0.0
    %v276 = vsel %vm157, %v268, 0.0
    %v277 = vsel %vm157, %v269, 0.0
    %v278 = vsel %vm158, %v266, 0.0
    %v279 = vsel %vm158, %v267, 0.0
    %v280 = vsel %vm159, %v272, 0.0
    %v281 = vsel %vm159, %v273, 0.0
    %v282 = vpack.c.bf16 %v251, %v249
    %v283 = vpack.c.bf16 %v252, %v250
    %v284 = vpack.c.bf16 %v255, %v253
    %v285 = vpack.c.bf16 %v256, %v254
    %v286 = vld [vmem:[#allocation5] sm:$0xff]
    %v287 = vld [vmem:[#allocation5 + $0x8] sm:$0xff]
    %v288 = vld [vmem:[#allocation5 + $0x10] sm:$0xff]
    %v289 = vld [vmem:[#allocation5 + $0x18] sm:$0xff]
    %v290 = vld [vmem:[#allocation5 + $0x20] sm:$0xff]
    %v291 = vld [vmem:[#allocation5 + $0x28] sm:$0xff]
    %v292 = vld [vmem:[#allocation5 + $0x30] sm:$0xff]
    %v293 = vld [vmem:[#allocation5 + $0x38] sm:$0xff]
    %v294 = vld [vmem:[#allocation5 + $0x40] sm:$0xff]
    %v295 = vld [vmem:[#allocation5 + $0x48] sm:$0xff]
    %v296 = vld [vmem:[#allocation5 + $0x50] sm:$0xff]
    %v297 = vld [vmem:[#allocation5 + $0x58] sm:$0xff]
    %v298 = vld [vmem:[#allocation5 + $0x60] sm:$0xff]
    %v299 = vld [vmem:[#allocation5 + $0x68] sm:$0xff]
    %v300 = vld [vmem:[#allocation5 + $0x70] sm:$0xff]
    %v301 = vld [vmem:[#allocation5 + $0x78] sm:$0xff]
    %v302 = vld [vmem:[#allocation5 + $0x80] sm:$0xff]
    %v303 = vld [vmem:[#allocation5 + $0x88] sm:$0xff]
    %v304 = vld [vmem:[#allocation5 + $0x90] sm:$0xff]
    %v305 = vld [vmem:[#allocation5 + $0x98] sm:$0xff]
    %v306 = vld [vmem:[#allocation5 + $0xa0] sm:$0xff]
    %v307 = vld [vmem:[#allocation5 + $0xa8] sm:$0xff]
    %v308 = vld [vmem:[#allocation5 + $0xb0] sm:$0xff]
    %v309 = vld [vmem:[#allocation5 + $0xb8] sm:$0xff]
    %v310 = vld [vmem:[#allocation5 + $0xc0] sm:$0xff]
    %v311 = vld [vmem:[#allocation5 + $0xc8] sm:$0xff]
    %v312 = vld [vmem:[#allocation5 + $0xd0] sm:$0xff]
    %v313 = vld [vmem:[#allocation5 + $0xd8] sm:$0xff]
    %v314 = vld [vmem:[#allocation5 + $0xe0] sm:$0xff]
    %v315 = vld [vmem:[#allocation5 + $0xe8] sm:$0xff]
    %v316 = vld [vmem:[#allocation5 + $0xf0] sm:$0xff]
    %v317 = vld [vmem:[#allocation5 + $0xf8] sm:$0xff]
    %v318 = vpack.c.bf16 %v226, %v224
    %v319 = vpack.c.bf16 %v227, %v225
    %v320 = vpack.c.bf16 %v230, %v228
    %v321 = vpack.c.bf16 %v231, %v229
    %s322 = scalar_lea.vmem [#allocation5], 256
    %v323 = vld [vmem:[%s322] sm:$0xff]
    %v324 = vld [vmem:[%s322 + $0x8] sm:$0xff]
    %v325 = vld [vmem:[%s322 + $0x10] sm:$0xff]
    %v326 = vld [vmem:[%s322 + $0x18] sm:$0xff]
    %v327 = vld [vmem:[%s322 + $0x20] sm:$0xff]
    %v328 = vld [vmem:[%s322 + $0x28] sm:$0xff]
    %v329 = vld [vmem:[%s322 + $0x30] sm:$0xff]
    %v330 = vld [vmem:[%s322 + $0x38] sm:$0xff]
    %v331 = vld [vmem:[%s322 + $0x40] sm:$0xff]
    %v332 = vld [vmem:[%s322 + $0x48] sm:$0xff]
    %v333 = vld [vmem:[%s322 + $0x50] sm:$0xff]
    %v334 = vld [vmem:[%s322 + $0x58] sm:$0xff]
    %v335 = vld [vmem:[%s322 + $0x60] sm:$0xff]
    %v336 = vld [vmem:[%s322 + $0x68] sm:$0xff]
    %v337 = vld [vmem:[%s322 + $0x70] sm:$0xff]
    %v338 = vld [vmem:[%s322 + $0x78] sm:$0xff]
    %v339 = vld [vmem:[%s322 + $0x80] sm:$0xff]
    %v340 = vld [vmem:[%s322 + $0x88] sm:$0xff]
    %v341 = vld [vmem:[%s322 + $0x90] sm:$0xff]
    %v342 = vld [vmem:[%s322 + $0x98] sm:$0xff]
    %v343 = vld [vmem:[%s322 + $0xa0] sm:$0xff]
    %v344 = vld [vmem:[%s322 + $0xa8] sm:$0xff]
    %v345 = vld [vmem:[%s322 + $0xb0] sm:$0xff]
    %v346 = vld [vmem:[%s322 + $0xb8] sm:$0xff]
    %v347 = vld [vmem:[%s322 + $0xc0] sm:$0xff]
    %v348 = vld [vmem:[%s322 + $0xc8] sm:$0xff]
    %v349 = vld [vmem:[%s322 + $0xd0] sm:$0xff]
    %v350 = vld [vmem:[%s322 + $0xd8] sm:$0xff]
    %v351 = vld [vmem:[%s322 + $0xe0] sm:$0xff]
    %v352 = vld [vmem:[%s322 + $0xe8] sm:$0xff]
    %v353 = vld [vmem:[%s322 + $0xf0] sm:$0xff]
    %v354 = vld [vmem:[%s322 + $0xf8] sm:$0xff]
    %v387 = vunpack.c.l.b16 %v323
    %v388 = vunpack.c.h.b16 %v323
    %v389 = vunpack.c.l.b16 %v324
    %v390 = vunpack.c.h.b16 %v324
    %v391 = vunpack.c.l.b16 %v325
    %v392 = vunpack.c.h.b16 %v325
    %v393 = vunpack.c.l.b16 %v326
    %v394 = vunpack.c.h.b16 %v326
    %v395 = vunpack.c.l.b16 %v327
    %v396 = vunpack.c.h.b16 %v327
    %v397 = vunpack.c.l.b16 %v328
    %v398 = vunpack.c.h.b16 %v328
    %v399 = vunpack.c.l.b16 %v329
    %v400 = vunpack.c.h.b16 %v329
    %v401 = vunpack.c.l.b16 %v330
    %v402 = vunpack.c.h.b16 %v330
    %v403 = vunpack.c.l.b16 %v331
    %v404 = vunpack.c.h.b16 %v331
    %v405 = vunpack.c.l.b16 %v332
    %v406 = vunpack.c.h.b16 %v332
    %v407 = vunpack.c.l.b16 %v333
    %v408 = vunpack.c.h.b16 %v333
    %v409 = vunpack.c.l.b16 %v334
    %v410 = vunpack.c.h.b16 %v334
    %v411 = vunpack.c.l.b16 %v335
    %v412 = vunpack.c.h.b16 %v335
    %v413 = vunpack.c.l.b16 %v336
    %v414 = vunpack.c.h.b16 %v336
    %v415 = vunpack.c.l.b16 %v337
    %v416 = vunpack.c.h.b16 %v337
    %v417 = vunpack.c.l.b16 %v338
    %v418 = vunpack.c.h.b16 %v338
    %v419 = vunpack.c.l.b16 %v339
    %v420 = vunpack.c.h.b16 %v339
    %v421 = vunpack.c.l.b16 %v340
    %v422 = vunpack.c.h.b16 %v340
    %v423 = vunpack.c.l.b16 %v341
    %v424 = vunpack.c.h.b16 %v341
    %v425 = vunpack.c.l.b16 %v342
    %v426 = vunpack.c.h.b16 %v342
    %v427 = vunpack.c.l.b16 %v343
    %v428 = vunpack.c.h.b16 %v343
    %v429 = vunpack.c.l.b16 %v344
    %v430 = vunpack.c.h.b16 %v344
    %v431 = vunpack.c.l.b16 %v345
    %v432 = vunpack.c.h.b16 %v345
    %v433 = vunpack.c.l.b16 %v346
    %v434 = vunpack.c.h.b16 %v346
    %v435 = vunpack.c.l.b16 %v347
    %v436 = vunpack.c.h.b16 %v347
    %v437 = vunpack.c.l.b16 %v348
    %v438 = vunpack.c.h.b16 %v348
    %v439 = vunpack.c.l.b16 %v349
    %v440 = vunpack.c.h.b16 %v349
    %v441 = vunpack.c.l.b16 %v350
    %v442 = vunpack.c.h.b16 %v350
    %v443 = vunpack.c.l.b16 %v351
    %v444 = vunpack.c.h.b16 %v351
    %v445 = vunpack.c.l.b16 %v352
    %v446 = vunpack.c.h.b16 %v352
    %v447 = vunpack.c.l.b16 %v353
    %v448 = vunpack.c.h.b16 %v353
    %v449 = vunpack.c.l.b16 %v354
    %v450 = vunpack.c.h.b16 %v354
    %v451 = vpack.c.b16 %v389, %v387
    %v452 = vpack.c.b16 %v390, %v388
    %v453 = vpack.c.b16 %v393, %v391
    %v454 = vpack.c.b16 %v394, %v392
    %v455 = vpack.c.b16 %v397, %v395
    %v456 = vpack.c.b16 %v398, %v396
    %v457 = vpack.c.b16 %v401, %v399
    %v458 = vpack.c.b16 %v402, %v400
    %v459 = vpack.c.b16 %v405, %v403
    %v460 = vpack.c.b16 %v406, %v404
    %v461 = vpack.c.b16 %v409, %v407
    %v462 = vpack.c.b16 %v410, %v408
    %v463 = vpack.c.b16 %v413, %v411
    %v464 = vpack.c.b16 %v414, %v412
    %v465 = vpack.c.b16 %v417, %v415
    %v466 = vpack.c.b16 %v418, %v416
    %v467 = vpack.c.b16 %v421, %v419
    %v468 = vpack.c.b16 %v422, %v420
    %v469 = vpack.c.b16 %v425, %v423
    %v470 = vpack.c.b16 %v426, %v424
    %v471 = vpack.c.b16 %v429, %v427
    %v472 = vpack.c.b16 %v430, %v428
    %v473 = vpack.c.b16 %v433, %v431
    %v474 = vpack.c.b16 %v434, %v432
    %v475 = vpack.c.b16 %v437, %v435
    %v476 = vpack.c.b16 %v438, %v436
    %v477 = vpack.c.b16 %v441, %v439
    %v478 = vpack.c.b16 %v442, %v440
    %v479 = vpack.c.b16 %v445, %v443
    %v480 = vpack.c.b16 %v446, %v444
    %v481 = vpack.c.b16 %v449, %v447
    %v482 = vpack.c.b16 %v450, %v448
    %515 = vmatpush.bf16.msra.mxu0 %v465
    %516 = vmatpush.bf16.msra.mxu0 %v463
    %517 = vmatpush.bf16.msra.mxu0 %v461
    %518 = vmatpush.bf16.msra.mxu0 %v459
    %519 = vmatpush.bf16.msra.mxu0 %v457
    %520 = vmatpush.bf16.msra.mxu0 %v455
    %521 = vmatpush.bf16.msra.mxu0 %v453
    %522 = vmatpush.bf16.msra.mxu0 %v451
    %523 = vmatmul.bf16.gmra.mxu0 %v318
    %v524 = vpop.f32.mrf.mxu0
    %v525 = vadd.f32 0.0, %v524
    %v526 = vpop.f32.mrf.mxu0
    %v527 = vadd.f32 0.0, %v526
    %528 = vmatmul.bf16.gmra.mxu0 %v320
    %v529 = vpop.f32.mrf.mxu0
    %v530 = vadd.f32 0.0, %v529
    %v531 = vpop.f32.mrf.mxu0
    %v532 = vadd.f32 0.0, %v531
    %533 = vdwg.mxu0
    %534 = vmatpush.bf16.msra.mxu0 %v481
    %535 = vmatpush.bf16.msra.mxu0 %v479
    %536 = vmatpush.bf16.msra.mxu0 %v477
    %537 = vmatpush.bf16.msra.mxu0 %v475
    %538 = vmatpush.bf16.msra.mxu0 %v473
    %539 = vmatpush.bf16.msra.mxu0 %v471
    %540 = vmatpush.bf16.msra.mxu0 %v469
    %541 = vmatpush.bf16.msra.mxu0 %v467
    %542 = vmatmul.bf16.gmra.mxu0 %v319
    %v543 = vpop.f32.mrf.mxu0
    %v544 = vadd.f32 %v525, %v543
    %v545 = vpop.f32.mrf.mxu0
    %v546 = vadd.f32 %v527, %v545
    %547 = vmatmul.bf16.gmra.mxu0 %v321
    %v548 = vpop.f32.mrf.mxu0
    %v549 = vadd.f32 %v530, %v548
    %v550 = vpop.f32.mrf.mxu0
    %v551 = vadd.f32 %v532, %v550
    %552 = vdwg.mxu0
    %553 = vmatpush.bf16.msra.mxu0 %v466
    %554 = vmatpush.bf16.msra.mxu0 %v464
    %555 = vmatpush.bf16.msra.mxu0 %v462
    %556 = vmatpush.bf16.msra.mxu0 %v460
    %557 = vmatpush.bf16.msra.mxu0 %v458
    %558 = vmatpush.bf16.msra.mxu0 %v456
    %559 = vmatpush.bf16.msra.mxu0 %v454
    %560 = vmatpush.bf16.msra.mxu0 %v452
    %561 = vmatmul.bf16.gmra.mxu0 %v318
    %v562 = vpop.f32.mrf.mxu0
    %v563 = vadd.f32 0.0, %v562
    %v564 = vpop.f32.mrf.mxu0
    %v565 = vadd.f32 0.0, %v564
    %566 = vmatmul.bf16.gmra.mxu0 %v320
    %v567 = vpop.f32.mrf.mxu0
    %v568 = vadd.f32 0.0, %v567
    %v569 = vpop.f32.mrf.mxu0
    %v570 = vadd.f32 0.0, %v569
    %571 = vdwg.mxu0
    %572 = vmatpush.bf16.msra.mxu0 %v482
    %573 = vmatpush.bf16.msra.mxu0 %v480
    %574 = vmatpush.bf16.msra.mxu0 %v478
    %575 = vmatpush.bf16.msra.mxu0 %v476
    %576 = vmatpush.bf16.msra.mxu0 %v474
    %577 = vmatpush.bf16.msra.mxu0 %v472
    %578 = vmatpush.bf16.msra.mxu0 %v470
    %579 = vmatpush.bf16.msra.mxu0 %v468
    %580 = vmatmul.bf16.gmra.mxu0 %v319
    %v581 = vpop.f32.mrf.mxu0
    %v582 = vadd.f32 %v563, %v581
    %v583 = vpop.f32.mrf.mxu0
    %v584 = vadd.f32 %v565, %v583
    %585 = vmatmul.bf16.gmra.mxu0 %v321
    %v586 = vpop.f32.mrf.mxu0
    %v587 = vadd.f32 %v568, %v586
    %v588 = vpop.f32.mrf.mxu0
    %v589 = vadd.f32 %v570, %v588
    %590 = vdwg.mxu0
    %v623 = vunpack.c.l.b16 %v286
    %v624 = vunpack.c.h.b16 %v286
    %v625 = vunpack.c.l.b16 %v287
    %v626 = vunpack.c.h.b16 %v287
    %v627 = vunpack.c.l.b16 %v288
    %v628 = vunpack.c.h.b16 %v288
    %v629 = vunpack.c.l.b16 %v289
    %v630 = vunpack.c.h.b16 %v289
    %v631 = vunpack.c.l.b16 %v290
    %v632 = vunpack.c.h.b16 %v290
    %v633 = vunpack.c.l.b16 %v291
    %v634 = vunpack.c.h.b16 %v291
    %v635 = vunpack.c.l.b16 %v292
    %v636 = vunpack.c.h.b16 %v292
    %v637 = vunpack.c.l.b16 %v293
    %v638 = vunpack.c.h.b16 %v293
    %v639 = vunpack.c.l.b16 %v294
    %v640 = vunpack.c.h.b16 %v294
    %v641 = vunpack.c.l.b16 %v295
    %v642 = vunpack.c.h.b16 %v295
    %v643 = vunpack.c.l.b16 %v296
    %v644 = vunpack.c.h.b16 %v296
    %v645 = vunpack.c.l.b16 %v297
    %v646 = vunpack.c.h.b16 %v297
    %v647 = vunpack.c.l.b16 %v298
    %v648 = vunpack.c.h.b16 %v298
    %v649 = vunpack.c.l.b16 %v299
    %v650 = vunpack.c.h.b16 %v299
    %v651 = vunpack.c.l.b16 %v300
    %v652 = vunpack.c.h.b16 %v300
    %v653 = vunpack.c.l.b16 %v301
    %v654 = vunpack.c.h.b16 %v301
    %v655 = vunpack.c.l.b16 %v302
    %v656 = vunpack.c.h.b16 %v302
    %v657 = vunpack.c.l.b16 %v303
    %v658 = vunpack.c.h.b16 %v303
    %v659 = vunpack.c.l.b16 %v304
    %v660 = vunpack.c.h.b16 %v304
    %v661 = vunpack.c.l.b16 %v305
    %v662 = vunpack.c.h.b16 %v305
    %v663 = vunpack.c.l.b16 %v306
    %v664 = vunpack.c.h.b16 %v306
    %v665 = vunpack.c.l.b16 %v307
    %v666 = vunpack.c.h.b16 %v307
    %v667 = vunpack.c.l.b16 %v308
    %v668 = vunpack.c.h.b16 %v308
    %v669 = vunpack.c.l.b16 %v309
    %v670 = vunpack.c.h.b16 %v309
    %v671 = vunpack.c.l.b16 %v310
    %v672 = vunpack.c.h.b16 %v310
    %v673 = vunpack.c.l.b16 %v311
    %v674 = vunpack.c.h.b16 %v311
    %v675 = vunpack.c.l.b16 %v312
    %v676 = vunpack.c.h.b16 %v312
    %v677 = vunpack.c.l.b16 %v313
    %v678 = vunpack.c.h.b16 %v313
    %v679 = vunpack.c.l.b16 %v314
    %v680 = vunpack.c.h.b16 %v314
    %v681 = vunpack.c.l.b16 %v315
    %v682 = vunpack.c.h.b16 %v315
    %v683 = vunpack.c.l.b16 %v316
    %v684 = vunpack.c.h.b16 %v316
    %v685 = vunpack.c.l.b16 %v317
    %v686 = vunpack.c.h.b16 %v317
    %v687 = vpack.c.b16 %v625, %v623
    %v688 = vpack.c.b16 %v626, %v624
    %v689 = vpack.c.b16 %v629, %v627
    %v690 = vpack.c.b16 %v630, %v628
    %v691 = vpack.c.b16 %v633, %v631
    %v692 = vpack.c.b16 %v634, %v632
    %v693 = vpack.c.b16 %v637, %v635
    %v694 = vpack.c.b16 %v638, %v636
    %v695 = vpack.c.b16 %v641, %v639
    %v696 = vpack.c.b16 %v642, %v640
    %v697 = vpack.c.b16 %v645, %v643
    %v698 = vpack.c.b16 %v646, %v644
    %v699 = vpack.c.b16 %v649, %v647
    %v700 = vpack.c.b16 %v650, %v648
    %v701 = vpack.c.b16 %v653, %v651
    %v702 = vpack.c.b16 %v654, %v652
    %v703 = vpack.c.b16 %v657, %v655
    %v704 = vpack.c.b16 %v658, %v656
    %v705 = vpack.c.b16 %v661, %v659
    %v706 = vpack.c.b16 %v662, %v660
    %v707 = vpack.c.b16 %v665, %v663
    %v708 = vpack.c.b16 %v666, %v664
    %v709 = vpack.c.b16 %v669, %v667
    %v710 = vpack.c.b16 %v670, %v668
    %v711 = vpack.c.b16 %v673, %v671
    %v712 = vpack.c.b16 %v674, %v672
    %v713 = vpack.c.b16 %v677, %v675
    %v714 = vpack.c.b16 %v678, %v676
    %v715 = vpack.c.b16 %v681, %v679
    %v716 = vpack.c.b16 %v682, %v680
    %v717 = vpack.c.b16 %v685, %v683
    %v718 = vpack.c.b16 %v686, %v684
    %751 = vmatpush.bf16.msra.mxu0 %v701
    %752 = vmatpush.bf16.msra.mxu0 %v699
    %753 = vmatpush.bf16.msra.mxu0 %v697
    %754 = vmatpush.bf16.msra.mxu0 %v695
    %755 = vmatpush.bf16.msra.mxu0 %v693
    %756 = vmatpush.bf16.msra.mxu0 %v691
    %757 = vmatpush.bf16.msra.mxu0 %v689
    %758 = vmatpush.bf16.msra.mxu0 %v687
    %759 = vmatmul.bf16.gmra.mxu0 %v282
    %v760 = vpop.f32.mrf.mxu0
    %v761 = vadd.f32 %v544, %v760
    %v762 = vpop.f32.mrf.mxu0
    %v763 = vadd.f32 %v546, %v762
    %764 = vmatmul.bf16.gmra.mxu0 %v284
    %v765 = vpop.f32.mrf.mxu0
    %v766 = vadd.f32 %v549, %v765
    %v767 = vpop.f32.mrf.mxu0
    %v768 = vadd.f32 %v551, %v767
    %769 = vdwg.mxu0
    %770 = vmatpush.bf16.msra.mxu0 %v717
    %771 = vmatpush.bf16.msra.mxu0 %v715
    %772 = vmatpush.bf16.msra.mxu0 %v713
    %773 = vmatpush.bf16.msra.mxu0 %v711
    %774 = vmatpush.bf16.msra.mxu0 %v709
    %775 = vmatpush.bf16.msra.mxu0 %v707
    %776 = vmatpush.bf16.msra.mxu0 %v705
    %777 = vmatpush.bf16.msra.mxu0 %v703
    %778 = vmatmul.bf16.gmra.mxu0 %v283
    %v779 = vpop.f32.mrf.mxu0
    %v780 = vadd.f32 %v761, %v779
    %v781 = vpop.f32.mrf.mxu0
    %v782 = vadd.f32 %v763, %v781
    %783 = vmatmul.bf16.gmra.mxu0 %v285
    %v784 = vpop.f32.mrf.mxu0
    %v785 = vadd.f32 %v766, %v784
    %v786 = vpop.f32.mrf.mxu0
    %v787 = vadd.f32 %v768, %v786
    %788 = vdwg.mxu0
    %789 = vmatpush.bf16.msra.mxu0 %v702
    %790 = vmatpush.bf16.msra.mxu0 %v700
    %791 = vmatpush.bf16.msra.mxu0 %v698
    %792 = vmatpush.bf16.msra.mxu0 %v696
    %793 = vmatpush.bf16.msra.mxu0 %v694
    %794 = vmatpush.bf16.msra.mxu0 %v692
    %795 = vmatpush.bf16.msra.mxu0 %v690
    %796 = vmatpush.bf16.msra.mxu0 %v688
    %797 = vmatmul.bf16.gmra.mxu0 %v282
    %v798 = vpop.f32.mrf.mxu0
    %v799 = vadd.f32 %v582, %v798
    %v800 = vpop.f32.mrf.mxu0
    %v801 = vadd.f32 %v584, %v800
    %802 = vmatmul.bf16.gmra.mxu0 %v284
    %v803 = vpop.f32.mrf.mxu0
    %v804 = vadd.f32 %v587, %v803
    %v805 = vpop.f32.mrf.mxu0
    %v806 = vadd.f32 %v589, %v805
    %807 = vdwg.mxu0
    %808 = vmatpush.bf16.msra.mxu0 %v718
    %809 = vmatpush.bf16.msra.mxu0 %v716
    %810 = vmatpush.bf16.msra.mxu0 %v714
    %811 = vmatpush.bf16.msra.mxu0 %v712
    %812 = vmatpush.bf16.msra.mxu0 %v710
    %813 = vmatpush.bf16.msra.mxu0 %v708
    %814 = vmatpush.bf16.msra.mxu0 %v706
    %815 = vmatpush.bf16.msra.mxu0 %v704
    %816 = vmatmul.bf16.gmra.mxu0 %v283
    %v817 = vpop.f32.mrf.mxu0
    %v818 = vadd.f32 %v799, %v817
    %v819 = vpop.f32.mrf.mxu0
    %v820 = vadd.f32 %v801, %v819
    %821 = vmatmul.bf16.gmra.mxu0 %v285
    %v822 = vpop.f32.mrf.mxu0
    %v823 = vadd.f32 %v804, %v822
    %v824 = vpop.f32.mrf.mxu0
    %v825 = vadd.f32 %v806, %v824
    %826 = vdwg.mxu0
    %v827 = vpack.c.bf16 %v276, %v274
    %v828 = vpack.c.bf16 %v277, %v275
    %v829 = vpack.c.bf16 %v280, %v278
    %v830 = vpack.c.bf16 %v281, %v279
    %s831 = scalar_lea.vmem [#allocation5], 512
    %v832 = vld [vmem:[%s831] sm:$0xff]
    %v833 = vld [vmem:[%s831 + $0x8] sm:$0xff]
    %v834 = vld [vmem:[%s831 + $0x10] sm:$0xff]
    %v835 = vld [vmem:[%s831 + $0x18] sm:$0xff]
    %v836 = vld [vmem:[%s831 + $0x20] sm:$0xff]
    %v837 = vld [vmem:[%s831 + $0x28] sm:$0xff]
    %v838 = vld [vmem:[%s831 + $0x30] sm:$0xff]
    %v839 = vld [vmem:[%s831 + $0x38] sm:$0xff]
    %v840 = vld [vmem:[%s831 + $0x40] sm:$0xff]
    %v841 = vld [vmem:[%s831 + $0x48] sm:$0xff]
    %v842 = vld [vmem:[%s831 + $0x50] sm:$0xff]
    %v843 = vld [vmem:[%s831 + $0x58] sm:$0xff]
    %v844 = vld [vmem:[%s831 + $0x60] sm:$0xff]
    %v845 = vld [vmem:[%s831 + $0x68] sm:$0xff]
    %v846 = vld [vmem:[%s831 + $0x70] sm:$0xff]
    %v847 = vld [vmem:[%s831 + $0x78] sm:$0xff]
    %v848 = vld [vmem:[%s831 + $0x80] sm:$0xff]
    %v849 = vld [vmem:[%s831 + $0x88] sm:$0xff]
    %v850 = vld [vmem:[%s831 + $0x90] sm:$0xff]
    %v851 = vld [vmem:[%s831 + $0x98] sm:$0xff]
    %v852 = vld [vmem:[%s831 + $0xa0] sm:$0xff]
    %v853 = vld [vmem:[%s831 + $0xa8] sm:$0xff]
    %v854 = vld [vmem:[%s831 + $0xb0] sm:$0xff]
    %v855 = vld [vmem:[%s831 + $0xb8] sm:$0xff]
    %v856 = vld [vmem:[%s831 + $0xc0] sm:$0xff]
    %v857 = vld [vmem:[%s831 + $0xc8] sm:$0xff]
    %v858 = vld [vmem:[%s831 + $0xd0] sm:$0xff]
    %v859 = vld [vmem:[%s831 + $0xd8] sm:$0xff]
    %v860 = vld [vmem:[%s831 + $0xe0] sm:$0xff]
    %v861 = vld [vmem:[%s831 + $0xe8] sm:$0xff]
    %v862 = vld [vmem:[%s831 + $0xf0] sm:$0xff]
    %v863 = vld [vmem:[%s831 + $0xf8] sm:$0xff]
    %v896 = vunpack.c.l.b16 %v832
    %v897 = vunpack.c.h.b16 %v832
    %v898 = vunpack.c.l.b16 %v833
    %v899 = vunpack.c.h.b16 %v833
    %v900 = vunpack.c.l.b16 %v834
    %v901 = vunpack.c.h.b16 %v834
    %v902 = vunpack.c.l.b16 %v835
    %v903 = vunpack.c.h.b16 %v835
    %v904 = vunpack.c.l.b16 %v836
    %v905 = vunpack.c.h.b16 %v836
    %v906 = vunpack.c.l.b16 %v837
    %v907 = vunpack.c.h.b16 %v837
    %v908 = vunpack.c.l.b16 %v838
    %v909 = vunpack.c.h.b16 %v838
    %v910 = vunpack.c.l.b16 %v839
    %v911 = vunpack.c.h.b16 %v839
    %v912 = vunpack.c.l.b16 %v840
    %v913 = vunpack.c.h.b16 %v840
    %v914 = vunpack.c.l.b16 %v841
    %v915 = vunpack.c.h.b16 %v841
    %v916 = vunpack.c.l.b16 %v842
    %v917 = vunpack.c.h.b16 %v842
    %v918 = vunpack.c.l.b16 %v843
    %v919 = vunpack.c.h.b16 %v843
    %v920 = vunpack.c.l.b16 %v844
    %v921 = vunpack.c.h.b16 %v844
    %v922 = vunpack.c.l.b16 %v845
    %v923 = vunpack.c.h.b16 %v845
    %v924 = vunpack.c.l.b16 %v846
    %v925 = vunpack.c.h.b16 %v846
    %v926 = vunpack.c.l.b16 %v847
    %v927 = vunpack.c.h.b16 %v847
    %v928 = vunpack.c.l.b16 %v848
    %v929 = vunpack.c.h.b16 %v848
    %v930 = vunpack.c.l.b16 %v849
    %v931 = vunpack.c.h.b16 %v849
    %v932 = vunpack.c.l.b16 %v850
    %v933 = vunpack.c.h.b16 %v850
    %v934 = vunpack.c.l.b16 %v851
    %v935 = vunpack.c.h.b16 %v851
    %v936 = vunpack.c.l.b16 %v852
    %v937 = vunpack.c.h.b16 %v852
    %v938 = vunpack.c.l.b16 %v853
    %v939 = vunpack.c.h.b16 %v853
    %v940 = vunpack.c.l.b16 %v854
    %v941 = vunpack.c.h.b16 %v854
    %v942 = vunpack.c.l.b16 %v855
    %v943 = vunpack.c.h.b16 %v855
    %v944 = vunpack.c.l.b16 %v856
    %v945 = vunpack.c.h.b16 %v856
    %v946 = vunpack.c.l.b16 %v857
    %v947 = vunpack.c.h.b16 %v857
    %v948 = vunpack.c.l.b16 %v858
    %v949 = vunpack.c.h.b16 %v858
    %v950 = vunpack.c.l.b16 %v859
    %v951 = vunpack.c.h.b16 %v859
    %v952 = vunpack.c.l.b16 %v860
    %v953 = vunpack.c.h.b16 %v860
    %v954 = vunpack.c.l.b16 %v861
    %v955 = vunpack.c.h.b16 %v861
    %v956 = vunpack.c.l.b16 %v862
    %v957 = vunpack.c.h.b16 %v862
    %v958 = vunpack.c.l.b16 %v863
    %v959 = vunpack.c.h.b16 %v863
    %v960 = vpack.c.b16 %v898, %v896
    %v961 = vpack.c.b16 %v899, %v897
    %v962 = vpack.c.b16 %v902, %v900
    %v963 = vpack.c.b16 %v903, %v901
    %v964 = vpack.c.b16 %v906, %v904
    %v965 = vpack.c.b16 %v907, %v905
    %v966 = vpack.c.b16 %v910, %v908
    %v967 = vpack.c.b16 %v911, %v909
    %v968 = vpack.c.b16 %v914, %v912
    %v969 = vpack.c.b16 %v915, %v913
    %v970 = vpack.c.b16 %v918, %v916
    %v971 = vpack.c.b16 %v919, %v917
    %v972 = vpack.c.b16 %v922, %v920
    %v973 = vpack.c.b16 %v923, %v921
    %v974 = vpack.c.b16 %v926, %v924
    %v975 = vpack.c.b16 %v927, %v925
    %v976 = vpack.c.b16 %v930, %v928
    %v977 = vpack.c.b16 %v931, %v929
    %v978 = vpack.c.b16 %v934, %v932
    %v979 = vpack.c.b16 %v935, %v933
    %v980 = vpack.c.b16 %v938, %v936
    %v981 = vpack.c.b16 %v939, %v937
    %v982 = vpack.c.b16 %v942, %v940
    %v983 = vpack.c.b16 %v943, %v941
    %v984 = vpack.c.b16 %v946, %v944
    %v985 = vpack.c.b16 %v947, %v945
    %v986 = vpack.c.b16 %v950, %v948
    %v987 = vpack.c.b16 %v951, %v949
    %v988 = vpack.c.b16 %v954, %v952
    %v989 = vpack.c.b16 %v955, %v953
    %v990 = vpack.c.b16 %v958, %v956
    %v991 = vpack.c.b16 %v959, %v957
    %1024 = vmatpush.bf16.msra.mxu0 %v974
    %1025 = vmatpush.bf16.msra.mxu0 %v972
    %1026 = vmatpush.bf16.msra.mxu0 %v970
    %1027 = vmatpush.bf16.msra.mxu0 %v968
    %1028 = vmatpush.bf16.msra.mxu0 %v966
    %1029 = vmatpush.bf16.msra.mxu0 %v964
    %1030 = vmatpush.bf16.msra.mxu0 %v962
    %1031 = vmatpush.bf16.msra.mxu0 %v960
    %1032 = vmatmul.bf16.gmra.mxu0 %v827
    %v1033 = vpop.f32.mrf.mxu0
    %v1034 = vadd.f32 0.0, %v1033
    %v1035 = vpop.f32.mrf.mxu0
    %v1036 = vadd.f32 0.0, %v1035
    %1037 = vmatmul.bf16.gmra.mxu0 %v829
    %v1038 = vpop.f32.mrf.mxu0
    %v1039 = vadd.f32 0.0, %v1038
    %v1040 = vpop.f32.mrf.mxu0
    %v1041 = vadd.f32 0.0, %v1040
    %1042 = vdwg.mxu0
    %1043 = vmatpush.bf16.msra.mxu0 %v990
    %1044 = vmatpush.bf16.msra.mxu0 %v988
    %1045 = vmatpush.bf16.msra.mxu0 %v986
    %1046 = vmatpush.bf16.msra.mxu0 %v984
    %1047 = vmatpush.bf16.msra.mxu0 %v982
    %1048 = vmatpush.bf16.msra.mxu0 %v980
    %1049 = vmatpush.bf16.msra.mxu0 %v978
    %1050 = vmatpush.bf16.msra.mxu0 %v976
    %1051 = vmatmul.bf16.gmra.mxu0 %v828
    %v1052 = vpop.f32.mrf.mxu0
    %v1053 = vadd.f32 %v1034, %v1052
    %v1054 = vpop.f32.mrf.mxu0
    %v1055 = vadd.f32 %v1036, %v1054
    %1056 = vmatmul.bf16.gmra.mxu0 %v830
    %v1057 = vpop.f32.mrf.mxu0
    %v1058 = vadd.f32 %v1039, %v1057
    %v1059 = vpop.f32.mrf.mxu0
    %v1060 = vadd.f32 %v1041, %v1059
    %1061 = vdwg.mxu0
    %1062 = vmatpush.bf16.msra.mxu0 %v975
    %1063 = vmatpush.bf16.msra.mxu0 %v973
    %1064 = vmatpush.bf16.msra.mxu0 %v971
    %1065 = vmatpush.bf16.msra.mxu0 %v969
    %1066 = vmatpush.bf16.msra.mxu0 %v967
    %1067 = vmatpush.bf16.msra.mxu0 %v965
    %1068 = vmatpush.bf16.msra.mxu0 %v963
    %1069 = vmatpush.bf16.msra.mxu0 %v961
    %1070 = vmatmul.bf16.gmra.mxu0 %v827
    %v1071 = vpop.f32.mrf.mxu0
    %v1072 = vadd.f32 0.0, %v1071
    %v1073 = vpop.f32.mrf.mxu0
    %v1074 = vadd.f32 0.0, %v1073
    %1075 = vmatmul.bf16.gmra.mxu0 %v829
    %v1076 = vpop.f32.mrf.mxu0
    %v1077 = vadd.f32 0.0, %v1076
    %v1078 = vpop.f32.mrf.mxu0
    %v1079 = vadd.f32 0.0, %v1078
    %1080 = vdwg.mxu0
    %1081 = vmatpush.bf16.msra.mxu0 %v991
    %1082 = vmatpush.bf16.msra.mxu0 %v989
    %1083 = vmatpush.bf16.msra.mxu0 %v987
    %1084 = vmatpush.bf16.msra.mxu0 %v985
    %1085 = vmatpush.bf16.msra.mxu0 %v983
    %1086 = vmatpush.bf16.msra.mxu0 %v981
    %1087 = vmatpush.bf16.msra.mxu0 %v979
    %1088 = vmatpush.bf16.msra.mxu0 %v977
    %1089 = vmatmul.bf16.gmra.mxu0 %v828
    %v1090 = vpop.f32.mrf.mxu0
    %v1091 = vadd.f32 %v1072, %v1090
    %v1092 = vpop.f32.mrf.mxu0
    %v1093 = vadd.f32 %v1074, %v1092
    %1094 = vmatmul.bf16.gmra.mxu0 %v830
    %v1095 = vpop.f32.mrf.mxu0
    %v1096 = vadd.f32 %v1077, %v1095
    %v1097 = vpop.f32.mrf.mxu0
    %v1098 = vadd.f32 %v1079, %v1097
    %1099 = vdwg.mxu0
    %v1100 = vadd.f32 %v780, %v1053
    %v1101 = vadd.f32 %v818, %v1091
    %v1102 = vadd.f32 %v782, %v1055
    %v1103 = vadd.f32 %v820, %v1093
    %v1104 = vadd.f32 %v785, %v1058
    %v1105 = vadd.f32 %v823, %v1096
    %v1106 = vadd.f32 %v787, %v1060
    %v1107 = vadd.f32 %v825, %v1098
    %v1108 = vadd.f32 %v1100, %v1102
    %v1109 = vadd.f32 %v1108, %v1104
    %v1110 = vadd.f32 %v1109, %v1106
    %v1111 = vrot.slane %v1110, 4
    %v1112 = vadd.f32 %v1110, %v1111
    %v1113 = vrot.slane %v1112, 2
    %v1114 = vadd.f32 %v1112, %v1113
    %v1115 = vrot.slane %v1114, 1
    %v1116 = vadd.f32 %v1114, %v1115
    %v1117 = vadd.f32 %v1101, %v1103
    %v1118 = vadd.f32 %v1117, %v1105
    %v1119 = vadd.f32 %v1118, %v1107
    %v1120 = vrot.slane %v1119, 4
    %v1121 = vadd.f32 %v1119, %v1120
    %v1122 = vrot.slane %v1121, 2
    %v1123 = vadd.f32 %v1121, %v1122
    %v1124 = vrot.slane %v1123, 1
    %v1125 = vadd.f32 %v1123, %v1124
    %1126 = vmatpush.msra.mxu0 %v190
    %1127 = vmatpush.msra.mxu0 %v188
    %1128 = vmatpush.msra.mxu0 %v186
    %1129 = vmatpush.msra.mxu0 %v184
    %1130 = vmatpush.msra.mxu0 %v182
    %1131 = vmatpush.msra.mxu0 %v180
    %1132 = vmatpush.msra.mxu0 %v178
    %1133 = vmatpush.msra.mxu0 %v176
    %1134 = vmatpush.msra.mxu0 %v174
    %1135 = vmatpush.msra.mxu0 %v172
    %1136 = vmatpush.msra.mxu0 %v170
    %1137 = vmatpush.msra.mxu0 %v168
    %1138 = vmatpush.msra.mxu0 %v166
    %1139 = vmatpush.msra.mxu0 %v164
    %1140 = vmatpush.msra.mxu0 %v162
    %1141 = vmatpush.msra.mxu0 %v160
    %1142 = vmatmul.f32.gmra.mxu0 %v1116
    %v1143 = vpop.f32.mrf.mxu0
    %v1144 = vadd.f32 0.0, %v1143
    %1145 = vdwg.mxu0
    %1146 = vmatpush.msra.mxu0 %v222
    %1147 = vmatpush.msra.mxu0 %v220
    %1148 = vmatpush.msra.mxu0 %v218
    %1149 = vmatpush.msra.mxu0 %v216
    %1150 = vmatpush.msra.mxu0 %v214
    %1151 = vmatpush.msra.mxu0 %v212
    %1152 = vmatpush.msra.mxu0 %v210
    %1153 = vmatpush.msra.mxu0 %v208
    %1154 = vmatpush.msra.mxu0 %v206
    %1155 = vmatpush.msra.mxu0 %v204
    %1156 = vmatpush.msra.mxu0 %v202
    %1157 = vmatpush.msra.mxu0 %v200
    %1158 = vmatpush.msra.mxu0 %v198
    %1159 = vmatpush.msra.mxu0 %v196
    %1160 = vmatpush.msra.mxu0 %v194
    %1161 = vmatpush.msra.mxu0 %v192
    %1162 = vmatmul.f32.gmra.mxu0 %v1125
    %v1163 = vpop.f32.mrf.mxu0
    %v1164 = vadd.f32 %v1144, %v1163
    %1165 = vdwg.mxu0
    %1166 = vmatpush.msra.mxu0 %v191
    %1167 = vmatpush.msra.mxu0 %v189
    %1168 = vmatpush.msra.mxu0 %v187
    %1169 = vmatpush.msra.mxu0 %v185
    %1170 = vmatpush.msra.mxu0 %v183
    %1171 = vmatpush.msra.mxu0 %v181
    %1172 = vmatpush.msra.mxu0 %v179
    %1173 = vmatpush.msra.mxu0 %v177
    %1174 = vmatpush.msra.mxu0 %v175
    %1175 = vmatpush.msra.mxu0 %v173
    %1176 = vmatpush.msra.mxu0 %v171
    %1177 = vmatpush.msra.mxu0 %v169
    %1178 = vmatpush.msra.mxu0 %v167
    %1179 = vmatpush.msra.mxu0 %v165
    %1180 = vmatpush.msra.mxu0 %v163
    %1181 = vmatpush.msra.mxu0 %v161
    %1182 = vmatmul.f32.gmra.mxu0 %v1116
    %v1183 = vpop.f32.mrf.mxu0
    %v1184 = vadd.f32 0.0, %v1183
    %1185 = vdwg.mxu0
    %1186 = vmatpush.msra.mxu0 %v223
    %1187 = vmatpush.msra.mxu0 %v221
    %1188 = vmatpush.msra.mxu0 %v219
    %1189 = vmatpush.msra.mxu0 %v217
    %1190 = vmatpush.msra.mxu0 %v215
    %1191 = vmatpush.msra.mxu0 %v213
    %1192 = vmatpush.msra.mxu0 %v211
    %1193 = vmatpush.msra.mxu0 %v209
    %1194 = vmatpush.msra.mxu0 %v207
    %1195 = vmatpush.msra.mxu0 %v205
    %1196 = vmatpush.msra.mxu0 %v203
    %1197 = vmatpush.msra.mxu0 %v201
    %1198 = vmatpush.msra.mxu0 %v199
    %1199 = vmatpush.msra.mxu0 %v197
    %1200 = vmatpush.msra.mxu0 %v195
    %1201 = vmatpush.msra.mxu0 %v193
    %1202 = vmatmul.f32.gmra.mxu0 %v1125
    %v1203 = vpop.f32.mrf.mxu0
    %v1204 = vadd.f32 %v1184, %v1203
    %1205 = vdwg.mxu0
    %v1206 = vmul.f32 %v1164, 0.001953125
    %v1207 = vmul.f32 %v1204, 0.001953125
    %v1208 = vperm.slane %v1206, 0
    %v1209 = vperm.slane %v1207, 0
    %v1210 = vsub.f32 %v1100, %v1208
    %v1211 = vsub.f32 %v1101, %v1209
    %v1212 = vsub.f32 %v1102, %v1208
    %v1213 = vsub.f32 %v1103, %v1209
    %v1214 = vsub.f32 %v1104, %v1208
    %v1215 = vsub.f32 %v1105, %v1209
    %v1216 = vsub.f32 %v1106, %v1208
    %v1217 = vsub.f32 %v1107, %v1209
    %v1218 = vmul.f32 %v1210, %v1210
    %v1219 = vmul.f32 %v1211, %v1211
    %v1220 = vmul.f32 %v1212, %v1212
    %v1221 = vmul.f32 %v1213, %v1213
    %v1222 = vmul.f32 %v1214, %v1214
    %v1223 = vmul.f32 %v1215, %v1215
    %v1224 = vmul.f32 %v1216, %v1216
    %v1225 = vmul.f32 %v1217, %v1217
    %v1226 = vadd.f32 %v1218, %v1220
    %v1227 = vadd.f32 %v1226, %v1222
    %v1228 = vadd.f32 %v1227, %v1224
    %v1229 = vrot.slane %v1228, 4
    %v1230 = vadd.f32 %v1228, %v1229
    %v1231 = vrot.slane %v1230, 2
    %v1232 = vadd.f32 %v1230, %v1231
    %v1233 = vrot.slane %v1232, 1
    %v1234 = vadd.f32 %v1232, %v1233
    %v1235 = vadd.f32 %v1219, %v1221
    %v1236 = vadd.f32 %v1235, %v1223
    %v1237 = vadd.f32 %v1236, %v1225
    %v1238 = vrot.slane %v1237, 4
    %v1239 = vadd.f32 %v1237, %v1238
    %v1240 = vrot.slane %v1239, 2
    %v1241 = vadd.f32 %v1239, %v1240
    %v1242 = vrot.slane %v1241, 1
    %v1243 = vadd.f32 %v1241, %v1242
    %1244 = vmatpush.msra.mxu0 %v190
    %1245 = vmatpush.msra.mxu0 %v188
    %1246 = vmatpush.msra.mxu0 %v186
    %1247 = vmatpush.msra.mxu0 %v184
    %1248 = vmatpush.msra.mxu0 %v182
    %1249 = vmatpush.msra.mxu0 %v180
    %1250 = vmatpush.msra.mxu0 %v178
    %1251 = vmatpush.msra.mxu0 %v176
    %1252 = vmatpush.msra.mxu0 %v174
    %1253 = vmatpush.msra.mxu0 %v172
    %1254 = vmatpush.msra.mxu0 %v170
    %1255 = vmatpush.msra.mxu0 %v168
    %1256 = vmatpush.msra.mxu0 %v166
    %1257 = vmatpush.msra.mxu0 %v164
    %1258 = vmatpush.msra.mxu0 %v162
    %1259 = vmatpush.msra.mxu0 %v160
    %1260 = vmatmul.f32.gmra.mxu0 %v1234
    %v1261 = vpop.f32.mrf.mxu0
    %v1262 = vadd.f32 0.0, %v1261
    %1263 = vdwg.mxu0
    %1264 = vmatpush.msra.mxu0 %v222
    %1265 = vmatpush.msra.mxu0 %v220
    %1266 = vmatpush.msra.mxu0 %v218
    %1267 = vmatpush.msra.mxu0 %v216
    %1268 = vmatpush.msra.mxu0 %v214
    %1269 = vmatpush.msra.mxu0 %v212
    %1270 = vmatpush.msra.mxu0 %v210
    %1271 = vmatpush.msra.mxu0 %v208
    %1272 = vmatpush.msra.mxu0 %v206
    %1273 = vmatpush.msra.mxu0 %v204
    %1274 = vmatpush.msra.mxu0 %v202
    %1275 = vmatpush.msra.mxu0 %v200
    %1276 = vmatpush.msra.mxu0 %v198
    %1277 = vmatpush.msra.mxu0 %v196
    %1278 = vmatpush.msra.mxu0 %v194
    %1279 = vmatpush.msra.mxu0 %v192
    %1280 = vmatmul.f32.gmra.mxu0 %v1243
    %v1281 = vpop.f32.mrf.mxu0
    %v1282 = vadd.f32 %v1262, %v1281
    %1283 = vdwg.mxu0
    %1284 = vmatpush.msra.mxu0 %v191
    %1285 = vmatpush.msra.mxu0 %v189
    %1286 = vmatpush.msra.mxu0 %v187
    %1287 = vmatpush.msra.mxu0 %v185
    %1288 = vmatpush.msra.mxu0 %v183
    %1289 = vmatpush.msra.mxu0 %v181
    %1290 = vmatpush.msra.mxu0 %v179
    %1291 = vmatpush.msra.mxu0 %v177
    %1292 = vmatpush.msra.mxu0 %v175
    %1293 = vmatpush.msra.mxu0 %v173
    %1294 = vmatpush.msra.mxu0 %v171
    %1295 = vmatpush.msra.mxu0 %v169
    %1296 = vmatpush.msra.mxu0 %v167
    %1297 = vmatpush.msra.mxu0 %v165
    %1298 = vmatpush.msra.mxu0 %v163
    %1299 = vmatpush.msra.mxu0 %v161
    %1300 = vmatmul.f32.gmra.mxu0 %v1234
    %v1301 = vpop.f32.mrf.mxu0
    %v1302 = vadd.f32 0.0, %v1301
    %1303 = vdwg.mxu0
    %1304 = vmatpush.msra.mxu0 %v223
    %1305 = vmatpush.msra.mxu0 %v221
    %1306 = vmatpush.msra.mxu0 %v219
    %1307 = vmatpush.msra.mxu0 %v217
    %1308 = vmatpush.msra.mxu0 %v215
    %1309 = vmatpush.msra.mxu0 %v213
    %1310 = vmatpush.msra.mxu0 %v211
    %1311 = vmatpush.msra.mxu0 %v209
    %1312 = vmatpush.msra.mxu0 %v207
    %1313 = vmatpush.msra.mxu0 %v205
    %1314 = vmatpush.msra.mxu0 %v203
    %1315 = vmatpush.msra.mxu0 %v201
    %1316 = vmatpush.msra.mxu0 %v199
    %1317 = vmatpush.msra.mxu0 %v197
    %1318 = vmatpush.msra.mxu0 %v195
    %1319 = vmatpush.msra.mxu0 %v193
    %1320 = vmatmul.f32.gmra.mxu0 %v1243
    %v1321 = vpop.f32.mrf.mxu0
    %v1322 = vadd.f32 %v1302, %v1321
    %1323 = vdwg.mxu0
    %v1324 = vmul.f32 %v1282, 0.001953125
    %v1325 = vmul.f32 %v1322, 0.001953125
    %v1326 = vld [vmem:[#allocation7] sm:$0x3]
    %v1327 = vadd.f32 %v1324, 1e-05
    %v1328 = vadd.f32 %v1325, 1e-05
    %v1329 = vrsqrt.pop %v1327
    %v1330 = vmul.f32 %v1329, %v1327
    %v1331 = vmul.f32 %v1330, %v1329
    %v1332 = vmul.f32 0.5, %v1331
    %v1333 = vsub.f32 1.5, %v1332
    %v1334 = vmul.f32 %v1329, %v1333
    %vm1335 = vweird.f32 %v1327
    %vm1336 = vweird.f32 %v1329
    %vm1337 = vmor %vm1335, %vm1336
    %v1338 = vsel %vm1337, %v1329, %v1334
    %v1339 = vrsqrt.pop %v1328
    %v1340 = vmul.f32 %v1339, %v1328
    %v1341 = vmul.f32 %v1340, %v1339
    %v1342 = vmul.f32 0.5, %v1341
    %v1343 = vsub.f32 1.5, %v1342
    %v1344 = vmul.f32 %v1339, %v1343
    %vm1345 = vweird.f32 %v1328
    %vm1346 = vweird.f32 %v1339
    %vm1347 = vmor %vm1345, %vm1346
    %v1348 = vsel %vm1347, %v1339, %v1344
    %v1351 = vrot.slane %v1348, 7
    %vm1352 = vcmask 1040384
    %v1353 = vsel %vm1352, %v1338, %v1351
    %v1355 = vmul.f32 %v1326, %v1353
    %v1357 = vperm.slane %v1355, 0
    %v1358 = vperm.slane %v1355, 1
    %v1361 = vmul.f32 %v1210, %v1357
    %v1362 = vmul.f32 %v1211, %v1358
    %v1363 = vmul.f32 %v1212, %v1357
    %v1364 = vmul.f32 %v1213, %v1358
    %v1365 = vmul.f32 %v1214, %v1357
    %v1366 = vmul.f32 %v1215, %v1358
    %v1367 = vmul.f32 %v1216, %v1357
    %v1368 = vmul.f32 %v1217, %v1358
    %v1369 = vld [vmem:[#allocation8] sm:$0x3]
    %v1371 = vperm.slane %v1369, 0
    %v1372 = vperm.slane %v1369, 1
    %v1375 = vadd.f32 %v1361, %v1371
    %v1376 = vadd.f32 %v1362, %v1372
    %v1377 = vadd.f32 %v1363, %v1371
    %v1378 = vadd.f32 %v1364, %v1372
    %v1379 = vadd.f32 %v1365, %v1371
    %v1380 = vadd.f32 %v1366, %v1372
    %v1381 = vadd.f32 %v1367, %v1371
    %v1382 = vadd.f32 %v1368, %v1372
    %v1383 = vmax.f32 %v1375, 0.0
    %v1384 = vmax.f32 %v1376, 0.0
    %v1385 = vmax.f32 %v1377, 0.0
    %v1386 = vmax.f32 %v1378, 0.0
    %v1387 = vmax.f32 %v1379, 0.0
    %v1388 = vmax.f32 %v1380, 0.0
    %v1389 = vmax.f32 %v1381, 0.0
    %v1390 = vmax.f32 %v1382, 0.0
    %v1391 = vrot.slane %v1383, 7
    %v1392 = vrot.slane %v1384, 7
    %v1393 = vrot.slane %v1385, 7
    %v1394 = vrot.slane %v1386, 7
    %v1395 = vrot.slane %v1387, 7
    %v1396 = vrot.slane %v1388, 7
    %v1397 = vrot.slane %v1389, 7
    %v1398 = vrot.slane %v1390, 7
    %v1399 = vsel %vm240, %v1395, %v1397
    %v1400 = vsel %vm240, %v1396, %v1398
    %v1401 = vsel %vm240, %v1393, %v1395
    %v1402 = vsel %vm240, %v1394, %v1396
    %v1403 = vsel %vm240, %v1391, %v1393
    %v1404 = vsel %vm240, %v1392, %v1394
    %v1405 = vsel %vm240, %v1397, %v1391
    %v1406 = vsel %vm240, %v1398, %v1392
    %v1407 = vsel %vm152, %v1405, 0.0
    %v1408 = vsel %vm152, %v1406, 0.0
    %v1409 = vsel %vm153, %v1403, 0.0
    %v1410 = vsel %vm153, %v1404, 0.0
    %v1411 = vsel %vm154, %v1401, 0.0
    %v1412 = vsel %vm154, %v1402, 0.0
    %v1413 = vsel %vm155, %v1399, 0.0
    %v1414 = vsel %vm155, %v1400, 0.0
    %v1415 = vrot.slane %v1383, 1
    %v1416 = vrot.slane %v1384, 1
    %v1417 = vrot.slane %v1385, 1
    %v1418 = vrot.slane %v1386, 1
    %v1419 = vrot.slane %v1387, 1
    %v1420 = vrot.slane %v1388, 1
    %v1421 = vrot.slane %v1389, 1
    %v1422 = vrot.slane %v1390, 1
    %v1423 = vsel %vm265, %v1419, %v1421
    %v1424 = vsel %vm265, %v1420, %v1422
    %v1425 = vsel %vm265, %v1417, %v1419
    %v1426 = vsel %vm265, %v1418, %v1420
    %v1427 = vsel %vm265, %v1415, %v1417
    %v1428 = vsel %vm265, %v1416, %v1418
    %v1429 = vsel %vm265, %v1421, %v1415
    %v1430 = vsel %vm265, %v1422, %v1416
    %v1431 = vsel %vm156, %v1427, 0.0
    %v1432 = vsel %vm156, %v1428, 0.0
    %v1433 = vsel %vm157, %v1425, 0.0
    %v1434 = vsel %vm157, %v1426, 0.0
    %v1435 = vsel %vm158, %v1423, 0.0
    %v1436 = vsel %vm158, %v1424, 0.0
    %v1437 = vsel %vm159, %v1429, 0.0
    %v1438 = vsel %vm159, %v1430, 0.0
    %v1439 = vpack.c.bf16 %v1409, %v1407
    %v1440 = vpack.c.bf16 %v1410, %v1408
    %v1441 = vpack.c.bf16 %v1413, %v1411
    %v1442 = vpack.c.bf16 %v1414, %v1412
    %s1443 = scalar_lea.vmem [#allocation5], 768
    %v1444 = vld [vmem:[%s1443] sm:$0xff]
    %v1445 = vld [vmem:[%s1443 + $0x8] sm:$0xff]
    %v1446 = vld [vmem:[%s1443 + $0x10] sm:$0xff]
    %v1447 = vld [vmem:[%s1443 + $0x18] sm:$0xff]
    %v1448 = vld [vmem:[%s1443 + $0x20] sm:$0xff]
    %v1449 = vld [vmem:[%s1443 + $0x28] sm:$0xff]
    %v1450 = vld [vmem:[%s1443 + $0x30] sm:$0xff]
    %v1451 = vld [vmem:[%s1443 + $0x38] sm:$0xff]
    %v1452 = vld [vmem:[%s1443 + $0x40] sm:$0xff]
    %v1453 = vld [vmem:[%s1443 + $0x48] sm:$0xff]
    %v1454 = vld [vmem:[%s1443 + $0x50] sm:$0xff]
    %v1455 = vld [vmem:[%s1443 + $0x58] sm:$0xff]
    %v1456 = vld [vmem:[%s1443 + $0x60] sm:$0xff]
    %v1457 = vld [vmem:[%s1443 + $0x68] sm:$0xff]
    %v1458 = vld [vmem:[%s1443 + $0x70] sm:$0xff]
    %v1459 = vld [vmem:[%s1443 + $0x78] sm:$0xff]
    %v1460 = vld [vmem:[%s1443 + $0x80] sm:$0xff]
    %v1461 = vld [vmem:[%s1443 + $0x88] sm:$0xff]
    %v1462 = vld [vmem:[%s1443 + $0x90] sm:$0xff]
    %v1463 = vld [vmem:[%s1443 + $0x98] sm:$0xff]
    %v1464 = vld [vmem:[%s1443 + $0xa0] sm:$0xff]
    %v1465 = vld [vmem:[%s1443 + $0xa8] sm:$0xff]
    %v1466 = vld [vmem:[%s1443 + $0xb0] sm:$0xff]
    %v1467 = vld [vmem:[%s1443 + $0xb8] sm:$0xff]
    %v1468 = vld [vmem:[%s1443 + $0xc0] sm:$0xff]
    %v1469 = vld [vmem:[%s1443 + $0xc8] sm:$0xff]
    %v1470 = vld [vmem:[%s1443 + $0xd0] sm:$0xff]
    %v1471 = vld [vmem:[%s1443 + $0xd8] sm:$0xff]
    %v1472 = vld [vmem:[%s1443 + $0xe0] sm:$0xff]
    %v1473 = vld [vmem:[%s1443 + $0xe8] sm:$0xff]
    %v1474 = vld [vmem:[%s1443 + $0xf0] sm:$0xff]
    %v1475 = vld [vmem:[%s1443 + $0xf8] sm:$0xff]
    %v1476 = vpack.c.bf16 %v1385, %v1383
    %v1477 = vpack.c.bf16 %v1386, %v1384
    %v1478 = vpack.c.bf16 %v1389, %v1387
    %v1479 = vpack.c.bf16 %v1390, %v1388
    %s1480 = scalar_lea.vmem [#allocation5], 1024
    %v1481 = vld [vmem:[%s1480] sm:$0xff]
    %v1482 = vld [vmem:[%s1480 + $0x8] sm:$0xff]
    %v1483 = vld [vmem:[%s1480 + $0x10] sm:$0xff]
    %v1484 = vld [vmem:[%s1480 + $0x18] sm:$0xff]
    %v1485 = vld [vmem:[%s1480 + $0x20] sm:$0xff]
    %v1486 = vld [vmem:[%s1480 + $0x28] sm:$0xff]
    %v1487 = vld [vmem:[%s1480 + $0x30] sm:$0xff]
    %v1488 = vld [vmem:[%s1480 + $0x38] sm:$0xff]
    %v1489 = vld [vmem:[%s1480 + $0x40] sm:$0xff]
    %v1490 = vld [vmem:[%s1480 + $0x48] sm:$0xff]
    %v1491 = vld [vmem:[%s1480 + $0x50] sm:$0xff]
    %v1492 = vld [vmem:[%s1480 + $0x58] sm:$0xff]
    %v1493 = vld [vmem:[%s1480 + $0x60] sm:$0xff]
    %v1494 = vld [vmem:[%s1480 + $0x68] sm:$0xff]
    %v1495 = vld [vmem:[%s1480 + $0x70] sm:$0xff]
    %v1496 = vld [vmem:[%s1480 + $0x78] sm:$0xff]
    %v1497 = vld [vmem:[%s1480 + $0x80] sm:$0xff]
    %v1498 = vld [vmem:[%s1480 + $0x88] sm:$0xff]
    %v1499 = vld [vmem:[%s1480 + $0x90] sm:$0xff]
    %v1500 = vld [vmem:[%s1480 + $0x98] sm:$0xff]
    %v1501 = vld [vmem:[%s1480 + $0xa0] sm:$0xff]
    %v1502 = vld [vmem:[%s1480 + $0xa8] sm:$0xff]
    %v1503 = vld [vmem:[%s1480 + $0xb0] sm:$0xff]
    %v1504 = vld [vmem:[%s1480 + $0xb8] sm:$0xff]
    %v1505 = vld [vmem:[%s1480 + $0xc0] sm:$0xff]
    %v1506 = vld [vmem:[%s1480 + $0xc8] sm:$0xff]
    %v1507 = vld [vmem:[%s1480 + $0xd0] sm:$0xff]
    %v1508 = vld [vmem:[%s1480 + $0xd8] sm:$0xff]
    %v1509 = vld [vmem:[%s1480 + $0xe0] sm:$0xff]
    %v1510 = vld [vmem:[%s1480 + $0xe8] sm:$0xff]
    %v1511 = vld [vmem:[%s1480 + $0xf0] sm:$0xff]
    %v1512 = vld [vmem:[%s1480 + $0xf8] sm:$0xff]
    %v1545 = vunpack.c.l.b16 %v1481
    %v1546 = vunpack.c.h.b16 %v1481
    %v1547 = vunpack.c.l.b16 %v1482
    %v1548 = vunpack.c.h.b16 %v1482
    %v1549 = vunpack.c.l.b16 %v1483
    %v1550 = vunpack.c.h.b16 %v1483
    %v1551 = vunpack.c.l.b16 %v1484
    %v1552 = vunpack.c.h.b16 %v1484
    %v1553 = vunpack.c.l.b16 %v1485
    %v1554 = vunpack.c.h.b16 %v1485
    %v1555 = vunpack.c.l.b16 %v1486
    %v1556 = vunpack.c.h.b16 %v1486
    %v1557 = vunpack.c.l.b16 %v1487
    %v1558 = vunpack.c.h.b16 %v1487
    %v1559 = vunpack.c.l.b16 %v1488
    %v1560 = vunpack.c.h.b16 %v1488
    %v1561 = vunpack.c.l.b16 %v1489
    %v1562 = vunpack.c.h.b16 %v1489
    %v1563 = vunpack.c.l.b16 %v1490
    %v1564 = vunpack.c.h.b16 %v1490
    %v1565 = vunpack.c.l.b16 %v1491
    %v1566 = vunpack.c.h.b16 %v1491
    %v1567 = vunpack.c.l.b16 %v1492
    %v1568 = vunpack.c.h.b16 %v1492
    %v1569 = vunpack.c.l.b16 %v1493
    %v1570 = vunpack.c.h.b16 %v1493
    %v1571 = vunpack.c.l.b16 %v1494
    %v1572 = vunpack.c.h.b16 %v1494
    %v1573 = vunpack.c.l.b16 %v1495
    %v1574 = vunpack.c.h.b16 %v1495
    %v1575 = vunpack.c.l.b16 %v1496
    %v1576 = vunpack.c.h.b16 %v1496
    %v1577 = vunpack.c.l.b16 %v1497
    %v1578 = vunpack.c.h.b16 %v1497
    %v1579 = vunpack.c.l.b16 %v1498
    %v1580 = vunpack.c.h.b16 %v1498
    %v1581 = vunpack.c.l.b16 %v1499
    %v1582 = vunpack.c.h.b16 %v1499
    %v1583 = vunpack.c.l.b16 %v1500
    %v1584 = vunpack.c.h.b16 %v1500
    %v1585 = vunpack.c.l.b16 %v1501
    %v1586 = vunpack.c.h.b16 %v1501
    %v1587 = vunpack.c.l.b16 %v1502
    %v1588 = vunpack.c.h.b16 %v1502
    %v1589 = vunpack.c.l.b16 %v1503
    %v1590 = vunpack.c.h.b16 %v1503
    %v1591 = vunpack.c.l.b16 %v1504
    %v1592 = vunpack.c.h.b16 %v1504
    %v1593 = vunpack.c.l.b16 %v1505
    %v1594 = vunpack.c.h.b16 %v1505
    %v1595 = vunpack.c.l.b16 %v1506
    %v1596 = vunpack.c.h.b16 %v1506
    %v1597 = vunpack.c.l.b16 %v1507
    %v1598 = vunpack.c.h.b16 %v1507
    %v1599 = vunpack.c.l.b16 %v1508
    %v1600 = vunpack.c.h.b16 %v1508
    %v1601 = vunpack.c.l.b16 %v1509
    %v1602 = vunpack.c.h.b16 %v1509
    %v1603 = vunpack.c.l.b16 %v1510
    %v1604 = vunpack.c.h.b16 %v1510
    %v1605 = vunpack.c.l.b16 %v1511
    %v1606 = vunpack.c.h.b16 %v1511
    %v1607 = vunpack.c.l.b16 %v1512
    %v1608 = vunpack.c.h.b16 %v1512
    %v1609 = vpack.c.b16 %v1547, %v1545
    %v1610 = vpack.c.b16 %v1548, %v1546
    %v1611 = vpack.c.b16 %v1551, %v1549
    %v1612 = vpack.c.b16 %v1552, %v1550
    %v1613 = vpack.c.b16 %v1555, %v1553
    %v1614 = vpack.c.b16 %v1556, %v1554
    %v1615 = vpack.c.b16 %v1559, %v1557
    %v1616 = vpack.c.b16 %v1560, %v1558
    %v1617 = vpack.c.b16 %v1563, %v1561
    %v1618 = vpack.c.b16 %v1564, %v1562
    %v1619 = vpack.c.b16 %v1567, %v1565
    %v1620 = vpack.c.b16 %v1568, %v1566
    %v1621 = vpack.c.b16 %v1571, %v1569
    %v1622 = vpack.c.b16 %v1572, %v1570
    %v1623 = vpack.c.b16 %v1575, %v1573
    %v1624 = vpack.c.b16 %v1576, %v1574
    %v1625 = vpack.c.b16 %v1579, %v1577
    %v1626 = vpack.c.b16 %v1580, %v1578
    %v1627 = vpack.c.b16 %v1583, %v1581
    %v1628 = vpack.c.b16 %v1584, %v1582
    %v1629 = vpack.c.b16 %v1587, %v1585
    %v1630 = vpack.c.b16 %v1588, %v1586
    %v1631 = vpack.c.b16 %v1591, %v1589
    %v1632 = vpack.c.b16 %v1592, %v1590
    %v1633 = vpack.c.b16 %v1595, %v1593
    %v1634 = vpack.c.b16 %v1596, %v1594
    %v1635 = vpack.c.b16 %v1599, %v1597
    %v1636 = vpack.c.b16 %v1600, %v1598
    %v1637 = vpack.c.b16 %v1603, %v1601
    %v1638 = vpack.c.b16 %v1604, %v1602
    %v1639 = vpack.c.b16 %v1607, %v1605
    %v1640 = vpack.c.b16 %v1608, %v1606
    %1673 = vmatpush.bf16.msra.mxu0 %v1623
    %1674 = vmatpush.bf16.msra.mxu0 %v1621
    %1675 = vmatpush.bf16.msra.mxu0 %v1619
    %1676 = vmatpush.bf16.msra.mxu0 %v1617
    %1677 = vmatpush.bf16.msra.mxu0 %v1615
    %1678 = vmatpush.bf16.msra.mxu0 %v1613
    %1679 = vmatpush.bf16.msra.mxu0 %v1611
    %1680 = vmatpush.bf16.msra.mxu0 %v1609
    %1681 = vmatmul.bf16.gmra.mxu0 %v1476
    %v1682 = vpop.f32.mrf.mxu0
    %v1683 = vadd.f32 0.0, %v1682
    %v1684 = vpop.f32.mrf.mxu0
    %v1685 = vadd.f32 0.0, %v1684
    %1686 = vmatmul.bf16.gmra.mxu0 %v1478
    %v1687 = vpop.f32.mrf.mxu0
    %v1688 = vadd.f32 0.0, %v1687
    %v1689 = vpop.f32.mrf.mxu0
    %v1690 = vadd.f32 0.0, %v1689
    %1691 = vdwg.mxu0
    %1692 = vmatpush.bf16.msra.mxu0 %v1639
    %1693 = vmatpush.bf16.msra.mxu0 %v1637
    %1694 = vmatpush.bf16.msra.mxu0 %v1635
    %1695 = vmatpush.bf16.msra.mxu0 %v1633
    %1696 = vmatpush.bf16.msra.mxu0 %v1631
    %1697 = vmatpush.bf16.msra.mxu0 %v1629
    %1698 = vmatpush.bf16.msra.mxu0 %v1627
    %1699 = vmatpush.bf16.msra.mxu0 %v1625
    %1700 = vmatmul.bf16.gmra.mxu0 %v1477
    %v1701 = vpop.f32.mrf.mxu0
    %v1702 = vadd.f32 %v1683, %v1701
    %v1703 = vpop.f32.mrf.mxu0
    %v1704 = vadd.f32 %v1685, %v1703
    %1705 = vmatmul.bf16.gmra.mxu0 %v1479
    %v1706 = vpop.f32.mrf.mxu0
    %v1707 = vadd.f32 %v1688, %v1706
    %v1708 = vpop.f32.mrf.mxu0
    %v1709 = vadd.f32 %v1690, %v1708
    %1710 = vdwg.mxu0
    %1711 = vmatpush.bf16.msra.mxu0 %v1624
    %1712 = vmatpush.bf16.msra.mxu0 %v1622
    %1713 = vmatpush.bf16.msra.mxu0 %v1620
    %1714 = vmatpush.bf16.msra.mxu0 %v1618
    %1715 = vmatpush.bf16.msra.mxu0 %v1616
    %1716 = vmatpush.bf16.msra.mxu0 %v1614
    %1717 = vmatpush.bf16.msra.mxu0 %v1612
    %1718 = vmatpush.bf16.msra.mxu0 %v1610
    %1719 = vmatmul.bf16.gmra.mxu0 %v1476
    %v1720 = vpop.f32.mrf.mxu0
    %v1721 = vadd.f32 0.0, %v1720
    %v1722 = vpop.f32.mrf.mxu0
    %v1723 = vadd.f32 0.0, %v1722
    %1724 = vmatmul.bf16.gmra.mxu0 %v1478
    %v1725 = vpop.f32.mrf.mxu0
    %v1726 = vadd.f32 0.0, %v1725
    %v1727 = vpop.f32.mrf.mxu0
    %v1728 = vadd.f32 0.0, %v1727
    %1729 = vdwg.mxu0
    %1730 = vmatpush.bf16.msra.mxu0 %v1640
    %1731 = vmatpush.bf16.msra.mxu0 %v1638
    %1732 = vmatpush.bf16.msra.mxu0 %v1636
    %1733 = vmatpush.bf16.msra.mxu0 %v1634
    %1734 = vmatpush.bf16.msra.mxu0 %v1632
    %1735 = vmatpush.bf16.msra.mxu0 %v1630
    %1736 = vmatpush.bf16.msra.mxu0 %v1628
    %1737 = vmatpush.bf16.msra.mxu0 %v1626
    %1738 = vmatmul.bf16.gmra.mxu0 %v1477
    %v1739 = vpop.f32.mrf.mxu0
    %v1740 = vadd.f32 %v1721, %v1739
    %v1741 = vpop.f32.mrf.mxu0
    %v1742 = vadd.f32 %v1723, %v1741
    %1743 = vmatmul.bf16.gmra.mxu0 %v1479
    %v1744 = vpop.f32.mrf.mxu0
    %v1745 = vadd.f32 %v1726, %v1744
    %v1746 = vpop.f32.mrf.mxu0
    %v1747 = vadd.f32 %v1728, %v1746
    %1748 = vdwg.mxu0
    %v1781 = vunpack.c.l.b16 %v1444
    %v1782 = vunpack.c.h.b16 %v1444
    %v1783 = vunpack.c.l.b16 %v1445
    %v1784 = vunpack.c.h.b16 %v1445
    %v1785 = vunpack.c.l.b16 %v1446
    %v1786 = vunpack.c.h.b16 %v1446
    %v1787 = vunpack.c.l.b16 %v1447
    %v1788 = vunpack.c.h.b16 %v1447
    %v1789 = vunpack.c.l.b16 %v1448
    %v1790 = vunpack.c.h.b16 %v1448
    %v1791 = vunpack.c.l.b16 %v1449
    %v1792 = vunpack.c.h.b16 %v1449
    %v1793 = vunpack.c.l.b16 %v1450
    %v1794 = vunpack.c.h.b16 %v1450
    %v1795 = vunpack.c.l.b16 %v1451
    %v1796 = vunpack.c.h.b16 %v1451
    %v1797 = vunpack.c.l.b16 %v1452
    %v1798 = vunpack.c.h.b16 %v1452
    %v1799 = vunpack.c.l.b16 %v1453
    %v1800 = vunpack.c.h.b16 %v1453
    %v1801 = vunpack.c.l.b16 %v1454
    %v1802 = vunpack.c.h.b16 %v1454
    %v1803 = vunpack.c.l.b16 %v1455
    %v1804 = vunpack.c.h.b16 %v1455
    %v1805 = vunpack.c.l.b16 %v1456
    %v1806 = vunpack.c.h.b16 %v1456
    %v1807 = vunpack.c.l.b16 %v1457
    %v1808 = vunpack.c.h.b16 %v1457
    %v1809 = vunpack.c.l.b16 %v1458
    %v1810 = vunpack.c.h.b16 %v1458
    %v1811 = vunpack.c.l.b16 %v1459
    %v1812 = vunpack.c.h.b16 %v1459
    %v1813 = vunpack.c.l.b16 %v1460
    %v1814 = vunpack.c.h.b16 %v1460
    %v1815 = vunpack.c.l.b16 %v1461
    %v1816 = vunpack.c.h.b16 %v1461
    %v1817 = vunpack.c.l.b16 %v1462
    %v1818 = vunpack.c.h.b16 %v1462
    %v1819 = vunpack.c.l.b16 %v1463
    %v1820 = vunpack.c.h.b16 %v1463
    %v1821 = vunpack.c.l.b16 %v1464
    %v1822 = vunpack.c.h.b16 %v1464
    %v1823 = vunpack.c.l.b16 %v1465
    %v1824 = vunpack.c.h.b16 %v1465
    %v1825 = vunpack.c.l.b16 %v1466
    %v1826 = vunpack.c.h.b16 %v1466
    %v1827 = vunpack.c.l.b16 %v1467
    %v1828 = vunpack.c.h.b16 %v1467
    %v1829 = vunpack.c.l.b16 %v1468
    %v1830 = vunpack.c.h.b16 %v1468
    %v1831 = vunpack.c.l.b16 %v1469
    %v1832 = vunpack.c.h.b16 %v1469
    %v1833 = vunpack.c.l.b16 %v1470
    %v1834 = vunpack.c.h.b16 %v1470
    %v1835 = vunpack.c.l.b16 %v1471
    %v1836 = vunpack.c.h.b16 %v1471
    %v1837 = vunpack.c.l.b16 %v1472
    %v1838 = vunpack.c.h.b16 %v1472
    %v1839 = vunpack.c.l.b16 %v1473
    %v1840 = vunpack.c.h.b16 %v1473
    %v1841 = vunpack.c.l.b16 %v1474
    %v1842 = vunpack.c.h.b16 %v1474
    %v1843 = vunpack.c.l.b16 %v1475
    %v1844 = vunpack.c.h.b16 %v1475
    %v1845 = vpack.c.b16 %v1783, %v1781
    %v1846 = vpack.c.b16 %v1784, %v1782
    %v1847 = vpack.c.b16 %v1787, %v1785
    %v1848 = vpack.c.b16 %v1788, %v1786
    %v1849 = vpack.c.b16 %v1791, %v1789
    %v1850 = vpack.c.b16 %v1792, %v1790
    %v1851 = vpack.c.b16 %v1795, %v1793
    %v1852 = vpack.c.b16 %v1796, %v1794
    %v1853 = vpack.c.b16 %v1799, %v1797
    %v1854 = vpack.c.b16 %v1800, %v1798
    %v1855 = vpack.c.b16 %v1803, %v1801
    %v1856 = vpack.c.b16 %v1804, %v1802
    %v1857 = vpack.c.b16 %v1807, %v1805
    %v1858 = vpack.c.b16 %v1808, %v1806
    %v1859 = vpack.c.b16 %v1811, %v1809
    %v1860 = vpack.c.b16 %v1812, %v1810
    %v1861 = vpack.c.b16 %v1815, %v1813
    %v1862 = vpack.c.b16 %v1816, %v1814
    %v1863 = vpack.c.b16 %v1819, %v1817
    %v1864 = vpack.c.b16 %v1820, %v1818
    %v1865 = vpack.c.b16 %v1823, %v1821
    %v1866 = vpack.c.b16 %v1824, %v1822
    %v1867 = vpack.c.b16 %v1827, %v1825
    %v1868 = vpack.c.b16 %v1828, %v1826
    %v1869 = vpack.c.b16 %v1831, %v1829
    %v1870 = vpack.c.b16 %v1832, %v1830
    %v1871 = vpack.c.b16 %v1835, %v1833
    %v1872 = vpack.c.b16 %v1836, %v1834
    %v1873 = vpack.c.b16 %v1839, %v1837
    %v1874 = vpack.c.b16 %v1840, %v1838
    %v1875 = vpack.c.b16 %v1843, %v1841
    %v1876 = vpack.c.b16 %v1844, %v1842
    %1909 = vmatpush.bf16.msra.mxu0 %v1859
    %1910 = vmatpush.bf16.msra.mxu0 %v1857
    %1911 = vmatpush.bf16.msra.mxu0 %v1855
    %1912 = vmatpush.bf16.msra.mxu0 %v1853
    %1913 = vmatpush.bf16.msra.mxu0 %v1851
    %1914 = vmatpush.bf16.msra.mxu0 %v1849
    %1915 = vmatpush.bf16.msra.mxu0 %v1847
    %1916 = vmatpush.bf16.msra.mxu0 %v1845
    %1917 = vmatmul.bf16.gmra.mxu0 %v1439
    %v1918 = vpop.f32.mrf.mxu0
    %v1919 = vadd.f32 %v1702, %v1918
    %v1920 = vpop.f32.mrf.mxu0
    %v1921 = vadd.f32 %v1704, %v1920
    %1922 = vmatmul.bf16.gmra.mxu0 %v1441
    %v1923 = vpop.f32.mrf.mxu0
    %v1924 = vadd.f32 %v1707, %v1923
    %v1925 = vpop.f32.mrf.mxu0
    %v1926 = vadd.f32 %v1709, %v1925
    %1927 = vdwg.mxu0
    %1928 = vmatpush.bf16.msra.mxu0 %v1875
    %1929 = vmatpush.bf16.msra.mxu0 %v1873
    %1930 = vmatpush.bf16.msra.mxu0 %v1871
    %1931 = vmatpush.bf16.msra.mxu0 %v1869
    %1932 = vmatpush.bf16.msra.mxu0 %v1867
    %1933 = vmatpush.bf16.msra.mxu0 %v1865
    %1934 = vmatpush.bf16.msra.mxu0 %v1863
    %1935 = vmatpush.bf16.msra.mxu0 %v1861
    %1936 = vmatmul.bf16.gmra.mxu0 %v1440
    %v1937 = vpop.f32.mrf.mxu0
    %v1938 = vadd.f32 %v1919, %v1937
    %v1939 = vpop.f32.mrf.mxu0
    %v1940 = vadd.f32 %v1921, %v1939
    %1941 = vmatmul.bf16.gmra.mxu0 %v1442
    %v1942 = vpop.f32.mrf.mxu0
    %v1943 = vadd.f32 %v1924, %v1942
    %v1944 = vpop.f32.mrf.mxu0
    %v1945 = vadd.f32 %v1926, %v1944
    %1946 = vdwg.mxu0
    %1947 = vmatpush.bf16.msra.mxu0 %v1860
    %1948 = vmatpush.bf16.msra.mxu0 %v1858
    %1949 = vmatpush.bf16.msra.mxu0 %v1856
    %1950 = vmatpush.bf16.msra.mxu0 %v1854
    %1951 = vmatpush.bf16.msra.mxu0 %v1852
    %1952 = vmatpush.bf16.msra.mxu0 %v1850
    %1953 = vmatpush.bf16.msra.mxu0 %v1848
    %1954 = vmatpush.bf16.msra.mxu0 %v1846
    %1955 = vmatmul.bf16.gmra.mxu0 %v1439
    %v1956 = vpop.f32.mrf.mxu0
    %v1957 = vadd.f32 %v1740, %v1956
    %v1958 = vpop.f32.mrf.mxu0
    %v1959 = vadd.f32 %v1742, %v1958
    %1960 = vmatmul.bf16.gmra.mxu0 %v1441
    %v1961 = vpop.f32.mrf.mxu0
    %v1962 = vadd.f32 %v1745, %v1961
    %v1963 = vpop.f32.mrf.mxu0
    %v1964 = vadd.f32 %v1747, %v1963
    %1965 = vdwg.mxu0
    %1966 = vmatpush.bf16.msra.mxu0 %v1876
    %1967 = vmatpush.bf16.msra.mxu0 %v1874
    %1968 = vmatpush.bf16.msra.mxu0 %v1872
    %1969 = vmatpush.bf16.msra.mxu0 %v1870
    %1970 = vmatpush.bf16.msra.mxu0 %v1868
    %1971 = vmatpush.bf16.msra.mxu0 %v1866
    %1972 = vmatpush.bf16.msra.mxu0 %v1864
    %1973 = vmatpush.bf16.msra.mxu0 %v1862
    %1974 = vmatmul.bf16.gmra.mxu0 %v1440
    %v1975 = vpop.f32.mrf.mxu0
    %v1976 = vadd.f32 %v1957, %v1975
    %v1977 = vpop.f32.mrf.mxu0
    %v1978 = vadd.f32 %v1959, %v1977
    %1979 = vmatmul.bf16.gmra.mxu0 %v1442
    %v1980 = vpop.f32.mrf.mxu0
    %v1981 = vadd.f32 %v1962, %v1980
    %v1982 = vpop.f32.mrf.mxu0
    %v1983 = vadd.f32 %v1964, %v1982
    %1984 = vdwg.mxu0
    %v1985 = vpack.c.bf16 %v1433, %v1431
    %v1986 = vpack.c.bf16 %v1434, %v1432
    %v1987 = vpack.c.bf16 %v1437, %v1435
    %v1988 = vpack.c.bf16 %v1438, %v1436
    %s1989 = scalar_lea.vmem [#allocation5], 1280
    %v1990 = vld [vmem:[%s1989] sm:$0xff]
    %v1991 = vld [vmem:[%s1989 + $0x8] sm:$0xff]
    %v1992 = vld [vmem:[%s1989 + $0x10] sm:$0xff]
    %v1993 = vld [vmem:[%s1989 + $0x18] sm:$0xff]
    %v1994 = vld [vmem:[%s1989 + $0x20] sm:$0xff]
    %v1995 = vld [vmem:[%s1989 + $0x28] sm:$0xff]
    %v1996 = vld [vmem:[%s1989 + $0x30] sm:$0xff]
    %v1997 = vld [vmem:[%s1989 + $0x38] sm:$0xff]
    %v1998 = vld [vmem:[%s1989 + $0x40] sm:$0xff]
    %v1999 = vld [vmem:[%s1989 + $0x48] sm:$0xff]
    %v2000 = vld [vmem:[%s1989 + $0x50] sm:$0xff]
    %v2001 = vld [vmem:[%s1989 + $0x58] sm:$0xff]
    %v2002 = vld [vmem:[%s1989 + $0x60] sm:$0xff]
    %v2003 = vld [vmem:[%s1989 + $0x68] sm:$0xff]
    %v2004 = vld [vmem:[%s1989 + $0x70] sm:$0xff]
    %v2005 = vld [vmem:[%s1989 + $0x78] sm:$0xff]
    %v2006 = vld [vmem:[%s1989 + $0x80] sm:$0xff]
    %v2007 = vld [vmem:[%s1989 + $0x88] sm:$0xff]
    %v2008 = vld [vmem:[%s1989 + $0x90] sm:$0xff]
    %v2009 = vld [vmem:[%s1989 + $0x98] sm:$0xff]
    %v2010 = vld [vmem:[%s1989 + $0xa0] sm:$0xff]
    %v2011 = vld [vmem:[%s1989 + $0xa8] sm:$0xff]
    %v2012 = vld [vmem:[%s1989 + $0xb0] sm:$0xff]
    %v2013 = vld [vmem:[%s1989 + $0xb8] sm:$0xff]
    %v2014 = vld [vmem:[%s1989 + $0xc0] sm:$0xff]
    %v2015 = vld [vmem:[%s1989 + $0xc8] sm:$0xff]
    %v2016 = vld [vmem:[%s1989 + $0xd0] sm:$0xff]
    %v2017 = vld [vmem:[%s1989 + $0xd8] sm:$0xff]
    %v2018 = vld [vmem:[%s1989 + $0xe0] sm:$0xff]
    %v2019 = vld [vmem:[%s1989 + $0xe8] sm:$0xff]
    %v2020 = vld [vmem:[%s1989 + $0xf0] sm:$0xff]
    %v2021 = vld [vmem:[%s1989 + $0xf8] sm:$0xff]
    %v2054 = vunpack.c.l.b16 %v1990
    %v2055 = vunpack.c.h.b16 %v1990
    %v2056 = vunpack.c.l.b16 %v1991
    %v2057 = vunpack.c.h.b16 %v1991
    %v2058 = vunpack.c.l.b16 %v1992
    %v2059 = vunpack.c.h.b16 %v1992
    %v2060 = vunpack.c.l.b16 %v1993
    %v2061 = vunpack.c.h.b16 %v1993
    %v2062 = vunpack.c.l.b16 %v1994
    %v2063 = vunpack.c.h.b16 %v1994
    %v2064 = vunpack.c.l.b16 %v1995
    %v2065 = vunpack.c.h.b16 %v1995
    %v2066 = vunpack.c.l.b16 %v1996
    %v2067 = vunpack.c.h.b16 %v1996
    %v2068 = vunpack.c.l.b16 %v1997
    %v2069 = vunpack.c.h.b16 %v1997
    %v2070 = vunpack.c.l.b16 %v1998
    %v2071 = vunpack.c.h.b16 %v1998
    %v2072 = vunpack.c.l.b16 %v1999
    %v2073 = vunpack.c.h.b16 %v1999
    %v2074 = vunpack.c.l.b16 %v2000
    %v2075 = vunpack.c.h.b16 %v2000
    %v2076 = vunpack.c.l.b16 %v2001
    %v2077 = vunpack.c.h.b16 %v2001
    %v2078 = vunpack.c.l.b16 %v2002
    %v2079 = vunpack.c.h.b16 %v2002
    %v2080 = vunpack.c.l.b16 %v2003
    %v2081 = vunpack.c.h.b16 %v2003
    %v2082 = vunpack.c.l.b16 %v2004
    %v2083 = vunpack.c.h.b16 %v2004
    %v2084 = vunpack.c.l.b16 %v2005
    %v2085 = vunpack.c.h.b16 %v2005
    %v2086 = vunpack.c.l.b16 %v2006
    %v2087 = vunpack.c.h.b16 %v2006
    %v2088 = vunpack.c.l.b16 %v2007
    %v2089 = vunpack.c.h.b16 %v2007
    %v2090 = vunpack.c.l.b16 %v2008
    %v2091 = vunpack.c.h.b16 %v2008
    %v2092 = vunpack.c.l.b16 %v2009
    %v2093 = vunpack.c.h.b16 %v2009
    %v2094 = vunpack.c.l.b16 %v2010
    %v2095 = vunpack.c.h.b16 %v2010
    %v2096 = vunpack.c.l.b16 %v2011
    %v2097 = vunpack.c.h.b16 %v2011
    %v2098 = vunpack.c.l.b16 %v2012
    %v2099 = vunpack.c.h.b16 %v2012
    %v2100 = vunpack.c.l.b16 %v2013
    %v2101 = vunpack.c.h.b16 %v2013
    %v2102 = vunpack.c.l.b16 %v2014
    %v2103 = vunpack.c.h.b16 %v2014
    %v2104 = vunpack.c.l.b16 %v2015
    %v2105 = vunpack.c.h.b16 %v2015
    %v2106 = vunpack.c.l.b16 %v2016
    %v2107 = vunpack.c.h.b16 %v2016
    %v2108 = vunpack.c.l.b16 %v2017
    %v2109 = vunpack.c.h.b16 %v2017
    %v2110 = vunpack.c.l.b16 %v2018
    %v2111 = vunpack.c.h.b16 %v2018
    %v2112 = vunpack.c.l.b16 %v2019
    %v2113 = vunpack.c.h.b16 %v2019
    %v2114 = vunpack.c.l.b16 %v2020
    %v2115 = vunpack.c.h.b16 %v2020
    %v2116 = vunpack.c.l.b16 %v2021
    %v2117 = vunpack.c.h.b16 %v2021
    %v2118 = vpack.c.b16 %v2056, %v2054
    %v2119 = vpack.c.b16 %v2057, %v2055
    %v2120 = vpack.c.b16 %v2060, %v2058
    %v2121 = vpack.c.b16 %v2061, %v2059
    %v2122 = vpack.c.b16 %v2064, %v2062
    %v2123 = vpack.c.b16 %v2065, %v2063
    %v2124 = vpack.c.b16 %v2068, %v2066
    %v2125 = vpack.c.b16 %v2069, %v2067
    %v2126 = vpack.c.b16 %v2072, %v2070
    %v2127 = vpack.c.b16 %v2073, %v2071
    %v2128 = vpack.c.b16 %v2076, %v2074
    %v2129 = vpack.c.b16 %v2077, %v2075
    %v2130 = vpack.c.b16 %v2080, %v2078
    %v2131 = vpack.c.b16 %v2081, %v2079
    %v2132 = vpack.c.b16 %v2084, %v2082
    %v2133 = vpack.c.b16 %v2085, %v2083
    %v2134 = vpack.c.b16 %v2088, %v2086
    %v2135 = vpack.c.b16 %v2089, %v2087
    %v2136 = vpack.c.b16 %v2092, %v2090
    %v2137 = vpack.c.b16 %v2093, %v2091
    %v2138 = vpack.c.b16 %v2096, %v2094
    %v2139 = vpack.c.b16 %v2097, %v2095
    %v2140 = vpack.c.b16 %v2100, %v2098
    %v2141 = vpack.c.b16 %v2101, %v2099
    %v2142 = vpack.c.b16 %v2104, %v2102
    %v2143 = vpack.c.b16 %v2105, %v2103
    %v2144 = vpack.c.b16 %v2108, %v2106
    %v2145 = vpack.c.b16 %v2109, %v2107
    %v2146 = vpack.c.b16 %v2112, %v2110
    %v2147 = vpack.c.b16 %v2113, %v2111
    %v2148 = vpack.c.b16 %v2116, %v2114
    %v2149 = vpack.c.b16 %v2117, %v2115
    %2182 = vmatpush.bf16.msra.mxu0 %v2132
    %2183 = vmatpush.bf16.msra.mxu0 %v2130
    %2184 = vmatpush.bf16.msra.mxu0 %v2128
    %2185 = vmatpush.bf16.msra.mxu0 %v2126
    %2186 = vmatpush.bf16.msra.mxu0 %v2124
    %2187 = vmatpush.bf16.msra.mxu0 %v2122
    %2188 = vmatpush.bf16.msra.mxu0 %v2120
    %2189 = vmatpush.bf16.msra.mxu0 %v2118
    %2190 = vmatmul.bf16.gmra.mxu0 %v1985
    %v2191 = vpop.f32.mrf.mxu0
    %v2192 = vadd.f32 0.0, %v2191
    %v2193 = vpop.f32.mrf.mxu0
    %v2194 = vadd.f32 0.0, %v2193
    %2195 = vmatmul.bf16.gmra.mxu0 %v1987
    %v2196 = vpop.f32.mrf.mxu0
    %v2197 = vadd.f32 0.0, %v2196
    %v2198 = vpop.f32.mrf.mxu0
    %v2199 = vadd.f32 0.0, %v2198
    %2200 = vdwg.mxu0
    %2201 = vmatpush.bf16.msra.mxu0 %v2148
    %2202 = vmatpush.bf16.msra.mxu0 %v2146
    %2203 = vmatpush.bf16.msra.mxu0 %v2144
    %2204 = vmatpush.bf16.msra.mxu0 %v2142
    %2205 = vmatpush.bf16.msra.mxu0 %v2140
    %2206 = vmatpush.bf16.msra.mxu0 %v2138
    %2207 = vmatpush.bf16.msra.mxu0 %v2136
    %2208 = vmatpush.bf16.msra.mxu0 %v2134
    %2209 = vmatmul.bf16.gmra.mxu0 %v1986
    %v2210 = vpop.f32.mrf.mxu0
    %v2211 = vadd.f32 %v2192, %v2210
    %v2212 = vpop.f32.mrf.mxu0
    %v2213 = vadd.f32 %v2194, %v2212
    %2214 = vmatmul.bf16.gmra.mxu0 %v1988
    %v2215 = vpop.f32.mrf.mxu0
    %v2216 = vadd.f32 %v2197, %v2215
    %v2217 = vpop.f32.mrf.mxu0
    %v2218 = vadd.f32 %v2199, %v2217
    %2219 = vdwg.mxu0
    %2220 = vmatpush.bf16.msra.mxu0 %v2133
    %2221 = vmatpush.bf16.msra.mxu0 %v2131
    %2222 = vmatpush.bf16.msra.mxu0 %v2129
    %2223 = vmatpush.bf16.msra.mxu0 %v2127
    %2224 = vmatpush.bf16.msra.mxu0 %v2125
    %2225 = vmatpush.bf16.msra.mxu0 %v2123
    %2226 = vmatpush.bf16.msra.mxu0 %v2121
    %2227 = vmatpush.bf16.msra.mxu0 %v2119
    %2228 = vmatmul.bf16.gmra.mxu0 %v1985
    %v2229 = vpop.f32.mrf.mxu0
    %v2230 = vadd.f32 0.0, %v2229
    %v2231 = vpop.f32.mrf.mxu0
    %v2232 = vadd.f32 0.0, %v2231
    %2233 = vmatmul.bf16.gmra.mxu0 %v1987
    %v2234 = vpop.f32.mrf.mxu0
    %v2235 = vadd.f32 0.0, %v2234
    %v2236 = vpop.f32.mrf.mxu0
    %v2237 = vadd.f32 0.0, %v2236
    %2238 = vdwg.mxu0
    %2239 = vmatpush.bf16.msra.mxu0 %v2149
    %2240 = vmatpush.bf16.msra.mxu0 %v2147
    %2241 = vmatpush.bf16.msra.mxu0 %v2145
    %2242 = vmatpush.bf16.msra.mxu0 %v2143
    %2243 = vmatpush.bf16.msra.mxu0 %v2141
    %2244 = vmatpush.bf16.msra.mxu0 %v2139
    %2245 = vmatpush.bf16.msra.mxu0 %v2137
    %2246 = vmatpush.bf16.msra.mxu0 %v2135
    %2247 = vmatmul.bf16.gmra.mxu0 %v1986
    %v2248 = vpop.f32.mrf.mxu0
    %v2249 = vadd.f32 %v2230, %v2248
    %v2250 = vpop.f32.mrf.mxu0
    %v2251 = vadd.f32 %v2232, %v2250
    %2252 = vmatmul.bf16.gmra.mxu0 %v1988
    %v2253 = vpop.f32.mrf.mxu0
    %v2254 = vadd.f32 %v2235, %v2253
    %v2255 = vpop.f32.mrf.mxu0
    %v2256 = vadd.f32 %v2237, %v2255
    %2257 = vdwg.mxu0
    %v2258 = vadd.f32 %v1938, %v2211
    %v2259 = vadd.f32 %v1976, %v2249
    %v2260 = vadd.f32 %v1940, %v2213
    %v2261 = vadd.f32 %v1978, %v2251
    %v2262 = vadd.f32 %v1943, %v2216
    %v2263 = vadd.f32 %v1981, %v2254
    %v2264 = vadd.f32 %v1945, %v2218
    %v2265 = vadd.f32 %v1983, %v2256
    %v2266 = vadd.f32 %v2258, %v2260
    %v2267 = vadd.f32 %v2266, %v2262
    %v2268 = vadd.f32 %v2267, %v2264
    %v2269 = vrot.slane %v2268, 4
    %v2270 = vadd.f32 %v2268, %v2269
    %v2271 = vrot.slane %v2270, 2
    %v2272 = vadd.f32 %v2270, %v2271
    %v2273 = vrot.slane %v2272, 1
    %v2274 = vadd.f32 %v2272, %v2273
    %v2275 = vadd.f32 %v2259, %v2261
    %v2276 = vadd.f32 %v2275, %v2263
    %v2277 = vadd.f32 %v2276, %v2265
    %v2278 = vrot.slane %v2277, 4
    %v2279 = vadd.f32 %v2277, %v2278
    %v2280 = vrot.slane %v2279, 2
    %v2281 = vadd.f32 %v2279, %v2280
    %v2282 = vrot.slane %v2281, 1
    %v2283 = vadd.f32 %v2281, %v2282
    %2284 = vmatpush.msra.mxu0 %v190
    %2285 = vmatpush.msra.mxu0 %v188
    %2286 = vmatpush.msra.mxu0 %v186
    %2287 = vmatpush.msra.mxu0 %v184
    %2288 = vmatpush.msra.mxu0 %v182
    %2289 = vmatpush.msra.mxu0 %v180
    %2290 = vmatpush.msra.mxu0 %v178
    %2291 = vmatpush.msra.mxu0 %v176
    %2292 = vmatpush.msra.mxu0 %v174
    %2293 = vmatpush.msra.mxu0 %v172
    %2294 = vmatpush.msra.mxu0 %v170
    %2295 = vmatpush.msra.mxu0 %v168
    %2296 = vmatpush.msra.mxu0 %v166
    %2297 = vmatpush.msra.mxu0 %v164
    %2298 = vmatpush.msra.mxu0 %v162
    %2299 = vmatpush.msra.mxu0 %v160
    %2300 = vmatmul.f32.gmra.mxu0 %v2274
    %v2301 = vpop.f32.mrf.mxu0
    %v2302 = vadd.f32 0.0, %v2301
    %2303 = vdwg.mxu0
    %2304 = vmatpush.msra.mxu0 %v222
    %2305 = vmatpush.msra.mxu0 %v220
    %2306 = vmatpush.msra.mxu0 %v218
    %2307 = vmatpush.msra.mxu0 %v216
    %2308 = vmatpush.msra.mxu0 %v214
    %2309 = vmatpush.msra.mxu0 %v212
    %2310 = vmatpush.msra.mxu0 %v210
    %2311 = vmatpush.msra.mxu0 %v208
    %2312 = vmatpush.msra.mxu0 %v206
    %2313 = vmatpush.msra.mxu0 %v204
    %2314 = vmatpush.msra.mxu0 %v202
    %2315 = vmatpush.msra.mxu0 %v200
    %2316 = vmatpush.msra.mxu0 %v198
    %2317 = vmatpush.msra.mxu0 %v196
    %2318 = vmatpush.msra.mxu0 %v194
    %2319 = vmatpush.msra.mxu0 %v192
    %2320 = vmatmul.f32.gmra.mxu0 %v2283
    %v2321 = vpop.f32.mrf.mxu0
    %v2322 = vadd.f32 %v2302, %v2321
    %2323 = vdwg.mxu0
    %2324 = vmatpush.msra.mxu0 %v191
    %2325 = vmatpush.msra.mxu0 %v189
    %2326 = vmatpush.msra.mxu0 %v187
    %2327 = vmatpush.msra.mxu0 %v185
    %2328 = vmatpush.msra.mxu0 %v183
    %2329 = vmatpush.msra.mxu0 %v181
    %2330 = vmatpush.msra.mxu0 %v179
    %2331 = vmatpush.msra.mxu0 %v177
    %2332 = vmatpush.msra.mxu0 %v175
    %2333 = vmatpush.msra.mxu0 %v173
    %2334 = vmatpush.msra.mxu0 %v171
    %2335 = vmatpush.msra.mxu0 %v169
    %2336 = vmatpush.msra.mxu0 %v167
    %2337 = vmatpush.msra.mxu0 %v165
    %2338 = vmatpush.msra.mxu0 %v163
    %2339 = vmatpush.msra.mxu0 %v161
    %2340 = vmatmul.f32.gmra.mxu0 %v2274
    %v2341 = vpop.f32.mrf.mxu0
    %v2342 = vadd.f32 0.0, %v2341
    %2343 = vdwg.mxu0
    %2344 = vmatpush.msra.mxu0 %v223
    %2345 = vmatpush.msra.mxu0 %v221
    %2346 = vmatpush.msra.mxu0 %v219
    %2347 = vmatpush.msra.mxu0 %v217
    %2348 = vmatpush.msra.mxu0 %v215
    %2349 = vmatpush.msra.mxu0 %v213
    %2350 = vmatpush.msra.mxu0 %v211
    %2351 = vmatpush.msra.mxu0 %v209
    %2352 = vmatpush.msra.mxu0 %v207
    %2353 = vmatpush.msra.mxu0 %v205
    %2354 = vmatpush.msra.mxu0 %v203
    %2355 = vmatpush.msra.mxu0 %v201
    %2356 = vmatpush.msra.mxu0 %v199
    %2357 = vmatpush.msra.mxu0 %v197
    %2358 = vmatpush.msra.mxu0 %v195
    %2359 = vmatpush.msra.mxu0 %v193
    %2360 = vmatmul.f32.gmra.mxu0 %v2283
    %v2361 = vpop.f32.mrf.mxu0
    %v2362 = vadd.f32 %v2342, %v2361
    %2363 = vdwg.mxu0
    %v2364 = vmul.f32 %v2322, 0.001953125
    %v2365 = vmul.f32 %v2362, 0.001953125
    %v2366 = vperm.slane %v2364, 0
    %v2367 = vperm.slane %v2365, 0
    %v2368 = vsub.f32 %v2258, %v2366
    %v2369 = vsub.f32 %v2259, %v2367
    %v2370 = vsub.f32 %v2260, %v2366
    %v2371 = vsub.f32 %v2261, %v2367
    %v2372 = vsub.f32 %v2262, %v2366
    %v2373 = vsub.f32 %v2263, %v2367
    %v2374 = vsub.f32 %v2264, %v2366
    %v2375 = vsub.f32 %v2265, %v2367
    %v2376 = vmul.f32 %v2368, %v2368
    %v2377 = vmul.f32 %v2369, %v2369
    %v2378 = vmul.f32 %v2370, %v2370
    %v2379 = vmul.f32 %v2371, %v2371
    %v2380 = vmul.f32 %v2372, %v2372
    %v2381 = vmul.f32 %v2373, %v2373
    %v2382 = vmul.f32 %v2374, %v2374
    %v2383 = vmul.f32 %v2375, %v2375
    %v2384 = vadd.f32 %v2376, %v2378
    %v2385 = vadd.f32 %v2384, %v2380
    %v2386 = vadd.f32 %v2385, %v2382
    %v2387 = vrot.slane %v2386, 4
    %v2388 = vadd.f32 %v2386, %v2387
    %v2389 = vrot.slane %v2388, 2
    %v2390 = vadd.f32 %v2388, %v2389
    %v2391 = vrot.slane %v2390, 1
    %v2392 = vadd.f32 %v2390, %v2391
    %v2393 = vadd.f32 %v2377, %v2379
    %v2394 = vadd.f32 %v2393, %v2381
    %v2395 = vadd.f32 %v2394, %v2383
    %v2396 = vrot.slane %v2395, 4
    %v2397 = vadd.f32 %v2395, %v2396
    %v2398 = vrot.slane %v2397, 2
    %v2399 = vadd.f32 %v2397, %v2398
    %v2400 = vrot.slane %v2399, 1
    %v2401 = vadd.f32 %v2399, %v2400
    %2402 = vmatpush.msra.mxu0 %v190
    %2403 = vmatpush.msra.mxu0 %v188
    %2404 = vmatpush.msra.mxu0 %v186
    %2405 = vmatpush.msra.mxu0 %v184
    %2406 = vmatpush.msra.mxu0 %v182
    %2407 = vmatpush.msra.mxu0 %v180
    %2408 = vmatpush.msra.mxu0 %v178
    %2409 = vmatpush.msra.mxu0 %v176
    %2410 = vmatpush.msra.mxu0 %v174
    %2411 = vmatpush.msra.mxu0 %v172
    %2412 = vmatpush.msra.mxu0 %v170
    %2413 = vmatpush.msra.mxu0 %v168
    %2414 = vmatpush.msra.mxu0 %v166
    %2415 = vmatpush.msra.mxu0 %v164
    %2416 = vmatpush.msra.mxu0 %v162
    %2417 = vmatpush.msra.mxu0 %v160
    %2418 = vmatmul.f32.gmra.mxu0 %v2392
    %v2419 = vpop.f32.mrf.mxu0
    %v2420 = vadd.f32 0.0, %v2419
    %2421 = vdwg.mxu0
    %2422 = vmatpush.msra.mxu0 %v222
    %2423 = vmatpush.msra.mxu0 %v220
    %2424 = vmatpush.msra.mxu0 %v218
    %2425 = vmatpush.msra.mxu0 %v216
    %2426 = vmatpush.msra.mxu0 %v214
    %2427 = vmatpush.msra.mxu0 %v212
    %2428 = vmatpush.msra.mxu0 %v210
    %2429 = vmatpush.msra.mxu0 %v208
    %2430 = vmatpush.msra.mxu0 %v206
    %2431 = vmatpush.msra.mxu0 %v204
    %2432 = vmatpush.msra.mxu0 %v202
    %2433 = vmatpush.msra.mxu0 %v200
    %2434 = vmatpush.msra.mxu0 %v198
    %2435 = vmatpush.msra.mxu0 %v196
    %2436 = vmatpush.msra.mxu0 %v194
    %2437 = vmatpush.msra.mxu0 %v192
    %2438 = vmatmul.f32.gmra.mxu0 %v2401
    %v2439 = vpop.f32.mrf.mxu0
    %v2440 = vadd.f32 %v2420, %v2439
    %2441 = vdwg.mxu0
    %2442 = vmatpush.msra.mxu0 %v191
    %2443 = vmatpush.msra.mxu0 %v189
    %2444 = vmatpush.msra.mxu0 %v187
    %2445 = vmatpush.msra.mxu0 %v185
    %2446 = vmatpush.msra.mxu0 %v183
    %2447 = vmatpush.msra.mxu0 %v181
    %2448 = vmatpush.msra.mxu0 %v179
    %2449 = vmatpush.msra.mxu0 %v177
    %2450 = vmatpush.msra.mxu0 %v175
    %2451 = vmatpush.msra.mxu0 %v173
    %2452 = vmatpush.msra.mxu0 %v171
    %2453 = vmatpush.msra.mxu0 %v169
    %2454 = vmatpush.msra.mxu0 %v167
    %2455 = vmatpush.msra.mxu0 %v165
    %2456 = vmatpush.msra.mxu0 %v163
    %2457 = vmatpush.msra.mxu0 %v161
    %2458 = vmatmul.f32.gmra.mxu0 %v2392
    %v2459 = vpop.f32.mrf.mxu0
    %v2460 = vadd.f32 0.0, %v2459
    %2461 = vdwg.mxu0
    %2462 = vmatpush.msra.mxu0 %v223
    %2463 = vmatpush.msra.mxu0 %v221
    %2464 = vmatpush.msra.mxu0 %v219
    %2465 = vmatpush.msra.mxu0 %v217
    %2466 = vmatpush.msra.mxu0 %v215
    %2467 = vmatpush.msra.mxu0 %v213
    %2468 = vmatpush.msra.mxu0 %v211
    %2469 = vmatpush.msra.mxu0 %v209
    %2470 = vmatpush.msra.mxu0 %v207
    %2471 = vmatpush.msra.mxu0 %v205
    %2472 = vmatpush.msra.mxu0 %v203
    %2473 = vmatpush.msra.mxu0 %v201
    %2474 = vmatpush.msra.mxu0 %v199
    %2475 = vmatpush.msra.mxu0 %v197
    %2476 = vmatpush.msra.mxu0 %v195
    %2477 = vmatpush.msra.mxu0 %v193
    %2478 = vmatmul.f32.gmra.mxu0 %v2401
    %v2479 = vpop.f32.mrf.mxu0
    %v2480 = vadd.f32 %v2460, %v2479
    %2481 = vdwg.mxu0
    %v2482 = vmul.f32 %v2440, 0.001953125
    %v2483 = vmul.f32 %v2480, 0.001953125
    %s2484 = scalar_lea.vmem [#allocation7], 2
    %v2485 = vld [vmem:[%s2484] sm:$0x3]
    %v2486 = vadd.f32 %v2482, 1e-05
    %v2487 = vadd.f32 %v2483, 1e-05
    %v2488 = vrsqrt.pop %v2486
    %v2489 = vmul.f32 %v2488, %v2486
    %v2490 = vmul.f32 %v2489, %v2488
    %v2491 = vmul.f32 0.5, %v2490
    %v2492 = vsub.f32 1.5, %v2491
    %v2493 = vmul.f32 %v2488, %v2492
    %vm2494 = vweird.f32 %v2486
    %vm2495 = vweird.f32 %v2488
    %vm2496 = vmor %vm2494, %vm2495
    %v2497 = vsel %vm2496, %v2488, %v2493
    %v2498 = vrsqrt.pop %v2487
    %v2499 = vmul.f32 %v2498, %v2487
    %v2500 = vmul.f32 %v2499, %v2498
    %v2501 = vmul.f32 0.5, %v2500
    %v2502 = vsub.f32 1.5, %v2501
    %v2503 = vmul.f32 %v2498, %v2502
    %vm2504 = vweird.f32 %v2487
    %vm2505 = vweird.f32 %v2498
    %vm2506 = vmor %vm2504, %vm2505
    %v2507 = vsel %vm2506, %v2498, %v2503
    %v2510 = vrot.slane %v2507, 7
    %v2511 = vsel %vm1352, %v2497, %v2510
    %v2513 = vmul.f32 %v2485, %v2511
    %v2515 = vperm.slane %v2513, 0
    %v2516 = vperm.slane %v2513, 1
    %v2519 = vmul.f32 %v2368, %v2515
    %v2520 = vmul.f32 %v2369, %v2516
    %v2521 = vmul.f32 %v2370, %v2515
    %v2522 = vmul.f32 %v2371, %v2516
    %v2523 = vmul.f32 %v2372, %v2515
    %v2524 = vmul.f32 %v2373, %v2516
    %v2525 = vmul.f32 %v2374, %v2515
    %v2526 = vmul.f32 %v2375, %v2516
    %s2527 = scalar_lea.vmem [#allocation8], 2
    %v2528 = vld [vmem:[%s2527] sm:$0x3]
    %v2530 = vperm.slane %v2528, 0
    %v2531 = vperm.slane %v2528, 1
    %v2534 = vadd.f32 %v2519, %v2530
    %v2535 = vadd.f32 %v2520, %v2531
    %v2536 = vadd.f32 %v2521, %v2530
    %v2537 = vadd.f32 %v2522, %v2531
    %v2538 = vadd.f32 %v2523, %v2530
    %v2539 = vadd.f32 %v2524, %v2531
    %v2540 = vadd.f32 %v2525, %v2530
    %v2541 = vadd.f32 %v2526, %v2531
    %v2542 = vadd.f32 %v2534, %v224
    %v2543 = vadd.f32 %v2535, %v225
    %v2544 = vadd.f32 %v2536, %v226
    %v2545 = vadd.f32 %v2537, %v227
    %v2546 = vadd.f32 %v2538, %v228
    %v2547 = vadd.f32 %v2539, %v229
    %v2548 = vadd.f32 %v2540, %v230
    %v2549 = vadd.f32 %v2541, %v231
    %v2550 = vmax.f32 %v2542, 0.0
    %v2551 = vmax.f32 %v2543, 0.0
    %v2552 = vmax.f32 %v2544, 0.0
    %v2553 = vmax.f32 %v2545, 0.0
    %v2554 = vmax.f32 %v2546, 0.0
    %v2555 = vmax.f32 %v2547, 0.0
    %v2556 = vmax.f32 %v2548, 0.0
    %v2557 = vmax.f32 %v2549, 0.0
    %v2558 = vrot.slane %v2550, 7
    %v2559 = vrot.slane %v2551, 7
    %v2560 = vrot.slane %v2552, 7
    %v2561 = vrot.slane %v2553, 7
    %v2562 = vrot.slane %v2554, 7
    %v2563 = vrot.slane %v2555, 7
    %v2564 = vrot.slane %v2556, 7
    %v2565 = vrot.slane %v2557, 7
    %v2566 = vsel %vm240, %v2562, %v2564
    %v2567 = vsel %vm240, %v2563, %v2565
    %v2568 = vsel %vm240, %v2560, %v2562
    %v2569 = vsel %vm240, %v2561, %v2563
    %v2570 = vsel %vm240, %v2558, %v2560
    %v2571 = vsel %vm240, %v2559, %v2561
    %v2572 = vsel %vm240, %v2564, %v2558
    %v2573 = vsel %vm240, %v2565, %v2559
    %v2574 = vsel %vm152, %v2572, 0.0
    %v2575 = vsel %vm152, %v2573, 0.0
    %v2576 = vsel %vm153, %v2570, 0.0
    %v2577 = vsel %vm153, %v2571, 0.0
    %v2578 = vsel %vm154, %v2568, 0.0
    %v2579 = vsel %vm154, %v2569, 0.0
    %v2580 = vsel %vm155, %v2566, 0.0
    %v2581 = vsel %vm155, %v2567, 0.0
    %v2582 = vrot.slane %v2550, 1
    %v2583 = vrot.slane %v2551, 1
    %v2584 = vrot.slane %v2552, 1
    %v2585 = vrot.slane %v2553, 1
    %v2586 = vrot.slane %v2554, 1
    %v2587 = vrot.slane %v2555, 1
    %v2588 = vrot.slane %v2556, 1
    %v2589 = vrot.slane %v2557, 1
    %v2590 = vsel %vm265, %v2586, %v2588
    %v2591 = vsel %vm265, %v2587, %v2589
    %v2592 = vsel %vm265, %v2584, %v2586
    %v2593 = vsel %vm265, %v2585, %v2587
    %v2594 = vsel %vm265, %v2582, %v2584
    %v2595 = vsel %vm265, %v2583, %v2585
    %v2596 = vsel %vm265, %v2588, %v2582
    %v2597 = vsel %vm265, %v2589, %v2583
    %v2598 = vsel %vm156, %v2594, 0.0
    %v2599 = vsel %vm156, %v2595, 0.0
    %v2600 = vsel %vm157, %v2592, 0.0
    %v2601 = vsel %vm157, %v2593, 0.0
    %v2602 = vsel %vm158, %v2590, 0.0
    %v2603 = vsel %vm158, %v2591, 0.0
    %v2604 = vsel %vm159, %v2596, 0.0
    %v2605 = vsel %vm159, %v2597, 0.0
    %v2606 = vpack.c.bf16 %v2576, %v2574
    %v2607 = vpack.c.bf16 %v2577, %v2575
    %v2608 = vpack.c.bf16 %v2580, %v2578
    %v2609 = vpack.c.bf16 %v2581, %v2579
    %s2610 = scalar_lea.vmem [#allocation5], 1536
    %v2611 = vld [vmem:[%s2610] sm:$0xff]
    %v2612 = vld [vmem:[%s2610 + $0x8] sm:$0xff]
    %v2613 = vld [vmem:[%s2610 + $0x10] sm:$0xff]
    %v2614 = vld [vmem:[%s2610 + $0x18] sm:$0xff]
    %v2615 = vld [vmem:[%s2610 + $0x20] sm:$0xff]
    %v2616 = vld [vmem:[%s2610 + $0x28] sm:$0xff]
    %v2617 = vld [vmem:[%s2610 + $0x30] sm:$0xff]
    %v2618 = vld [vmem:[%s2610 + $0x38] sm:$0xff]
    %v2619 = vld [vmem:[%s2610 + $0x40] sm:$0xff]
    %v2620 = vld [vmem:[%s2610 + $0x48] sm:$0xff]
    %v2621 = vld [vmem:[%s2610 + $0x50] sm:$0xff]
    %v2622 = vld [vmem:[%s2610 + $0x58] sm:$0xff]
    %v2623 = vld [vmem:[%s2610 + $0x60] sm:$0xff]
    %v2624 = vld [vmem:[%s2610 + $0x68] sm:$0xff]
    %v2625 = vld [vmem:[%s2610 + $0x70] sm:$0xff]
    %v2626 = vld [vmem:[%s2610 + $0x78] sm:$0xff]
    %v2627 = vld [vmem:[%s2610 + $0x80] sm:$0xff]
    %v2628 = vld [vmem:[%s2610 + $0x88] sm:$0xff]
    %v2629 = vld [vmem:[%s2610 + $0x90] sm:$0xff]
    %v2630 = vld [vmem:[%s2610 + $0x98] sm:$0xff]
    %v2631 = vld [vmem:[%s2610 + $0xa0] sm:$0xff]
    %v2632 = vld [vmem:[%s2610 + $0xa8] sm:$0xff]
    %v2633 = vld [vmem:[%s2610 + $0xb0] sm:$0xff]
    %v2634 = vld [vmem:[%s2610 + $0xb8] sm:$0xff]
    %v2635 = vld [vmem:[%s2610 + $0xc0] sm:$0xff]
    %v2636 = vld [vmem:[%s2610 + $0xc8] sm:$0xff]
    %v2637 = vld [vmem:[%s2610 + $0xd0] sm:$0xff]
    %v2638 = vld [vmem:[%s2610 + $0xd8] sm:$0xff]
    %v2639 = vld [vmem:[%s2610 + $0xe0] sm:$0xff]
    %v2640 = vld [vmem:[%s2610 + $0xe8] sm:$0xff]
    %v2641 = vld [vmem:[%s2610 + $0xf0] sm:$0xff]
    %v2642 = vld [vmem:[%s2610 + $0xf8] sm:$0xff]
    %v2643 = vpack.c.bf16 %v2552, %v2550
    %v2644 = vpack.c.bf16 %v2553, %v2551
    %v2645 = vpack.c.bf16 %v2556, %v2554
    %v2646 = vpack.c.bf16 %v2557, %v2555
    %s2647 = scalar_lea.vmem [#allocation5], 1792
    %v2648 = vld [vmem:[%s2647] sm:$0xff]
    %v2649 = vld [vmem:[%s2647 + $0x8] sm:$0xff]
    %v2650 = vld [vmem:[%s2647 + $0x10] sm:$0xff]
    %v2651 = vld [vmem:[%s2647 + $0x18] sm:$0xff]
    %v2652 = vld [vmem:[%s2647 + $0x20] sm:$0xff]
    %v2653 = vld [vmem:[%s2647 + $0x28] sm:$0xff]
    %v2654 = vld [vmem:[%s2647 + $0x30] sm:$0xff]
    %v2655 = vld [vmem:[%s2647 + $0x38] sm:$0xff]
    %v2656 = vld [vmem:[%s2647 + $0x40] sm:$0xff]
    %v2657 = vld [vmem:[%s2647 + $0x48] sm:$0xff]
    %v2658 = vld [vmem:[%s2647 + $0x50] sm:$0xff]
    %v2659 = vld [vmem:[%s2647 + $0x58] sm:$0xff]
    %v2660 = vld [vmem:[%s2647 + $0x60] sm:$0xff]
    %v2661 = vld [vmem:[%s2647 + $0x68] sm:$0xff]
    %v2662 = vld [vmem:[%s2647 + $0x70] sm:$0xff]
    %v2663 = vld [vmem:[%s2647 + $0x78] sm:$0xff]
    %v2664 = vld [vmem:[%s2647 + $0x80] sm:$0xff]
    %v2665 = vld [vmem:[%s2647 + $0x88] sm:$0xff]
    %v2666 = vld [vmem:[%s2647 + $0x90] sm:$0xff]
    %v2667 = vld [vmem:[%s2647 + $0x98] sm:$0xff]
    %v2668 = vld [vmem:[%s2647 + $0xa0] sm:$0xff]
    %v2669 = vld [vmem:[%s2647 + $0xa8] sm:$0xff]
    %v2670 = vld [vmem:[%s2647 + $0xb0] sm:$0xff]
    %v2671 = vld [vmem:[%s2647 + $0xb8] sm:$0xff]
    %v2672 = vld [vmem:[%s2647 + $0xc0] sm:$0xff]
    %v2673 = vld [vmem:[%s2647 + $0xc8] sm:$0xff]
    %v2674 = vld [vmem:[%s2647 + $0xd0] sm:$0xff]
    %v2675 = vld [vmem:[%s2647 + $0xd8] sm:$0xff]
    %v2676 = vld [vmem:[%s2647 + $0xe0] sm:$0xff]
    %v2677 = vld [vmem:[%s2647 + $0xe8] sm:$0xff]
    %v2678 = vld [vmem:[%s2647 + $0xf0] sm:$0xff]
    %v2679 = vld [vmem:[%s2647 + $0xf8] sm:$0xff]
    %v2712 = vunpack.c.l.b16 %v2648
    %v2713 = vunpack.c.h.b16 %v2648
    %v2714 = vunpack.c.l.b16 %v2649
    %v2715 = vunpack.c.h.b16 %v2649
    %v2716 = vunpack.c.l.b16 %v2650
    %v2717 = vunpack.c.h.b16 %v2650
    %v2718 = vunpack.c.l.b16 %v2651
    %v2719 = vunpack.c.h.b16 %v2651
    %v2720 = vunpack.c.l.b16 %v2652
    %v2721 = vunpack.c.h.b16 %v2652
    %v2722 = vunpack.c.l.b16 %v2653
    %v2723 = vunpack.c.h.b16 %v2653
    %v2724 = vunpack.c.l.b16 %v2654
    %v2725 = vunpack.c.h.b16 %v2654
    %v2726 = vunpack.c.l.b16 %v2655
    %v2727 = vunpack.c.h.b16 %v2655
    %v2728 = vunpack.c.l.b16 %v2656
    %v2729 = vunpack.c.h.b16 %v2656
    %v2730 = vunpack.c.l.b16 %v2657
    %v2731 = vunpack.c.h.b16 %v2657
    %v2732 = vunpack.c.l.b16 %v2658
    %v2733 = vunpack.c.h.b16 %v2658
    %v2734 = vunpack.c.l.b16 %v2659
    %v2735 = vunpack.c.h.b16 %v2659
    %v2736 = vunpack.c.l.b16 %v2660
    %v2737 = vunpack.c.h.b16 %v2660
    %v2738 = vunpack.c.l.b16 %v2661
    %v2739 = vunpack.c.h.b16 %v2661
    %v2740 = vunpack.c.l.b16 %v2662
    %v2741 = vunpack.c.h.b16 %v2662
    %v2742 = vunpack.c.l.b16 %v2663
    %v2743 = vunpack.c.h.b16 %v2663
    %v2744 = vunpack.c.l.b16 %v2664
    %v2745 = vunpack.c.h.b16 %v2664
    %v2746 = vunpack.c.l.b16 %v2665
    %v2747 = vunpack.c.h.b16 %v2665
    %v2748 = vunpack.c.l.b16 %v2666
    %v2749 = vunpack.c.h.b16 %v2666
    %v2750 = vunpack.c.l.b16 %v2667
    %v2751 = vunpack.c.h.b16 %v2667
    %v2752 = vunpack.c.l.b16 %v2668
    %v2753 = vunpack.c.h.b16 %v2668
    %v2754 = vunpack.c.l.b16 %v2669
    %v2755 = vunpack.c.h.b16 %v2669
    %v2756 = vunpack.c.l.b16 %v2670
    %v2757 = vunpack.c.h.b16 %v2670
    %v2758 = vunpack.c.l.b16 %v2671
    %v2759 = vunpack.c.h.b16 %v2671
    %v2760 = vunpack.c.l.b16 %v2672
    %v2761 = vunpack.c.h.b16 %v2672
    %v2762 = vunpack.c.l.b16 %v2673
    %v2763 = vunpack.c.h.b16 %v2673
    %v2764 = vunpack.c.l.b16 %v2674
    %v2765 = vunpack.c.h.b16 %v2674
    %v2766 = vunpack.c.l.b16 %v2675
    %v2767 = vunpack.c.h.b16 %v2675
    %v2768 = vunpack.c.l.b16 %v2676
    %v2769 = vunpack.c.h.b16 %v2676
    %v2770 = vunpack.c.l.b16 %v2677
    %v2771 = vunpack.c.h.b16 %v2677
    %v2772 = vunpack.c.l.b16 %v2678
    %v2773 = vunpack.c.h.b16 %v2678
    %v2774 = vunpack.c.l.b16 %v2679
    %v2775 = vunpack.c.h.b16 %v2679
    %v2776 = vpack.c.b16 %v2714, %v2712
    %v2777 = vpack.c.b16 %v2715, %v2713
    %v2778 = vpack.c.b16 %v2718, %v2716
    %v2779 = vpack.c.b16 %v2719, %v2717
    %v2780 = vpack.c.b16 %v2722, %v2720
    %v2781 = vpack.c.b16 %v2723, %v2721
    %v2782 = vpack.c.b16 %v2726, %v2724
    %v2783 = vpack.c.b16 %v2727, %v2725
    %v2784 = vpack.c.b16 %v2730, %v2728
    %v2785 = vpack.c.b16 %v2731, %v2729
    %v2786 = vpack.c.b16 %v2734, %v2732
    %v2787 = vpack.c.b16 %v2735, %v2733
    %v2788 = vpack.c.b16 %v2738, %v2736
    %v2789 = vpack.c.b16 %v2739, %v2737
    %v2790 = vpack.c.b16 %v2742, %v2740
    %v2791 = vpack.c.b16 %v2743, %v2741
    %v2792 = vpack.c.b16 %v2746, %v2744
    %v2793 = vpack.c.b16 %v2747, %v2745
    %v2794 = vpack.c.b16 %v2750, %v2748
    %v2795 = vpack.c.b16 %v2751, %v2749
    %v2796 = vpack.c.b16 %v2754, %v2752
    %v2797 = vpack.c.b16 %v2755, %v2753
    %v2798 = vpack.c.b16 %v2758, %v2756
    %v2799 = vpack.c.b16 %v2759, %v2757
    %v2800 = vpack.c.b16 %v2762, %v2760
    %v2801 = vpack.c.b16 %v2763, %v2761
    %v2802 = vpack.c.b16 %v2766, %v2764
    %v2803 = vpack.c.b16 %v2767, %v2765
    %v2804 = vpack.c.b16 %v2770, %v2768
    %v2805 = vpack.c.b16 %v2771, %v2769
    %v2806 = vpack.c.b16 %v2774, %v2772
    %v2807 = vpack.c.b16 %v2775, %v2773
    %2840 = vmatpush.bf16.msra.mxu0 %v2790
    %2841 = vmatpush.bf16.msra.mxu0 %v2788
    %2842 = vmatpush.bf16.msra.mxu0 %v2786
    %2843 = vmatpush.bf16.msra.mxu0 %v2784
    %2844 = vmatpush.bf16.msra.mxu0 %v2782
    %2845 = vmatpush.bf16.msra.mxu0 %v2780
    %2846 = vmatpush.bf16.msra.mxu0 %v2778
    %2847 = vmatpush.bf16.msra.mxu0 %v2776
    %2848 = vmatmul.bf16.gmra.mxu0 %v2643
    %v2849 = vpop.f32.mrf.mxu0
    %v2850 = vadd.f32 0.0, %v2849
    %v2851 = vpop.f32.mrf.mxu0
    %v2852 = vadd.f32 0.0, %v2851
    %2853 = vmatmul.bf16.gmra.mxu0 %v2645
    %v2854 = vpop.f32.mrf.mxu0
    %v2855 = vadd.f32 0.0, %v2854
    %v2856 = vpop.f32.mrf.mxu0
    %v2857 = vadd.f32 0.0, %v2856
    %2858 = vdwg.mxu0
    %2859 = vmatpush.bf16.msra.mxu0 %v2806
    %2860 = vmatpush.bf16.msra.mxu0 %v2804
    %2861 = vmatpush.bf16.msra.mxu0 %v2802
    %2862 = vmatpush.bf16.msra.mxu0 %v2800
    %2863 = vmatpush.bf16.msra.mxu0 %v2798
    %2864 = vmatpush.bf16.msra.mxu0 %v2796
    %2865 = vmatpush.bf16.msra.mxu0 %v2794
    %2866 = vmatpush.bf16.msra.mxu0 %v2792
    %2867 = vmatmul.bf16.gmra.mxu0 %v2644
    %v2868 = vpop.f32.mrf.mxu0
    %v2869 = vadd.f32 %v2850, %v2868
    %v2870 = vpop.f32.mrf.mxu0
    %v2871 = vadd.f32 %v2852, %v2870
    %2872 = vmatmul.bf16.gmra.mxu0 %v2646
    %v2873 = vpop.f32.mrf.mxu0
    %v2874 = vadd.f32 %v2855, %v2873
    %v2875 = vpop.f32.mrf.mxu0
    %v2876 = vadd.f32 %v2857, %v2875
    %2877 = vdwg.mxu0
    %2878 = vmatpush.bf16.msra.mxu0 %v2791
    %2879 = vmatpush.bf16.msra.mxu0 %v2789
    %2880 = vmatpush.bf16.msra.mxu0 %v2787
    %2881 = vmatpush.bf16.msra.mxu0 %v2785
    %2882 = vmatpush.bf16.msra.mxu0 %v2783
    %2883 = vmatpush.bf16.msra.mxu0 %v2781
    %2884 = vmatpush.bf16.msra.mxu0 %v2779
    %2885 = vmatpush.bf16.msra.mxu0 %v2777
    %2886 = vmatmul.bf16.gmra.mxu0 %v2643
    %v2887 = vpop.f32.mrf.mxu0
    %v2888 = vadd.f32 0.0, %v2887
    %v2889 = vpop.f32.mrf.mxu0
    %v2890 = vadd.f32 0.0, %v2889
    %2891 = vmatmul.bf16.gmra.mxu0 %v2645
    %v2892 = vpop.f32.mrf.mxu0
    %v2893 = vadd.f32 0.0, %v2892
    %v2894 = vpop.f32.mrf.mxu0
    %v2895 = vadd.f32 0.0, %v2894
    %2896 = vdwg.mxu0
    %2897 = vmatpush.bf16.msra.mxu0 %v2807
    %2898 = vmatpush.bf16.msra.mxu0 %v2805
    %2899 = vmatpush.bf16.msra.mxu0 %v2803
    %2900 = vmatpush.bf16.msra.mxu0 %v2801
    %2901 = vmatpush.bf16.msra.mxu0 %v2799
    %2902 = vmatpush.bf16.msra.mxu0 %v2797
    %2903 = vmatpush.bf16.msra.mxu0 %v2795
    %2904 = vmatpush.bf16.msra.mxu0 %v2793
    %2905 = vmatmul.bf16.gmra.mxu0 %v2644
    %v2906 = vpop.f32.mrf.mxu0
    %v2907 = vadd.f32 %v2888, %v2906
    %v2908 = vpop.f32.mrf.mxu0
    %v2909 = vadd.f32 %v2890, %v2908
    %2910 = vmatmul.bf16.gmra.mxu0 %v2646
    %v2911 = vpop.f32.mrf.mxu0
    %v2912 = vadd.f32 %v2893, %v2911
    %v2913 = vpop.f32.mrf.mxu0
    %v2914 = vadd.f32 %v2895, %v2913
    %2915 = vdwg.mxu0
    %v2948 = vunpack.c.l.b16 %v2611
    %v2949 = vunpack.c.h.b16 %v2611
    %v2950 = vunpack.c.l.b16 %v2612
    %v2951 = vunpack.c.h.b16 %v2612
    %v2952 = vunpack.c.l.b16 %v2613
    %v2953 = vunpack.c.h.b16 %v2613
    %v2954 = vunpack.c.l.b16 %v2614
    %v2955 = vunpack.c.h.b16 %v2614
    %v2956 = vunpack.c.l.b16 %v2615
    %v2957 = vunpack.c.h.b16 %v2615
    %v2958 = vunpack.c.l.b16 %v2616
    %v2959 = vunpack.c.h.b16 %v2616
    %v2960 = vunpack.c.l.b16 %v2617
    %v2961 = vunpack.c.h.b16 %v2617
    %v2962 = vunpack.c.l.b16 %v2618
    %v2963 = vunpack.c.h.b16 %v2618
    %v2964 = vunpack.c.l.b16 %v2619
    %v2965 = vunpack.c.h.b16 %v2619
    %v2966 = vunpack.c.l.b16 %v2620
    %v2967 = vunpack.c.h.b16 %v2620
    %v2968 = vunpack.c.l.b16 %v2621
    %v2969 = vunpack.c.h.b16 %v2621
    %v2970 = vunpack.c.l.b16 %v2622
    %v2971 = vunpack.c.h.b16 %v2622
    %v2972 = vunpack.c.l.b16 %v2623
    %v2973 = vunpack.c.h.b16 %v2623
    %v2974 = vunpack.c.l.b16 %v2624
    %v2975 = vunpack.c.h.b16 %v2624
    %v2976 = vunpack.c.l.b16 %v2625
    %v2977 = vunpack.c.h.b16 %v2625
    %v2978 = vunpack.c.l.b16 %v2626
    %v2979 = vunpack.c.h.b16 %v2626
    %v2980 = vunpack.c.l.b16 %v2627
    %v2981 = vunpack.c.h.b16 %v2627
    %v2982 = vunpack.c.l.b16 %v2628
    %v2983 = vunpack.c.h.b16 %v2628
    %v2984 = vunpack.c.l.b16 %v2629
    %v2985 = vunpack.c.h.b16 %v2629
    %v2986 = vunpack.c.l.b16 %v2630
    %v2987 = vunpack.c.h.b16 %v2630
    %v2988 = vunpack.c.l.b16 %v2631
    %v2989 = vunpack.c.h.b16 %v2631
    %v2990 = vunpack.c.l.b16 %v2632
    %v2991 = vunpack.c.h.b16 %v2632
    %v2992 = vunpack.c.l.b16 %v2633
    %v2993 = vunpack.c.h.b16 %v2633
    %v2994 = vunpack.c.l.b16 %v2634
    %v2995 = vunpack.c.h.b16 %v2634
    %v2996 = vunpack.c.l.b16 %v2635
    %v2997 = vunpack.c.h.b16 %v2635
    %v2998 = vunpack.c.l.b16 %v2636
    %v2999 = vunpack.c.h.b16 %v2636
    %v3000 = vunpack.c.l.b16 %v2637
    %v3001 = vunpack.c.h.b16 %v2637
    %v3002 = vunpack.c.l.b16 %v2638
    %v3003 = vunpack.c.h.b16 %v2638
    %v3004 = vunpack.c.l.b16 %v2639
    %v3005 = vunpack.c.h.b16 %v2639
    %v3006 = vunpack.c.l.b16 %v2640
    %v3007 = vunpack.c.h.b16 %v2640
    %v3008 = vunpack.c.l.b16 %v2641
    %v3009 = vunpack.c.h.b16 %v2641
    %v3010 = vunpack.c.l.b16 %v2642
    %v3011 = vunpack.c.h.b16 %v2642
    %v3012 = vpack.c.b16 %v2950, %v2948
    %v3013 = vpack.c.b16 %v2951, %v2949
    %v3014 = vpack.c.b16 %v2954, %v2952
    %v3015 = vpack.c.b16 %v2955, %v2953
    %v3016 = vpack.c.b16 %v2958, %v2956
    %v3017 = vpack.c.b16 %v2959, %v2957
    %v3018 = vpack.c.b16 %v2962, %v2960
    %v3019 = vpack.c.b16 %v2963, %v2961
    %v3020 = vpack.c.b16 %v2966, %v2964
    %v3021 = vpack.c.b16 %v2967, %v2965
    %v3022 = vpack.c.b16 %v2970, %v2968
    %v3023 = vpack.c.b16 %v2971, %v2969
    %v3024 = vpack.c.b16 %v2974, %v2972
    %v3025 = vpack.c.b16 %v2975, %v2973
    %v3026 = vpack.c.b16 %v2978, %v2976
    %v3027 = vpack.c.b16 %v2979, %v2977
    %v3028 = vpack.c.b16 %v2982, %v2980
    %v3029 = vpack.c.b16 %v2983, %v2981
    %v3030 = vpack.c.b16 %v2986, %v2984
    %v3031 = vpack.c.b16 %v2987, %v2985
    %v3032 = vpack.c.b16 %v2990, %v2988
    %v3033 = vpack.c.b16 %v2991, %v2989
    %v3034 = vpack.c.b16 %v2994, %v2992
    %v3035 = vpack.c.b16 %v2995, %v2993
    %v3036 = vpack.c.b16 %v2998, %v2996
    %v3037 = vpack.c.b16 %v2999, %v2997
    %v3038 = vpack.c.b16 %v3002, %v3000
    %v3039 = vpack.c.b16 %v3003, %v3001
    %v3040 = vpack.c.b16 %v3006, %v3004
    %v3041 = vpack.c.b16 %v3007, %v3005
    %v3042 = vpack.c.b16 %v3010, %v3008
    %v3043 = vpack.c.b16 %v3011, %v3009
    %3076 = vmatpush.bf16.msra.mxu0 %v3026
    %3077 = vmatpush.bf16.msra.mxu0 %v3024
    %3078 = vmatpush.bf16.msra.mxu0 %v3022
    %3079 = vmatpush.bf16.msra.mxu0 %v3020
    %3080 = vmatpush.bf16.msra.mxu0 %v3018
    %3081 = vmatpush.bf16.msra.mxu0 %v3016
    %3082 = vmatpush.bf16.msra.mxu0 %v3014
    %3083 = vmatpush.bf16.msra.mxu0 %v3012
    %3084 = vmatmul.bf16.gmra.mxu0 %v2606
    %v3085 = vpop.f32.mrf.mxu0
    %v3086 = vadd.f32 %v2869, %v3085
    %v3087 = vpop.f32.mrf.mxu0
    %v3088 = vadd.f32 %v2871, %v3087
    %3089 = vmatmul.bf16.gmra.mxu0 %v2608
    %v3090 = vpop.f32.mrf.mxu0
    %v3091 = vadd.f32 %v2874, %v3090
    %v3092 = vpop.f32.mrf.mxu0
    %v3093 = vadd.f32 %v2876, %v3092
    %3094 = vdwg.mxu0
    %3095 = vmatpush.bf16.msra.mxu0 %v3042
    %3096 = vmatpush.bf16.msra.mxu0 %v3040
    %3097 = vmatpush.bf16.msra.mxu0 %v3038
    %3098 = vmatpush.bf16.msra.mxu0 %v3036
    %3099 = vmatpush.bf16.msra.mxu0 %v3034
    %3100 = vmatpush.bf16.msra.mxu0 %v3032
    %3101 = vmatpush.bf16.msra.mxu0 %v3030
    %3102 = vmatpush.bf16.msra.mxu0 %v3028
    %3103 = vmatmul.bf16.gmra.mxu0 %v2607
    %v3104 = vpop.f32.mrf.mxu0
    %v3105 = vadd.f32 %v3086, %v3104
    %v3106 = vpop.f32.mrf.mxu0
    %v3107 = vadd.f32 %v3088, %v3106
    %3108 = vmatmul.bf16.gmra.mxu0 %v2609
    %v3109 = vpop.f32.mrf.mxu0
    %v3110 = vadd.f32 %v3091, %v3109
    %v3111 = vpop.f32.mrf.mxu0
    %v3112 = vadd.f32 %v3093, %v3111
    %3113 = vdwg.mxu0
    %3114 = vmatpush.bf16.msra.mxu0 %v3027
    %3115 = vmatpush.bf16.msra.mxu0 %v3025
    %3116 = vmatpush.bf16.msra.mxu0 %v3023
    %3117 = vmatpush.bf16.msra.mxu0 %v3021
    %3118 = vmatpush.bf16.msra.mxu0 %v3019
    %3119 = vmatpush.bf16.msra.mxu0 %v3017
    %3120 = vmatpush.bf16.msra.mxu0 %v3015
    %3121 = vmatpush.bf16.msra.mxu0 %v3013
    %3122 = vmatmul.bf16.gmra.mxu0 %v2606
    %v3123 = vpop.f32.mrf.mxu0
    %v3124 = vadd.f32 %v2907, %v3123
    %v3125 = vpop.f32.mrf.mxu0
    %v3126 = vadd.f32 %v2909, %v3125
    %3127 = vmatmul.bf16.gmra.mxu0 %v2608
    %v3128 = vpop.f32.mrf.mxu0
    %v3129 = vadd.f32 %v2912, %v3128
    %v3130 = vpop.f32.mrf.mxu0
    %v3131 = vadd.f32 %v2914, %v3130
    %3132 = vdwg.mxu0
    %3133 = vmatpush.bf16.msra.mxu0 %v3043
    %3134 = vmatpush.bf16.msra.mxu0 %v3041
    %3135 = vmatpush.bf16.msra.mxu0 %v3039
    %3136 = vmatpush.bf16.msra.mxu0 %v3037
    %3137 = vmatpush.bf16.msra.mxu0 %v3035
    %3138 = vmatpush.bf16.msra.mxu0 %v3033
    %3139 = vmatpush.bf16.msra.mxu0 %v3031
    %3140 = vmatpush.bf16.msra.mxu0 %v3029
    %3141 = vmatmul.bf16.gmra.mxu0 %v2607
    %v3142 = vpop.f32.mrf.mxu0
    %v3143 = vadd.f32 %v3124, %v3142
    %v3144 = vpop.f32.mrf.mxu0
    %v3145 = vadd.f32 %v3126, %v3144
    %3146 = vmatmul.bf16.gmra.mxu0 %v2609
    %v3147 = vpop.f32.mrf.mxu0
    %v3148 = vadd.f32 %v3129, %v3147
    %v3149 = vpop.f32.mrf.mxu0
    %v3150 = vadd.f32 %v3131, %v3149
    %3151 = vdwg.mxu0
    %v3152 = vpack.c.bf16 %v2600, %v2598
    %v3153 = vpack.c.bf16 %v2601, %v2599
    %v3154 = vpack.c.bf16 %v2604, %v2602
    %v3155 = vpack.c.bf16 %v2605, %v2603
    %s3156 = scalar_lea.vmem [#allocation5], 2048
    %v3157 = vld [vmem:[%s3156] sm:$0xff]
    %v3158 = vld [vmem:[%s3156 + $0x8] sm:$0xff]
    %v3159 = vld [vmem:[%s3156 + $0x10] sm:$0xff]
    %v3160 = vld [vmem:[%s3156 + $0x18] sm:$0xff]
    %v3161 = vld [vmem:[%s3156 + $0x20] sm:$0xff]
    %v3162 = vld [vmem:[%s3156 + $0x28] sm:$0xff]
    %v3163 = vld [vmem:[%s3156 + $0x30] sm:$0xff]
    %v3164 = vld [vmem:[%s3156 + $0x38] sm:$0xff]
    %v3165 = vld [vmem:[%s3156 + $0x40] sm:$0xff]
    %v3166 = vld [vmem:[%s3156 + $0x48] sm:$0xff]
    %v3167 = vld [vmem:[%s3156 + $0x50] sm:$0xff]
    %v3168 = vld [vmem:[%s3156 + $0x58] sm:$0xff]
    %v3169 = vld [vmem:[%s3156 + $0x60] sm:$0xff]
    %v3170 = vld [vmem:[%s3156 + $0x68] sm:$0xff]
    %v3171 = vld [vmem:[%s3156 + $0x70] sm:$0xff]
    %v3172 = vld [vmem:[%s3156 + $0x78] sm:$0xff]
    %v3173 = vld [vmem:[%s3156 + $0x80] sm:$0xff]
    %v3174 = vld [vmem:[%s3156 + $0x88] sm:$0xff]
    %v3175 = vld [vmem:[%s3156 + $0x90] sm:$0xff]
    %v3176 = vld [vmem:[%s3156 + $0x98] sm:$0xff]
    %v3177 = vld [vmem:[%s3156 + $0xa0] sm:$0xff]
    %v3178 = vld [vmem:[%s3156 + $0xa8] sm:$0xff]
    %v3179 = vld [vmem:[%s3156 + $0xb0] sm:$0xff]
    %v3180 = vld [vmem:[%s3156 + $0xb8] sm:$0xff]
    %v3181 = vld [vmem:[%s3156 + $0xc0] sm:$0xff]
    %v3182 = vld [vmem:[%s3156 + $0xc8] sm:$0xff]
    %v3183 = vld [vmem:[%s3156 + $0xd0] sm:$0xff]
    %v3184 = vld [vmem:[%s3156 + $0xd8] sm:$0xff]
    %v3185 = vld [vmem:[%s3156 + $0xe0] sm:$0xff]
    %v3186 = vld [vmem:[%s3156 + $0xe8] sm:$0xff]
    %v3187 = vld [vmem:[%s3156 + $0xf0] sm:$0xff]
    %v3188 = vld [vmem:[%s3156 + $0xf8] sm:$0xff]
    %v3221 = vunpack.c.l.b16 %v3157
    %v3222 = vunpack.c.h.b16 %v3157
    %v3223 = vunpack.c.l.b16 %v3158
    %v3224 = vunpack.c.h.b16 %v3158
    %v3225 = vunpack.c.l.b16 %v3159
    %v3226 = vunpack.c.h.b16 %v3159
    %v3227 = vunpack.c.l.b16 %v3160
    %v3228 = vunpack.c.h.b16 %v3160
    %v3229 = vunpack.c.l.b16 %v3161
    %v3230 = vunpack.c.h.b16 %v3161
    %v3231 = vunpack.c.l.b16 %v3162
    %v3232 = vunpack.c.h.b16 %v3162
    %v3233 = vunpack.c.l.b16 %v3163
    %v3234 = vunpack.c.h.b16 %v3163
    %v3235 = vunpack.c.l.b16 %v3164
    %v3236 = vunpack.c.h.b16 %v3164
    %v3237 = vunpack.c.l.b16 %v3165
    %v3238 = vunpack.c.h.b16 %v3165
    %v3239 = vunpack.c.l.b16 %v3166
    %v3240 = vunpack.c.h.b16 %v3166
    %v3241 = vunpack.c.l.b16 %v3167
    %v3242 = vunpack.c.h.b16 %v3167
    %v3243 = vunpack.c.l.b16 %v3168
    %v3244 = vunpack.c.h.b16 %v3168
    %v3245 = vunpack.c.l.b16 %v3169
    %v3246 = vunpack.c.h.b16 %v3169
    %v3247 = vunpack.c.l.b16 %v3170
    %v3248 = vunpack.c.h.b16 %v3170
    %v3249 = vunpack.c.l.b16 %v3171
    %v3250 = vunpack.c.h.b16 %v3171
    %v3251 = vunpack.c.l.b16 %v3172
    %v3252 = vunpack.c.h.b16 %v3172
    %v3253 = vunpack.c.l.b16 %v3173
    %v3254 = vunpack.c.h.b16 %v3173
    %v3255 = vunpack.c.l.b16 %v3174
    %v3256 = vunpack.c.h.b16 %v3174
    %v3257 = vunpack.c.l.b16 %v3175
    %v3258 = vunpack.c.h.b16 %v3175
    %v3259 = vunpack.c.l.b16 %v3176
    %v3260 = vunpack.c.h.b16 %v3176
    %v3261 = vunpack.c.l.b16 %v3177
    %v3262 = vunpack.c.h.b16 %v3177
    %v3263 = vunpack.c.l.b16 %v3178
    %v3264 = vunpack.c.h.b16 %v3178
    %v3265 = vunpack.c.l.b16 %v3179
    %v3266 = vunpack.c.h.b16 %v3179
    %v3267 = vunpack.c.l.b16 %v3180
    %v3268 = vunpack.c.h.b16 %v3180
    %v3269 = vunpack.c.l.b16 %v3181
    %v3270 = vunpack.c.h.b16 %v3181
    %v3271 = vunpack.c.l.b16 %v3182
    %v3272 = vunpack.c.h.b16 %v3182
    %v3273 = vunpack.c.l.b16 %v3183
    %v3274 = vunpack.c.h.b16 %v3183
    %v3275 = vunpack.c.l.b16 %v3184
    %v3276 = vunpack.c.h.b16 %v3184
    %v3277 = vunpack.c.l.b16 %v3185
    %v3278 = vunpack.c.h.b16 %v3185
    %v3279 = vunpack.c.l.b16 %v3186
    %v3280 = vunpack.c.h.b16 %v3186
    %v3281 = vunpack.c.l.b16 %v3187
    %v3282 = vunpack.c.h.b16 %v3187
    %v3283 = vunpack.c.l.b16 %v3188
    %v3284 = vunpack.c.h.b16 %v3188
    %v3285 = vpack.c.b16 %v3223, %v3221
    %v3286 = vpack.c.b16 %v3224, %v3222
    %v3287 = vpack.c.b16 %v3227, %v3225
    %v3288 = vpack.c.b16 %v3228, %v3226
    %v3289 = vpack.c.b16 %v3231, %v3229
    %v3290 = vpack.c.b16 %v3232, %v3230
    %v3291 = vpack.c.b16 %v3235, %v3233
    %v3292 = vpack.c.b16 %v3236, %v3234
    %v3293 = vpack.c.b16 %v3239, %v3237
    %v3294 = vpack.c.b16 %v3240, %v3238
    %v3295 = vpack.c.b16 %v3243, %v3241
    %v3296 = vpack.c.b16 %v3244, %v3242
    %v3297 = vpack.c.b16 %v3247, %v3245
    %v3298 = vpack.c.b16 %v3248, %v3246
    %v3299 = vpack.c.b16 %v3251, %v3249
    %v3300 = vpack.c.b16 %v3252, %v3250
    %v3301 = vpack.c.b16 %v3255, %v3253
    %v3302 = vpack.c.b16 %v3256, %v3254
    %v3303 = vpack.c.b16 %v3259, %v3257
    %v3304 = vpack.c.b16 %v3260, %v3258
    %v3305 = vpack.c.b16 %v3263, %v3261
    %v3306 = vpack.c.b16 %v3264, %v3262
    %v3307 = vpack.c.b16 %v3267, %v3265
    %v3308 = vpack.c.b16 %v3268, %v3266
    %v3309 = vpack.c.b16 %v3271, %v3269
    %v3310 = vpack.c.b16 %v3272, %v3270
    %v3311 = vpack.c.b16 %v3275, %v3273
    %v3312 = vpack.c.b16 %v3276, %v3274
    %v3313 = vpack.c.b16 %v3279, %v3277
    %v3314 = vpack.c.b16 %v3280, %v3278
    %v3315 = vpack.c.b16 %v3283, %v3281
    %v3316 = vpack.c.b16 %v3284, %v3282
    %3349 = vmatpush.bf16.msra.mxu0 %v3299
    %3350 = vmatpush.bf16.msra.mxu0 %v3297
    %3351 = vmatpush.bf16.msra.mxu0 %v3295
    %3352 = vmatpush.bf16.msra.mxu0 %v3293
    %3353 = vmatpush.bf16.msra.mxu0 %v3291
    %3354 = vmatpush.bf16.msra.mxu0 %v3289
    %3355 = vmatpush.bf16.msra.mxu0 %v3287
    %3356 = vmatpush.bf16.msra.mxu0 %v3285
    %3357 = vmatmul.bf16.gmra.mxu0 %v3152
    %v3358 = vpop.f32.mrf.mxu0
    %v3359 = vadd.f32 0.0, %v3358
    %v3360 = vpop.f32.mrf.mxu0
    %v3361 = vadd.f32 0.0, %v3360
    %3362 = vmatmul.bf16.gmra.mxu0 %v3154
    %v3363 = vpop.f32.mrf.mxu0
    %v3364 = vadd.f32 0.0, %v3363
    %v3365 = vpop.f32.mrf.mxu0
    %v3366 = vadd.f32 0.0, %v3365
    %3367 = vdwg.mxu0
    %3368 = vmatpush.bf16.msra.mxu0 %v3315
    %3369 = vmatpush.bf16.msra.mxu0 %v3313
    %3370 = vmatpush.bf16.msra.mxu0 %v3311
    %3371 = vmatpush.bf16.msra.mxu0 %v3309
    %3372 = vmatpush.bf16.msra.mxu0 %v3307
    %3373 = vmatpush.bf16.msra.mxu0 %v3305
    %3374 = vmatpush.bf16.msra.mxu0 %v3303
    %3375 = vmatpush.bf16.msra.mxu0 %v3301
    %3376 = vmatmul.bf16.gmra.mxu0 %v3153
    %v3377 = vpop.f32.mrf.mxu0
    %v3378 = vadd.f32 %v3359, %v3377
    %v3379 = vpop.f32.mrf.mxu0
    %v3380 = vadd.f32 %v3361, %v3379
    %3381 = vmatmul.bf16.gmra.mxu0 %v3155
    %v3382 = vpop.f32.mrf.mxu0
    %v3383 = vadd.f32 %v3364, %v3382
    %v3384 = vpop.f32.mrf.mxu0
    %v3385 = vadd.f32 %v3366, %v3384
    %3386 = vdwg.mxu0
    %3387 = vmatpush.bf16.msra.mxu0 %v3300
    %3388 = vmatpush.bf16.msra.mxu0 %v3298
    %3389 = vmatpush.bf16.msra.mxu0 %v3296
    %3390 = vmatpush.bf16.msra.mxu0 %v3294
    %3391 = vmatpush.bf16.msra.mxu0 %v3292
    %3392 = vmatpush.bf16.msra.mxu0 %v3290
    %3393 = vmatpush.bf16.msra.mxu0 %v3288
    %3394 = vmatpush.bf16.msra.mxu0 %v3286
    %3395 = vmatmul.bf16.gmra.mxu0 %v3152
    %v3396 = vpop.f32.mrf.mxu0
    %v3397 = vadd.f32 0.0, %v3396
    %v3398 = vpop.f32.mrf.mxu0
    %v3399 = vadd.f32 0.0, %v3398
    %3400 = vmatmul.bf16.gmra.mxu0 %v3154
    %v3401 = vpop.f32.mrf.mxu0
    %v3402 = vadd.f32 0.0, %v3401
    %v3403 = vpop.f32.mrf.mxu0
    %v3404 = vadd.f32 0.0, %v3403
    %3405 = vdwg.mxu0
    %3406 = vmatpush.bf16.msra.mxu0 %v3316
    %3407 = vmatpush.bf16.msra.mxu0 %v3314
    %3408 = vmatpush.bf16.msra.mxu0 %v3312
    %3409 = vmatpush.bf16.msra.mxu0 %v3310
    %3410 = vmatpush.bf16.msra.mxu0 %v3308
    %3411 = vmatpush.bf16.msra.mxu0 %v3306
    %3412 = vmatpush.bf16.msra.mxu0 %v3304
    %3413 = vmatpush.bf16.msra.mxu0 %v3302
    %3414 = vmatmul.bf16.gmra.mxu0 %v3153
    %v3415 = vpop.f32.mrf.mxu0
    %v3416 = vadd.f32 %v3397, %v3415
    %v3417 = vpop.f32.mrf.mxu0
    %v3418 = vadd.f32 %v3399, %v3417
    %3419 = vmatmul.bf16.gmra.mxu0 %v3155
    %v3420 = vpop.f32.mrf.mxu0
    %v3421 = vadd.f32 %v3402, %v3420
    %v3422 = vpop.f32.mrf.mxu0
    %v3423 = vadd.f32 %v3404, %v3422
    %3424 = vdwg.mxu0
    %v3425 = vadd.f32 %v3105, %v3378
    %v3426 = vadd.f32 %v3143, %v3416
    %v3427 = vadd.f32 %v3107, %v3380
    %v3428 = vadd.f32 %v3145, %v3418
    %v3429 = vadd.f32 %v3110, %v3383
    %v3430 = vadd.f32 %v3148, %v3421
    %v3431 = vadd.f32 %v3112, %v3385
    %v3432 = vadd.f32 %v3150, %v3423
    %v3433 = vadd.f32 %v3425, %v3427
    %v3434 = vadd.f32 %v3433, %v3429
    %v3435 = vadd.f32 %v3434, %v3431
    %v3436 = vrot.slane %v3435, 4
    %v3437 = vadd.f32 %v3435, %v3436
    %v3438 = vrot.slane %v3437, 2
    %v3439 = vadd.f32 %v3437, %v3438
    %v3440 = vrot.slane %v3439, 1
    %v3441 = vadd.f32 %v3439, %v3440
    %v3442 = vadd.f32 %v3426, %v3428
    %v3443 = vadd.f32 %v3442, %v3430
    %v3444 = vadd.f32 %v3443, %v3432
    %v3445 = vrot.slane %v3444, 4
    %v3446 = vadd.f32 %v3444, %v3445
    %v3447 = vrot.slane %v3446, 2
    %v3448 = vadd.f32 %v3446, %v3447
    %v3449 = vrot.slane %v3448, 1
    %v3450 = vadd.f32 %v3448, %v3449
    %3451 = vmatpush.msra.mxu0 %v190
    %3452 = vmatpush.msra.mxu0 %v188
    %3453 = vmatpush.msra.mxu0 %v186
    %3454 = vmatpush.msra.mxu0 %v184
    %3455 = vmatpush.msra.mxu0 %v182
    %3456 = vmatpush.msra.mxu0 %v180
    %3457 = vmatpush.msra.mxu0 %v178
    %3458 = vmatpush.msra.mxu0 %v176
    %3459 = vmatpush.msra.mxu0 %v174
    %3460 = vmatpush.msra.mxu0 %v172
    %3461 = vmatpush.msra.mxu0 %v170
    %3462 = vmatpush.msra.mxu0 %v168
    %3463 = vmatpush.msra.mxu0 %v166
    %3464 = vmatpush.msra.mxu0 %v164
    %3465 = vmatpush.msra.mxu0 %v162
    %3466 = vmatpush.msra.mxu0 %v160
    %3467 = vmatmul.f32.gmra.mxu0 %v3441
    %v3468 = vpop.f32.mrf.mxu0
    %v3469 = vadd.f32 0.0, %v3468
    %3470 = vdwg.mxu0
    %3471 = vmatpush.msra.mxu0 %v222
    %3472 = vmatpush.msra.mxu0 %v220
    %3473 = vmatpush.msra.mxu0 %v218
    %3474 = vmatpush.msra.mxu0 %v216
    %3475 = vmatpush.msra.mxu0 %v214
    %3476 = vmatpush.msra.mxu0 %v212
    %3477 = vmatpush.msra.mxu0 %v210
    %3478 = vmatpush.msra.mxu0 %v208
    %3479 = vmatpush.msra.mxu0 %v206
    %3480 = vmatpush.msra.mxu0 %v204
    %3481 = vmatpush.msra.mxu0 %v202
    %3482 = vmatpush.msra.mxu0 %v200
    %3483 = vmatpush.msra.mxu0 %v198
    %3484 = vmatpush.msra.mxu0 %v196
    %3485 = vmatpush.msra.mxu0 %v194
    %3486 = vmatpush.msra.mxu0 %v192
    %3487 = vmatmul.f32.gmra.mxu0 %v3450
    %v3488 = vpop.f32.mrf.mxu0
    %v3489 = vadd.f32 %v3469, %v3488
    %3490 = vdwg.mxu0
    %3491 = vmatpush.msra.mxu0 %v191
    %3492 = vmatpush.msra.mxu0 %v189
    %3493 = vmatpush.msra.mxu0 %v187
    %3494 = vmatpush.msra.mxu0 %v185
    %3495 = vmatpush.msra.mxu0 %v183
    %3496 = vmatpush.msra.mxu0 %v181
    %3497 = vmatpush.msra.mxu0 %v179
    %3498 = vmatpush.msra.mxu0 %v177
    %3499 = vmatpush.msra.mxu0 %v175
    %3500 = vmatpush.msra.mxu0 %v173
    %3501 = vmatpush.msra.mxu0 %v171
    %3502 = vmatpush.msra.mxu0 %v169
    %3503 = vmatpush.msra.mxu0 %v167
    %3504 = vmatpush.msra.mxu0 %v165
    %3505 = vmatpush.msra.mxu0 %v163
    %3506 = vmatpush.msra.mxu0 %v161
    %3507 = vmatmul.f32.gmra.mxu0 %v3441
    %v3508 = vpop.f32.mrf.mxu0
    %v3509 = vadd.f32 0.0, %v3508
    %3510 = vdwg.mxu0
    %3511 = vmatpush.msra.mxu0 %v223
    %3512 = vmatpush.msra.mxu0 %v221
    %3513 = vmatpush.msra.mxu0 %v219
    %3514 = vmatpush.msra.mxu0 %v217
    %3515 = vmatpush.msra.mxu0 %v215
    %3516 = vmatpush.msra.mxu0 %v213
    %3517 = vmatpush.msra.mxu0 %v211
    %3518 = vmatpush.msra.mxu0 %v209
    %3519 = vmatpush.msra.mxu0 %v207
    %3520 = vmatpush.msra.mxu0 %v205
    %3521 = vmatpush.msra.mxu0 %v203
    %3522 = vmatpush.msra.mxu0 %v201
    %3523 = vmatpush.msra.mxu0 %v199
    %3524 = vmatpush.msra.mxu0 %v197
    %3525 = vmatpush.msra.mxu0 %v195
    %3526 = vmatpush.msra.mxu0 %v193
    %3527 = vmatmul.f32.gmra.mxu0 %v3450
    %v3528 = vpop.f32.mrf.mxu0
    %v3529 = vadd.f32 %v3509, %v3528
    %3530 = vdwg.mxu0
    %v3531 = vmul.f32 %v3489, 0.001953125
    %v3532 = vmul.f32 %v3529, 0.001953125
    %v3533 = vperm.slane %v3531, 0
    %v3534 = vperm.slane %v3532, 0
    %v3535 = vsub.f32 %v3425, %v3533
    %v3536 = vsub.f32 %v3426, %v3534
    %v3537 = vsub.f32 %v3427, %v3533
    %v3538 = vsub.f32 %v3428, %v3534
    %v3539 = vsub.f32 %v3429, %v3533
    %v3540 = vsub.f32 %v3430, %v3534
    %v3541 = vsub.f32 %v3431, %v3533
    %v3542 = vsub.f32 %v3432, %v3534
    %v3543 = vmul.f32 %v3535, %v3535
    %v3544 = vmul.f32 %v3536, %v3536
    %v3545 = vmul.f32 %v3537, %v3537
    %v3546 = vmul.f32 %v3538, %v3538
    %v3547 = vmul.f32 %v3539, %v3539
    %v3548 = vmul.f32 %v3540, %v3540
    %v3549 = vmul.f32 %v3541, %v3541
    %v3550 = vmul.f32 %v3542, %v3542
    %v3551 = vadd.f32 %v3543, %v3545
    %v3552 = vadd.f32 %v3551, %v3547
    %v3553 = vadd.f32 %v3552, %v3549
    %v3554 = vrot.slane %v3553, 4
    %v3555 = vadd.f32 %v3553, %v3554
    %v3556 = vrot.slane %v3555, 2
    %v3557 = vadd.f32 %v3555, %v3556
    %v3558 = vrot.slane %v3557, 1
    %v3559 = vadd.f32 %v3557, %v3558
    %v3560 = vadd.f32 %v3544, %v3546
    %v3561 = vadd.f32 %v3560, %v3548
    %v3562 = vadd.f32 %v3561, %v3550
    %v3563 = vrot.slane %v3562, 4
    %v3564 = vadd.f32 %v3562, %v3563
    %v3565 = vrot.slane %v3564, 2
    %v3566 = vadd.f32 %v3564, %v3565
    %v3567 = vrot.slane %v3566, 1
    %v3568 = vadd.f32 %v3566, %v3567
    %3569 = vmatpush.msra.mxu0 %v190
    %3570 = vmatpush.msra.mxu0 %v188
    %3571 = vmatpush.msra.mxu0 %v186
    %3572 = vmatpush.msra.mxu0 %v184
    %3573 = vmatpush.msra.mxu0 %v182
    %3574 = vmatpush.msra.mxu0 %v180
    %3575 = vmatpush.msra.mxu0 %v178
    %3576 = vmatpush.msra.mxu0 %v176
    %3577 = vmatpush.msra.mxu0 %v174
    %3578 = vmatpush.msra.mxu0 %v172
    %3579 = vmatpush.msra.mxu0 %v170
    %3580 = vmatpush.msra.mxu0 %v168
    %3581 = vmatpush.msra.mxu0 %v166
    %3582 = vmatpush.msra.mxu0 %v164
    %3583 = vmatpush.msra.mxu0 %v162
    %3584 = vmatpush.msra.mxu0 %v160
    %3585 = vmatmul.f32.gmra.mxu0 %v3559
    %v3586 = vpop.f32.mrf.mxu0
    %v3587 = vadd.f32 0.0, %v3586
    %3588 = vdwg.mxu0
    %3589 = vmatpush.msra.mxu0 %v222
    %3590 = vmatpush.msra.mxu0 %v220
    %3591 = vmatpush.msra.mxu0 %v218
    %3592 = vmatpush.msra.mxu0 %v216
    %3593 = vmatpush.msra.mxu0 %v214
    %3594 = vmatpush.msra.mxu0 %v212
    %3595 = vmatpush.msra.mxu0 %v210
    %3596 = vmatpush.msra.mxu0 %v208
    %3597 = vmatpush.msra.mxu0 %v206
    %3598 = vmatpush.msra.mxu0 %v204
    %3599 = vmatpush.msra.mxu0 %v202
    %3600 = vmatpush.msra.mxu0 %v200
    %3601 = vmatpush.msra.mxu0 %v198
    %3602 = vmatpush.msra.mxu0 %v196
    %3603 = vmatpush.msra.mxu0 %v194
    %3604 = vmatpush.msra.mxu0 %v192
    %3605 = vmatmul.f32.gmra.mxu0 %v3568
    %v3606 = vpop.f32.mrf.mxu0
    %v3607 = vadd.f32 %v3587, %v3606
    %3608 = vdwg.mxu0
    %3609 = vmatpush.msra.mxu0 %v191
    %3610 = vmatpush.msra.mxu0 %v189
    %3611 = vmatpush.msra.mxu0 %v187
    %3612 = vmatpush.msra.mxu0 %v185
    %3613 = vmatpush.msra.mxu0 %v183
    %3614 = vmatpush.msra.mxu0 %v181
    %3615 = vmatpush.msra.mxu0 %v179
    %3616 = vmatpush.msra.mxu0 %v177
    %3617 = vmatpush.msra.mxu0 %v175
    %3618 = vmatpush.msra.mxu0 %v173
    %3619 = vmatpush.msra.mxu0 %v171
    %3620 = vmatpush.msra.mxu0 %v169
    %3621 = vmatpush.msra.mxu0 %v167
    %3622 = vmatpush.msra.mxu0 %v165
    %3623 = vmatpush.msra.mxu0 %v163
    %3624 = vmatpush.msra.mxu0 %v161
    %3625 = vmatmul.f32.gmra.mxu0 %v3559
    %v3626 = vpop.f32.mrf.mxu0
    %v3627 = vadd.f32 0.0, %v3626
    %3628 = vdwg.mxu0
    %3629 = vmatpush.msra.mxu0 %v223
    %3630 = vmatpush.msra.mxu0 %v221
    %3631 = vmatpush.msra.mxu0 %v219
    %3632 = vmatpush.msra.mxu0 %v217
    %3633 = vmatpush.msra.mxu0 %v215
    %3634 = vmatpush.msra.mxu0 %v213
    %3635 = vmatpush.msra.mxu0 %v211
    %3636 = vmatpush.msra.mxu0 %v209
    %3637 = vmatpush.msra.mxu0 %v207
    %3638 = vmatpush.msra.mxu0 %v205
    %3639 = vmatpush.msra.mxu0 %v203
    %3640 = vmatpush.msra.mxu0 %v201
    %3641 = vmatpush.msra.mxu0 %v199
    %3642 = vmatpush.msra.mxu0 %v197
    %3643 = vmatpush.msra.mxu0 %v195
    %3644 = vmatpush.msra.mxu0 %v193
    %3645 = vmatmul.f32.gmra.mxu0 %v3568
    %v3646 = vpop.f32.mrf.mxu0
    %v3647 = vadd.f32 %v3627, %v3646
    %3648 = vdwg.mxu0
    %v3649 = vmul.f32 %v3607, 0.001953125
    %v3650 = vmul.f32 %v3647, 0.001953125
    %s3651 = scalar_lea.vmem [#allocation7], 4
    %v3652 = vld [vmem:[%s3651] sm:$0x3]
    %v3653 = vadd.f32 %v3649, 1e-05
    %v3654 = vadd.f32 %v3650, 1e-05
    %v3655 = vrsqrt.pop %v3653
    %v3656 = vmul.f32 %v3655, %v3653
    %v3657 = vmul.f32 %v3656, %v3655
    %v3658 = vmul.f32 0.5, %v3657
    %v3659 = vsub.f32 1.5, %v3658
    %v3660 = vmul.f32 %v3655, %v3659
    %vm3661 = vweird.f32 %v3653
    %vm3662 = vweird.f32 %v3655
    %vm3663 = vmor %vm3661, %vm3662
    %v3664 = vsel %vm3663, %v3655, %v3660
    %v3665 = vrsqrt.pop %v3654
    %v3666 = vmul.f32 %v3665, %v3654
    %v3667 = vmul.f32 %v3666, %v3665
    %v3668 = vmul.f32 0.5, %v3667
    %v3669 = vsub.f32 1.5, %v3668
    %v3670 = vmul.f32 %v3665, %v3669
    %vm3671 = vweird.f32 %v3654
    %vm3672 = vweird.f32 %v3665
    %vm3673 = vmor %vm3671, %vm3672
    %v3674 = vsel %vm3673, %v3665, %v3670
    %v3677 = vrot.slane %v3674, 7
    %v3678 = vsel %vm1352, %v3664, %v3677
    %v3680 = vmul.f32 %v3652, %v3678
    %v3682 = vperm.slane %v3680, 0
    %v3683 = vperm.slane %v3680, 1
    %v3686 = vmul.f32 %v3535, %v3682
    %v3687 = vmul.f32 %v3536, %v3683
    %v3688 = vmul.f32 %v3537, %v3682
    %v3689 = vmul.f32 %v3538, %v3683
    %v3690 = vmul.f32 %v3539, %v3682
    %v3691 = vmul.f32 %v3540, %v3683
    %v3692 = vmul.f32 %v3541, %v3682
    %v3693 = vmul.f32 %v3542, %v3683
    %s3694 = scalar_lea.vmem [#allocation8], 4
    %v3695 = vld [vmem:[%s3694] sm:$0x3]
    %v3697 = vperm.slane %v3695, 0
    %v3698 = vperm.slane %v3695, 1
    %v3701 = vadd.f32 %v3686, %v3697
    %v3702 = vadd.f32 %v3687, %v3698
    %v3703 = vadd.f32 %v3688, %v3697
    %v3704 = vadd.f32 %v3689, %v3698
    %v3705 = vadd.f32 %v3690, %v3697
    %v3706 = vadd.f32 %v3691, %v3698
    %v3707 = vadd.f32 %v3692, %v3697
    %v3708 = vadd.f32 %v3693, %v3698
    %v3709 = vmax.f32 %v3701, 0.0
    %v3710 = vmax.f32 %v3702, 0.0
    %v3711 = vmax.f32 %v3703, 0.0
    %v3712 = vmax.f32 %v3704, 0.0
    %v3713 = vmax.f32 %v3705, 0.0
    %v3714 = vmax.f32 %v3706, 0.0
    %v3715 = vmax.f32 %v3707, 0.0
    %v3716 = vmax.f32 %v3708, 0.0
    %v3717 = vrot.slane %v3709, 7
    %v3718 = vrot.slane %v3710, 7
    %v3719 = vrot.slane %v3711, 7
    %v3720 = vrot.slane %v3712, 7
    %v3721 = vrot.slane %v3713, 7
    %v3722 = vrot.slane %v3714, 7
    %v3723 = vrot.slane %v3715, 7
    %v3724 = vrot.slane %v3716, 7
    %v3725 = vsel %vm240, %v3721, %v3723
    %v3726 = vsel %vm240, %v3722, %v3724
    %v3727 = vsel %vm240, %v3719, %v3721
    %v3728 = vsel %vm240, %v3720, %v3722
    %v3729 = vsel %vm240, %v3717, %v3719
    %v3730 = vsel %vm240, %v3718, %v3720
    %v3731 = vsel %vm240, %v3723, %v3717
    %v3732 = vsel %vm240, %v3724, %v3718
    %v3733 = vsel %vm152, %v3731, 0.0
    %v3734 = vsel %vm152, %v3732, 0.0
    %v3735 = vsel %vm153, %v3729, 0.0
    %v3736 = vsel %vm153, %v3730, 0.0
    %v3737 = vsel %vm154, %v3727, 0.0
    %v3738 = vsel %vm154, %v3728, 0.0
    %v3739 = vsel %vm155, %v3725, 0.0
    %v3740 = vsel %vm155, %v3726, 0.0
    %v3741 = vrot.slane %v3709, 1
    %v3742 = vrot.slane %v3710, 1
    %v3743 = vrot.slane %v3711, 1
    %v3744 = vrot.slane %v3712, 1
    %v3745 = vrot.slane %v3713, 1
    %v3746 = vrot.slane %v3714, 1
    %v3747 = vrot.slane %v3715, 1
    %v3748 = vrot.slane %v3716, 1
    %v3749 = vsel %vm265, %v3745, %v3747
    %v3750 = vsel %vm265, %v3746, %v3748
    %v3751 = vsel %vm265, %v3743, %v3745
    %v3752 = vsel %vm265, %v3744, %v3746
    %v3753 = vsel %vm265, %v3741, %v3743
    %v3754 = vsel %vm265, %v3742, %v3744
    %v3755 = vsel %vm265, %v3747, %v3741
    %v3756 = vsel %vm265, %v3748, %v3742
    %v3757 = vsel %vm156, %v3753, 0.0
    %v3758 = vsel %vm156, %v3754, 0.0
    %v3759 = vsel %vm157, %v3751, 0.0
    %v3760 = vsel %vm157, %v3752, 0.0
    %v3761 = vsel %vm158, %v3749, 0.0
    %v3762 = vsel %vm158, %v3750, 0.0
    %v3763 = vsel %vm159, %v3755, 0.0
    %v3764 = vsel %vm159, %v3756, 0.0
    %v3765 = vpack.c.bf16 %v3735, %v3733
    %v3766 = vpack.c.bf16 %v3736, %v3734
    %v3767 = vpack.c.bf16 %v3739, %v3737
    %v3768 = vpack.c.bf16 %v3740, %v3738
    %s3769 = scalar_lea.vmem [#allocation5], 2304
    %v3770 = vld [vmem:[%s3769] sm:$0xff]
    %v3771 = vld [vmem:[%s3769 + $0x8] sm:$0xff]
    %v3772 = vld [vmem:[%s3769 + $0x10] sm:$0xff]
    %v3773 = vld [vmem:[%s3769 + $0x18] sm:$0xff]
    %v3774 = vld [vmem:[%s3769 + $0x20] sm:$0xff]
    %v3775 = vld [vmem:[%s3769 + $0x28] sm:$0xff]
    %v3776 = vld [vmem:[%s3769 + $0x30] sm:$0xff]
    %v3777 = vld [vmem:[%s3769 + $0x38] sm:$0xff]
    %v3778 = vld [vmem:[%s3769 + $0x40] sm:$0xff]
    %v3779 = vld [vmem:[%s3769 + $0x48] sm:$0xff]
    %v3780 = vld [vmem:[%s3769 + $0x50] sm:$0xff]
    %v3781 = vld [vmem:[%s3769 + $0x58] sm:$0xff]
    %v3782 = vld [vmem:[%s3769 + $0x60] sm:$0xff]
    %v3783 = vld [vmem:[%s3769 + $0x68] sm:$0xff]
    %v3784 = vld [vmem:[%s3769 + $0x70] sm:$0xff]
    %v3785 = vld [vmem:[%s3769 + $0x78] sm:$0xff]
    %v3786 = vld [vmem:[%s3769 + $0x80] sm:$0xff]
    %v3787 = vld [vmem:[%s3769 + $0x88] sm:$0xff]
    %v3788 = vld [vmem:[%s3769 + $0x90] sm:$0xff]
    %v3789 = vld [vmem:[%s3769 + $0x98] sm:$0xff]
    %v3790 = vld [vmem:[%s3769 + $0xa0] sm:$0xff]
    %v3791 = vld [vmem:[%s3769 + $0xa8] sm:$0xff]
    %v3792 = vld [vmem:[%s3769 + $0xb0] sm:$0xff]
    %v3793 = vld [vmem:[%s3769 + $0xb8] sm:$0xff]
    %v3794 = vld [vmem:[%s3769 + $0xc0] sm:$0xff]
    %v3795 = vld [vmem:[%s3769 + $0xc8] sm:$0xff]
    %v3796 = vld [vmem:[%s3769 + $0xd0] sm:$0xff]
    %v3797 = vld [vmem:[%s3769 + $0xd8] sm:$0xff]
    %v3798 = vld [vmem:[%s3769 + $0xe0] sm:$0xff]
    %v3799 = vld [vmem:[%s3769 + $0xe8] sm:$0xff]
    %v3800 = vld [vmem:[%s3769 + $0xf0] sm:$0xff]
    %v3801 = vld [vmem:[%s3769 + $0xf8] sm:$0xff]
    %v3802 = vpack.c.bf16 %v3711, %v3709
    %v3803 = vpack.c.bf16 %v3712, %v3710
    %v3804 = vpack.c.bf16 %v3715, %v3713
    %v3805 = vpack.c.bf16 %v3716, %v3714
    %s3806 = scalar_lea.vmem [#allocation5], 2560
    %v3807 = vld [vmem:[%s3806] sm:$0xff]
    %v3808 = vld [vmem:[%s3806 + $0x8] sm:$0xff]
    %v3809 = vld [vmem:[%s3806 + $0x10] sm:$0xff]
    %v3810 = vld [vmem:[%s3806 + $0x18] sm:$0xff]
    %v3811 = vld [vmem:[%s3806 + $0x20] sm:$0xff]
    %v3812 = vld [vmem:[%s3806 + $0x28] sm:$0xff]
    %v3813 = vld [vmem:[%s3806 + $0x30] sm:$0xff]
    %v3814 = vld [vmem:[%s3806 + $0x38] sm:$0xff]
    %v3815 = vld [vmem:[%s3806 + $0x40] sm:$0xff]
    %v3816 = vld [vmem:[%s3806 + $0x48] sm:$0xff]
    %v3817 = vld [vmem:[%s3806 + $0x50] sm:$0xff]
    %v3818 = vld [vmem:[%s3806 + $0x58] sm:$0xff]
    %v3819 = vld [vmem:[%s3806 + $0x60] sm:$0xff]
    %v3820 = vld [vmem:[%s3806 + $0x68] sm:$0xff]
    %v3821 = vld [vmem:[%s3806 + $0x70] sm:$0xff]
    %v3822 = vld [vmem:[%s3806 + $0x78] sm:$0xff]
    %v3823 = vld [vmem:[%s3806 + $0x80] sm:$0xff]
    %v3824 = vld [vmem:[%s3806 + $0x88] sm:$0xff]
    %v3825 = vld [vmem:[%s3806 + $0x90] sm:$0xff]
    %v3826 = vld [vmem:[%s3806 + $0x98] sm:$0xff]
    %v3827 = vld [vmem:[%s3806 + $0xa0] sm:$0xff]
    %v3828 = vld [vmem:[%s3806 + $0xa8] sm:$0xff]
    %v3829 = vld [vmem:[%s3806 + $0xb0] sm:$0xff]
    %v3830 = vld [vmem:[%s3806 + $0xb8] sm:$0xff]
    %v3831 = vld [vmem:[%s3806 + $0xc0] sm:$0xff]
    %v3832 = vld [vmem:[%s3806 + $0xc8] sm:$0xff]
    %v3833 = vld [vmem:[%s3806 + $0xd0] sm:$0xff]
    %v3834 = vld [vmem:[%s3806 + $0xd8] sm:$0xff]
    %v3835 = vld [vmem:[%s3806 + $0xe0] sm:$0xff]
    %v3836 = vld [vmem:[%s3806 + $0xe8] sm:$0xff]
    %v3837 = vld [vmem:[%s3806 + $0xf0] sm:$0xff]
    %v3838 = vld [vmem:[%s3806 + $0xf8] sm:$0xff]
    %v3871 = vunpack.c.l.b16 %v3807
    %v3872 = vunpack.c.h.b16 %v3807
    %v3873 = vunpack.c.l.b16 %v3808
    %v3874 = vunpack.c.h.b16 %v3808
    %v3875 = vunpack.c.l.b16 %v3809
    %v3876 = vunpack.c.h.b16 %v3809
    %v3877 = vunpack.c.l.b16 %v3810
    %v3878 = vunpack.c.h.b16 %v3810
    %v3879 = vunpack.c.l.b16 %v3811
    %v3880 = vunpack.c.h.b16 %v3811
    %v3881 = vunpack.c.l.b16 %v3812
    %v3882 = vunpack.c.h.b16 %v3812
    %v3883 = vunpack.c.l.b16 %v3813
    %v3884 = vunpack.c.h.b16 %v3813
    %v3885 = vunpack.c.l.b16 %v3814
    %v3886 = vunpack.c.h.b16 %v3814
    %v3887 = vunpack.c.l.b16 %v3815
    %v3888 = vunpack.c.h.b16 %v3815
    %v3889 = vunpack.c.l.b16 %v3816
    %v3890 = vunpack.c.h.b16 %v3816
    %v3891 = vunpack.c.l.b16 %v3817
    %v3892 = vunpack.c.h.b16 %v3817
    %v3893 = vunpack.c.l.b16 %v3818
    %v3894 = vunpack.c.h.b16 %v3818
    %v3895 = vunpack.c.l.b16 %v3819
    %v3896 = vunpack.c.h.b16 %v3819
    %v3897 = vunpack.c.l.b16 %v3820
    %v3898 = vunpack.c.h.b16 %v3820
    %v3899 = vunpack.c.l.b16 %v3821
    %v3900 = vunpack.c.h.b16 %v3821
    %v3901 = vunpack.c.l.b16 %v3822
    %v3902 = vunpack.c.h.b16 %v3822
    %v3903 = vunpack.c.l.b16 %v3823
    %v3904 = vunpack.c.h.b16 %v3823
    %v3905 = vunpack.c.l.b16 %v3824
    %v3906 = vunpack.c.h.b16 %v3824
    %v3907 = vunpack.c.l.b16 %v3825
    %v3908 = vunpack.c.h.b16 %v3825
    %v3909 = vunpack.c.l.b16 %v3826
    %v3910 = vunpack.c.h.b16 %v3826
    %v3911 = vunpack.c.l.b16 %v3827
    %v3912 = vunpack.c.h.b16 %v3827
    %v3913 = vunpack.c.l.b16 %v3828
    %v3914 = vunpack.c.h.b16 %v3828
    %v3915 = vunpack.c.l.b16 %v3829
    %v3916 = vunpack.c.h.b16 %v3829
    %v3917 = vunpack.c.l.b16 %v3830
    %v3918 = vunpack.c.h.b16 %v3830
    %v3919 = vunpack.c.l.b16 %v3831
    %v3920 = vunpack.c.h.b16 %v3831
    %v3921 = vunpack.c.l.b16 %v3832
    %v3922 = vunpack.c.h.b16 %v3832
    %v3923 = vunpack.c.l.b16 %v3833
    %v3924 = vunpack.c.h.b16 %v3833
    %v3925 = vunpack.c.l.b16 %v3834
    %v3926 = vunpack.c.h.b16 %v3834
    %v3927 = vunpack.c.l.b16 %v3835
    %v3928 = vunpack.c.h.b16 %v3835
    %v3929 = vunpack.c.l.b16 %v3836
    %v3930 = vunpack.c.h.b16 %v3836
    %v3931 = vunpack.c.l.b16 %v3837
    %v3932 = vunpack.c.h.b16 %v3837
    %v3933 = vunpack.c.l.b16 %v3838
    %v3934 = vunpack.c.h.b16 %v3838
    %v3935 = vpack.c.b16 %v3873, %v3871
    %v3936 = vpack.c.b16 %v3874, %v3872
    %v3937 = vpack.c.b16 %v3877, %v3875
    %v3938 = vpack.c.b16 %v3878, %v3876
    %v3939 = vpack.c.b16 %v3881, %v3879
    %v3940 = vpack.c.b16 %v3882, %v3880
    %v3941 = vpack.c.b16 %v3885, %v3883
    %v3942 = vpack.c.b16 %v3886, %v3884
    %v3943 = vpack.c.b16 %v3889, %v3887
    %v3944 = vpack.c.b16 %v3890, %v3888
    %v3945 = vpack.c.b16 %v3893, %v3891
    %v3946 = vpack.c.b16 %v3894, %v3892
    %v3947 = vpack.c.b16 %v3897, %v3895
    %v3948 = vpack.c.b16 %v3898, %v3896
    %v3949 = vpack.c.b16 %v3901, %v3899
    %v3950 = vpack.c.b16 %v3902, %v3900
    %v3951 = vpack.c.b16 %v3905, %v3903
    %v3952 = vpack.c.b16 %v3906, %v3904
    %v3953 = vpack.c.b16 %v3909, %v3907
    %v3954 = vpack.c.b16 %v3910, %v3908
    %v3955 = vpack.c.b16 %v3913, %v3911
    %v3956 = vpack.c.b16 %v3914, %v3912
    %v3957 = vpack.c.b16 %v3917, %v3915
    %v3958 = vpack.c.b16 %v3918, %v3916
    %v3959 = vpack.c.b16 %v3921, %v3919
    %v3960 = vpack.c.b16 %v3922, %v3920
    %v3961 = vpack.c.b16 %v3925, %v3923
    %v3962 = vpack.c.b16 %v3926, %v3924
    %v3963 = vpack.c.b16 %v3929, %v3927
    %v3964 = vpack.c.b16 %v3930, %v3928
    %v3965 = vpack.c.b16 %v3933, %v3931
    %v3966 = vpack.c.b16 %v3934, %v3932
    %3999 = vmatpush.bf16.msra.mxu0 %v3949
    %4000 = vmatpush.bf16.msra.mxu0 %v3947
    %4001 = vmatpush.bf16.msra.mxu0 %v3945
    %4002 = vmatpush.bf16.msra.mxu0 %v3943
    %4003 = vmatpush.bf16.msra.mxu0 %v3941
    %4004 = vmatpush.bf16.msra.mxu0 %v3939
    %4005 = vmatpush.bf16.msra.mxu0 %v3937
    %4006 = vmatpush.bf16.msra.mxu0 %v3935
    %4007 = vmatmul.bf16.gmra.mxu0 %v3802
    %v4008 = vpop.f32.mrf.mxu0
    %v4009 = vadd.f32 0.0, %v4008
    %v4010 = vpop.f32.mrf.mxu0
    %v4011 = vadd.f32 0.0, %v4010
    %4012 = vmatmul.bf16.gmra.mxu0 %v3804
    %v4013 = vpop.f32.mrf.mxu0
    %v4014 = vadd.f32 0.0, %v4013
    %v4015 = vpop.f32.mrf.mxu0
    %v4016 = vadd.f32 0.0, %v4015
    %4017 = vdwg.mxu0
    %4018 = vmatpush.bf16.msra.mxu0 %v3965
    %4019 = vmatpush.bf16.msra.mxu0 %v3963
    %4020 = vmatpush.bf16.msra.mxu0 %v3961
    %4021 = vmatpush.bf16.msra.mxu0 %v3959
    %4022 = vmatpush.bf16.msra.mxu0 %v3957
    %4023 = vmatpush.bf16.msra.mxu0 %v3955
    %4024 = vmatpush.bf16.msra.mxu0 %v3953
    %4025 = vmatpush.bf16.msra.mxu0 %v3951
    %4026 = vmatmul.bf16.gmra.mxu0 %v3803
    %v4027 = vpop.f32.mrf.mxu0
    %v4028 = vadd.f32 %v4009, %v4027
    %v4029 = vpop.f32.mrf.mxu0
    %v4030 = vadd.f32 %v4011, %v4029
    %4031 = vmatmul.bf16.gmra.mxu0 %v3805
    %v4032 = vpop.f32.mrf.mxu0
    %v4033 = vadd.f32 %v4014, %v4032
    %v4034 = vpop.f32.mrf.mxu0
    %v4035 = vadd.f32 %v4016, %v4034
    %4036 = vdwg.mxu0
    %4037 = vmatpush.bf16.msra.mxu0 %v3950
    %4038 = vmatpush.bf16.msra.mxu0 %v3948
    %4039 = vmatpush.bf16.msra.mxu0 %v3946
    %4040 = vmatpush.bf16.msra.mxu0 %v3944
    %4041 = vmatpush.bf16.msra.mxu0 %v3942
    %4042 = vmatpush.bf16.msra.mxu0 %v3940
    %4043 = vmatpush.bf16.msra.mxu0 %v3938
    %4044 = vmatpush.bf16.msra.mxu0 %v3936
    %4045 = vmatmul.bf16.gmra.mxu0 %v3802
    %v4046 = vpop.f32.mrf.mxu0
    %v4047 = vadd.f32 0.0, %v4046
    %v4048 = vpop.f32.mrf.mxu0
    %v4049 = vadd.f32 0.0, %v4048
    %4050 = vmatmul.bf16.gmra.mxu0 %v3804
    %v4051 = vpop.f32.mrf.mxu0
    %v4052 = vadd.f32 0.0, %v4051
    %v4053 = vpop.f32.mrf.mxu0
    %v4054 = vadd.f32 0.0, %v4053
    %4055 = vdwg.mxu0
    %4056 = vmatpush.bf16.msra.mxu0 %v3966
    %4057 = vmatpush.bf16.msra.mxu0 %v3964
    %4058 = vmatpush.bf16.msra.mxu0 %v3962
    %4059 = vmatpush.bf16.msra.mxu0 %v3960
    %4060 = vmatpush.bf16.msra.mxu0 %v3958
    %4061 = vmatpush.bf16.msra.mxu0 %v3956
    %4062 = vmatpush.bf16.msra.mxu0 %v3954
    %4063 = vmatpush.bf16.msra.mxu0 %v3952
    %4064 = vmatmul.bf16.gmra.mxu0 %v3803
    %v4065 = vpop.f32.mrf.mxu0
    %v4066 = vadd.f32 %v4047, %v4065
    %v4067 = vpop.f32.mrf.mxu0
    %v4068 = vadd.f32 %v4049, %v4067
    %4069 = vmatmul.bf16.gmra.mxu0 %v3805
    %v4070 = vpop.f32.mrf.mxu0
    %v4071 = vadd.f32 %v4052, %v4070
    %v4072 = vpop.f32.mrf.mxu0
    %v4073 = vadd.f32 %v4054, %v4072
    %4074 = vdwg.mxu0
    %v4107 = vunpack.c.l.b16 %v3770
    %v4108 = vunpack.c.h.b16 %v3770
    %v4109 = vunpack.c.l.b16 %v3771
    %v4110 = vunpack.c.h.b16 %v3771
    %v4111 = vunpack.c.l.b16 %v3772
    %v4112 = vunpack.c.h.b16 %v3772
    %v4113 = vunpack.c.l.b16 %v3773
    %v4114 = vunpack.c.h.b16 %v3773
    %v4115 = vunpack.c.l.b16 %v3774
    %v4116 = vunpack.c.h.b16 %v3774
    %v4117 = vunpack.c.l.b16 %v3775
    %v4118 = vunpack.c.h.b16 %v3775
    %v4119 = vunpack.c.l.b16 %v3776
    %v4120 = vunpack.c.h.b16 %v3776
    %v4121 = vunpack.c.l.b16 %v3777
    %v4122 = vunpack.c.h.b16 %v3777
    %v4123 = vunpack.c.l.b16 %v3778
    %v4124 = vunpack.c.h.b16 %v3778
    %v4125 = vunpack.c.l.b16 %v3779
    %v4126 = vunpack.c.h.b16 %v3779
    %v4127 = vunpack.c.l.b16 %v3780
    %v4128 = vunpack.c.h.b16 %v3780
    %v4129 = vunpack.c.l.b16 %v3781
    %v4130 = vunpack.c.h.b16 %v3781
    %v4131 = vunpack.c.l.b16 %v3782
    %v4132 = vunpack.c.h.b16 %v3782
    %v4133 = vunpack.c.l.b16 %v3783
    %v4134 = vunpack.c.h.b16 %v3783
    %v4135 = vunpack.c.l.b16 %v3784
    %v4136 = vunpack.c.h.b16 %v3784
    %v4137 = vunpack.c.l.b16 %v3785
    %v4138 = vunpack.c.h.b16 %v3785
    %v4139 = vunpack.c.l.b16 %v3786
    %v4140 = vunpack.c.h.b16 %v3786
    %v4141 = vunpack.c.l.b16 %v3787
    %v4142 = vunpack.c.h.b16 %v3787
    %v4143 = vunpack.c.l.b16 %v3788
    %v4144 = vunpack.c.h.b16 %v3788
    %v4145 = vunpack.c.l.b16 %v3789
    %v4146 = vunpack.c.h.b16 %v3789
    %v4147 = vunpack.c.l.b16 %v3790
    %v4148 = vunpack.c.h.b16 %v3790
    %v4149 = vunpack.c.l.b16 %v3791
    %v4150 = vunpack.c.h.b16 %v3791
    %v4151 = vunpack.c.l.b16 %v3792
    %v4152 = vunpack.c.h.b16 %v3792
    %v4153 = vunpack.c.l.b16 %v3793
    %v4154 = vunpack.c.h.b16 %v3793
    %v4155 = vunpack.c.l.b16 %v3794
    %v4156 = vunpack.c.h.b16 %v3794
    %v4157 = vunpack.c.l.b16 %v3795
    %v4158 = vunpack.c.h.b16 %v3795
    %v4159 = vunpack.c.l.b16 %v3796
    %v4160 = vunpack.c.h.b16 %v3796
    %v4161 = vunpack.c.l.b16 %v3797
    %v4162 = vunpack.c.h.b16 %v3797
    %v4163 = vunpack.c.l.b16 %v3798
    %v4164 = vunpack.c.h.b16 %v3798
    %v4165 = vunpack.c.l.b16 %v3799
    %v4166 = vunpack.c.h.b16 %v3799
    %v4167 = vunpack.c.l.b16 %v3800
    %v4168 = vunpack.c.h.b16 %v3800
    %v4169 = vunpack.c.l.b16 %v3801
    %v4170 = vunpack.c.h.b16 %v3801
    %v4171 = vpack.c.b16 %v4109, %v4107
    %v4172 = vpack.c.b16 %v4110, %v4108
    %v4173 = vpack.c.b16 %v4113, %v4111
    %v4174 = vpack.c.b16 %v4114, %v4112
    %v4175 = vpack.c.b16 %v4117, %v4115
    %v4176 = vpack.c.b16 %v4118, %v4116
    %v4177 = vpack.c.b16 %v4121, %v4119
    %v4178 = vpack.c.b16 %v4122, %v4120
    %v4179 = vpack.c.b16 %v4125, %v4123
    %v4180 = vpack.c.b16 %v4126, %v4124
    %v4181 = vpack.c.b16 %v4129, %v4127
    %v4182 = vpack.c.b16 %v4130, %v4128
    %v4183 = vpack.c.b16 %v4133, %v4131
    %v4184 = vpack.c.b16 %v4134, %v4132
    %v4185 = vpack.c.b16 %v4137, %v4135
    %v4186 = vpack.c.b16 %v4138, %v4136
    %v4187 = vpack.c.b16 %v4141, %v4139
    %v4188 = vpack.c.b16 %v4142, %v4140
    %v4189 = vpack.c.b16 %v4145, %v4143
    %v4190 = vpack.c.b16 %v4146, %v4144
    %v4191 = vpack.c.b16 %v4149, %v4147
    %v4192 = vpack.c.b16 %v4150, %v4148
    %v4193 = vpack.c.b16 %v4153, %v4151
    %v4194 = vpack.c.b16 %v4154, %v4152
    %v4195 = vpack.c.b16 %v4157, %v4155
    %v4196 = vpack.c.b16 %v4158, %v4156
    %v4197 = vpack.c.b16 %v4161, %v4159
    %v4198 = vpack.c.b16 %v4162, %v4160
    %v4199 = vpack.c.b16 %v4165, %v4163
    %v4200 = vpack.c.b16 %v4166, %v4164
    %v4201 = vpack.c.b16 %v4169, %v4167
    %v4202 = vpack.c.b16 %v4170, %v4168
    %4235 = vmatpush.bf16.msra.mxu0 %v4185
    %4236 = vmatpush.bf16.msra.mxu0 %v4183
    %4237 = vmatpush.bf16.msra.mxu0 %v4181
    %4238 = vmatpush.bf16.msra.mxu0 %v4179
    %4239 = vmatpush.bf16.msra.mxu0 %v4177
    %4240 = vmatpush.bf16.msra.mxu0 %v4175
    %4241 = vmatpush.bf16.msra.mxu0 %v4173
    %4242 = vmatpush.bf16.msra.mxu0 %v4171
    %4243 = vmatmul.bf16.gmra.mxu0 %v3765
    %v4244 = vpop.f32.mrf.mxu0
    %v4245 = vadd.f32 %v4028, %v4244
    %v4246 = vpop.f32.mrf.mxu0
    %v4247 = vadd.f32 %v4030, %v4246
    %4248 = vmatmul.bf16.gmra.mxu0 %v3767
    %v4249 = vpop.f32.mrf.mxu0
    %v4250 = vadd.f32 %v4033, %v4249
    %v4251 = vpop.f32.mrf.mxu0
    %v4252 = vadd.f32 %v4035, %v4251
    %4253 = vdwg.mxu0
    %4254 = vmatpush.bf16.msra.mxu0 %v4201
    %4255 = vmatpush.bf16.msra.mxu0 %v4199
    %4256 = vmatpush.bf16.msra.mxu0 %v4197
    %4257 = vmatpush.bf16.msra.mxu0 %v4195
    %4258 = vmatpush.bf16.msra.mxu0 %v4193
    %4259 = vmatpush.bf16.msra.mxu0 %v4191
    %4260 = vmatpush.bf16.msra.mxu0 %v4189
    %4261 = vmatpush.bf16.msra.mxu0 %v4187
    %4262 = vmatmul.bf16.gmra.mxu0 %v3766
    %v4263 = vpop.f32.mrf.mxu0
    %v4264 = vadd.f32 %v4245, %v4263
    %v4265 = vpop.f32.mrf.mxu0
    %v4266 = vadd.f32 %v4247, %v4265
    %4267 = vmatmul.bf16.gmra.mxu0 %v3768
    %v4268 = vpop.f32.mrf.mxu0
    %v4269 = vadd.f32 %v4250, %v4268
    %v4270 = vpop.f32.mrf.mxu0
    %v4271 = vadd.f32 %v4252, %v4270
    %4272 = vdwg.mxu0
    %4273 = vmatpush.bf16.msra.mxu0 %v4186
    %4274 = vmatpush.bf16.msra.mxu0 %v4184
    %4275 = vmatpush.bf16.msra.mxu0 %v4182
    %4276 = vmatpush.bf16.msra.mxu0 %v4180
    %4277 = vmatpush.bf16.msra.mxu0 %v4178
    %4278 = vmatpush.bf16.msra.mxu0 %v4176
    %4279 = vmatpush.bf16.msra.mxu0 %v4174
    %4280 = vmatpush.bf16.msra.mxu0 %v4172
    %4281 = vmatmul.bf16.gmra.mxu0 %v3765
    %v4282 = vpop.f32.mrf.mxu0
    %v4283 = vadd.f32 %v4066, %v4282
    %v4284 = vpop.f32.mrf.mxu0
    %v4285 = vadd.f32 %v4068, %v4284
    %4286 = vmatmul.bf16.gmra.mxu0 %v3767
    %v4287 = vpop.f32.mrf.mxu0
    %v4288 = vadd.f32 %v4071, %v4287
    %v4289 = vpop.f32.mrf.mxu0
    %v4290 = vadd.f32 %v4073, %v4289
    %4291 = vdwg.mxu0
    %4292 = vmatpush.bf16.msra.mxu0 %v4202
    %4293 = vmatpush.bf16.msra.mxu0 %v4200
    %4294 = vmatpush.bf16.msra.mxu0 %v4198
    %4295 = vmatpush.bf16.msra.mxu0 %v4196
    %4296 = vmatpush.bf16.msra.mxu0 %v4194
    %4297 = vmatpush.bf16.msra.mxu0 %v4192
    %4298 = vmatpush.bf16.msra.mxu0 %v4190
    %4299 = vmatpush.bf16.msra.mxu0 %v4188
    %4300 = vmatmul.bf16.gmra.mxu0 %v3766
    %v4301 = vpop.f32.mrf.mxu0
    %v4302 = vadd.f32 %v4283, %v4301
    %v4303 = vpop.f32.mrf.mxu0
    %v4304 = vadd.f32 %v4285, %v4303
    %4305 = vmatmul.bf16.gmra.mxu0 %v3768
    %v4306 = vpop.f32.mrf.mxu0
    %v4307 = vadd.f32 %v4288, %v4306
    %v4308 = vpop.f32.mrf.mxu0
    %v4309 = vadd.f32 %v4290, %v4308
    %4310 = vdwg.mxu0
    %v4311 = vpack.c.bf16 %v3759, %v3757
    %v4312 = vpack.c.bf16 %v3760, %v3758
    %v4313 = vpack.c.bf16 %v3763, %v3761
    %v4314 = vpack.c.bf16 %v3764, %v3762
    %s4315 = scalar_lea.vmem [#allocation5], 2816
    %v4316 = vld [vmem:[%s4315] sm:$0xff]
    %v4317 = vld [vmem:[%s4315 + $0x8] sm:$0xff]
    %v4318 = vld [vmem:[%s4315 + $0x10] sm:$0xff]
    %v4319 = vld [vmem:[%s4315 + $0x18] sm:$0xff]
    %v4320 = vld [vmem:[%s4315 + $0x20] sm:$0xff]
    %v4321 = vld [vmem:[%s4315 + $0x28] sm:$0xff]
    %v4322 = vld [vmem:[%s4315 + $0x30] sm:$0xff]
    %v4323 = vld [vmem:[%s4315 + $0x38] sm:$0xff]
    %v4324 = vld [vmem:[%s4315 + $0x40] sm:$0xff]
    %v4325 = vld [vmem:[%s4315 + $0x48] sm:$0xff]
    %v4326 = vld [vmem:[%s4315 + $0x50] sm:$0xff]
    %v4327 = vld [vmem:[%s4315 + $0x58] sm:$0xff]
    %v4328 = vld [vmem:[%s4315 + $0x60] sm:$0xff]
    %v4329 = vld [vmem:[%s4315 + $0x68] sm:$0xff]
    %v4330 = vld [vmem:[%s4315 + $0x70] sm:$0xff]
    %v4331 = vld [vmem:[%s4315 + $0x78] sm:$0xff]
    %v4332 = vld [vmem:[%s4315 + $0x80] sm:$0xff]
    %v4333 = vld [vmem:[%s4315 + $0x88] sm:$0xff]
    %v4334 = vld [vmem:[%s4315 + $0x90] sm:$0xff]
    %v4335 = vld [vmem:[%s4315 + $0x98] sm:$0xff]
    %v4336 = vld [vmem:[%s4315 + $0xa0] sm:$0xff]
    %v4337 = vld [vmem:[%s4315 + $0xa8] sm:$0xff]
    %v4338 = vld [vmem:[%s4315 + $0xb0] sm:$0xff]
    %v4339 = vld [vmem:[%s4315 + $0xb8] sm:$0xff]
    %v4340 = vld [vmem:[%s4315 + $0xc0] sm:$0xff]
    %v4341 = vld [vmem:[%s4315 + $0xc8] sm:$0xff]
    %v4342 = vld [vmem:[%s4315 + $0xd0] sm:$0xff]
    %v4343 = vld [vmem:[%s4315 + $0xd8] sm:$0xff]
    %v4344 = vld [vmem:[%s4315 + $0xe0] sm:$0xff]
    %v4345 = vld [vmem:[%s4315 + $0xe8] sm:$0xff]
    %v4346 = vld [vmem:[%s4315 + $0xf0] sm:$0xff]
    %v4347 = vld [vmem:[%s4315 + $0xf8] sm:$0xff]
    %v4380 = vunpack.c.l.b16 %v4316
    %v4381 = vunpack.c.h.b16 %v4316
    %v4382 = vunpack.c.l.b16 %v4317
    %v4383 = vunpack.c.h.b16 %v4317
    %v4384 = vunpack.c.l.b16 %v4318
    %v4385 = vunpack.c.h.b16 %v4318
    %v4386 = vunpack.c.l.b16 %v4319
    %v4387 = vunpack.c.h.b16 %v4319
    %v4388 = vunpack.c.l.b16 %v4320
    %v4389 = vunpack.c.h.b16 %v4320
    %v4390 = vunpack.c.l.b16 %v4321
    %v4391 = vunpack.c.h.b16 %v4321
    %v4392 = vunpack.c.l.b16 %v4322
    %v4393 = vunpack.c.h.b16 %v4322
    %v4394 = vunpack.c.l.b16 %v4323
    %v4395 = vunpack.c.h.b16 %v4323
    %v4396 = vunpack.c.l.b16 %v4324
    %v4397 = vunpack.c.h.b16 %v4324
    %v4398 = vunpack.c.l.b16 %v4325
    %v4399 = vunpack.c.h.b16 %v4325
    %v4400 = vunpack.c.l.b16 %v4326
    %v4401 = vunpack.c.h.b16 %v4326
    %v4402 = vunpack.c.l.b16 %v4327
    %v4403 = vunpack.c.h.b16 %v4327
    %v4404 = vunpack.c.l.b16 %v4328
    %v4405 = vunpack.c.h.b16 %v4328
    %v4406 = vunpack.c.l.b16 %v4329
    %v4407 = vunpack.c.h.b16 %v4329
    %v4408 = vunpack.c.l.b16 %v4330
    %v4409 = vunpack.c.h.b16 %v4330
    %v4410 = vunpack.c.l.b16 %v4331
    %v4411 = vunpack.c.h.b16 %v4331
    %v4412 = vunpack.c.l.b16 %v4332
    %v4413 = vunpack.c.h.b16 %v4332
    %v4414 = vunpack.c.l.b16 %v4333
    %v4415 = vunpack.c.h.b16 %v4333
    %v4416 = vunpack.c.l.b16 %v4334
    %v4417 = vunpack.c.h.b16 %v4334
    %v4418 = vunpack.c.l.b16 %v4335
    %v4419 = vunpack.c.h.b16 %v4335
    %v4420 = vunpack.c.l.b16 %v4336
    %v4421 = vunpack.c.h.b16 %v4336
    %v4422 = vunpack.c.l.b16 %v4337
    %v4423 = vunpack.c.h.b16 %v4337
    %v4424 = vunpack.c.l.b16 %v4338
    %v4425 = vunpack.c.h.b16 %v4338
    %v4426 = vunpack.c.l.b16 %v4339
    %v4427 = vunpack.c.h.b16 %v4339
    %v4428 = vunpack.c.l.b16 %v4340
    %v4429 = vunpack.c.h.b16 %v4340
    %v4430 = vunpack.c.l.b16 %v4341
    %v4431 = vunpack.c.h.b16 %v4341
    %v4432 = vunpack.c.l.b16 %v4342
    %v4433 = vunpack.c.h.b16 %v4342
    %v4434 = vunpack.c.l.b16 %v4343
    %v4435 = vunpack.c.h.b16 %v4343
    %v4436 = vunpack.c.l.b16 %v4344
    %v4437 = vunpack.c.h.b16 %v4344
    %v4438 = vunpack.c.l.b16 %v4345
    %v4439 = vunpack.c.h.b16 %v4345
    %v4440 = vunpack.c.l.b16 %v4346
    %v4441 = vunpack.c.h.b16 %v4346
    %v4442 = vunpack.c.l.b16 %v4347
    %v4443 = vunpack.c.h.b16 %v4347
    %v4444 = vpack.c.b16 %v4382, %v4380
    %v4445 = vpack.c.b16 %v4383, %v4381
    %v4446 = vpack.c.b16 %v4386, %v4384
    %v4447 = vpack.c.b16 %v4387, %v4385
    %v4448 = vpack.c.b16 %v4390, %v4388
    %v4449 = vpack.c.b16 %v4391, %v4389
    %v4450 = vpack.c.b16 %v4394, %v4392
    %v4451 = vpack.c.b16 %v4395, %v4393
    %v4452 = vpack.c.b16 %v4398, %v4396
    %v4453 = vpack.c.b16 %v4399, %v4397
    %v4454 = vpack.c.b16 %v4402, %v4400
    %v4455 = vpack.c.b16 %v4403, %v4401
    %v4456 = vpack.c.b16 %v4406, %v4404
    %v4457 = vpack.c.b16 %v4407, %v4405
    %v4458 = vpack.c.b16 %v4410, %v4408
    %v4459 = vpack.c.b16 %v4411, %v4409
    %v4460 = vpack.c.b16 %v4414, %v4412
    %v4461 = vpack.c.b16 %v4415, %v4413
    %v4462 = vpack.c.b16 %v4418, %v4416
    %v4463 = vpack.c.b16 %v4419, %v4417
    %v4464 = vpack.c.b16 %v4422, %v4420
    %v4465 = vpack.c.b16 %v4423, %v4421
    %v4466 = vpack.c.b16 %v4426, %v4424
    %v4467 = vpack.c.b16 %v4427, %v4425
    %v4468 = vpack.c.b16 %v4430, %v4428
    %v4469 = vpack.c.b16 %v4431, %v4429
    %v4470 = vpack.c.b16 %v4434, %v4432
    %v4471 = vpack.c.b16 %v4435, %v4433
    %v4472 = vpack.c.b16 %v4438, %v4436
    %v4473 = vpack.c.b16 %v4439, %v4437
    %v4474 = vpack.c.b16 %v4442, %v4440
    %v4475 = vpack.c.b16 %v4443, %v4441
    %4508 = vmatpush.bf16.msra.mxu0 %v4458
    %4509 = vmatpush.bf16.msra.mxu0 %v4456
    %4510 = vmatpush.bf16.msra.mxu0 %v4454
    %4511 = vmatpush.bf16.msra.mxu0 %v4452
    %4512 = vmatpush.bf16.msra.mxu0 %v4450
    %4513 = vmatpush.bf16.msra.mxu0 %v4448
    %4514 = vmatpush.bf16.msra.mxu0 %v4446
    %4515 = vmatpush.bf16.msra.mxu0 %v4444
    %4516 = vmatmul.bf16.gmra.mxu0 %v4311
    %v4517 = vpop.f32.mrf.mxu0
    %v4518 = vadd.f32 0.0, %v4517
    %v4519 = vpop.f32.mrf.mxu0
    %v4520 = vadd.f32 0.0, %v4519
    %4521 = vmatmul.bf16.gmra.mxu0 %v4313
    %v4522 = vpop.f32.mrf.mxu0
    %v4523 = vadd.f32 0.0, %v4522
    %v4524 = vpop.f32.mrf.mxu0
    %v4525 = vadd.f32 0.0, %v4524
    %4526 = vdwg.mxu0
    %4527 = vmatpush.bf16.msra.mxu0 %v4474
    %4528 = vmatpush.bf16.msra.mxu0 %v4472
    %4529 = vmatpush.bf16.msra.mxu0 %v4470
    %4530 = vmatpush.bf16.msra.mxu0 %v4468
    %4531 = vmatpush.bf16.msra.mxu0 %v4466
    %4532 = vmatpush.bf16.msra.mxu0 %v4464
    %4533 = vmatpush.bf16.msra.mxu0 %v4462
    %4534 = vmatpush.bf16.msra.mxu0 %v4460
    %4535 = vmatmul.bf16.gmra.mxu0 %v4312
    %v4536 = vpop.f32.mrf.mxu0
    %v4537 = vadd.f32 %v4518, %v4536
    %v4538 = vpop.f32.mrf.mxu0
    %v4539 = vadd.f32 %v4520, %v4538
    %4540 = vmatmul.bf16.gmra.mxu0 %v4314
    %v4541 = vpop.f32.mrf.mxu0
    %v4542 = vadd.f32 %v4523, %v4541
    %v4543 = vpop.f32.mrf.mxu0
    %v4544 = vadd.f32 %v4525, %v4543
    %4545 = vdwg.mxu0
    %4546 = vmatpush.bf16.msra.mxu0 %v4459
    %4547 = vmatpush.bf16.msra.mxu0 %v4457
    %4548 = vmatpush.bf16.msra.mxu0 %v4455
    %4549 = vmatpush.bf16.msra.mxu0 %v4453
    %4550 = vmatpush.bf16.msra.mxu0 %v4451
    %4551 = vmatpush.bf16.msra.mxu0 %v4449
    %4552 = vmatpush.bf16.msra.mxu0 %v4447
    %4553 = vmatpush.bf16.msra.mxu0 %v4445
    %4554 = vmatmul.bf16.gmra.mxu0 %v4311
    %v4555 = vpop.f32.mrf.mxu0
    %v4556 = vadd.f32 0.0, %v4555
    %v4557 = vpop.f32.mrf.mxu0
    %v4558 = vadd.f32 0.0, %v4557
    %4559 = vmatmul.bf16.gmra.mxu0 %v4313
    %v4560 = vpop.f32.mrf.mxu0
    %v4561 = vadd.f32 0.0, %v4560
    %v4562 = vpop.f32.mrf.mxu0
    %v4563 = vadd.f32 0.0, %v4562
    %4564 = vdwg.mxu0
    %4565 = vmatpush.bf16.msra.mxu0 %v4475
    %4566 = vmatpush.bf16.msra.mxu0 %v4473
    %4567 = vmatpush.bf16.msra.mxu0 %v4471
    %4568 = vmatpush.bf16.msra.mxu0 %v4469
    %4569 = vmatpush.bf16.msra.mxu0 %v4467
    %4570 = vmatpush.bf16.msra.mxu0 %v4465
    %4571 = vmatpush.bf16.msra.mxu0 %v4463
    %4572 = vmatpush.bf16.msra.mxu0 %v4461
    %4573 = vmatmul.bf16.gmra.mxu0 %v4312
    %v4574 = vpop.f32.mrf.mxu0
    %v4575 = vadd.f32 %v4556, %v4574
    %v4576 = vpop.f32.mrf.mxu0
    %v4577 = vadd.f32 %v4558, %v4576
    %4578 = vmatmul.bf16.gmra.mxu0 %v4314
    %v4579 = vpop.f32.mrf.mxu0
    %v4580 = vadd.f32 %v4561, %v4579
    %v4581 = vpop.f32.mrf.mxu0
    %v4582 = vadd.f32 %v4563, %v4581
    %4583 = vdwg.mxu0
    %v4584 = vadd.f32 %v4264, %v4537
    %v4585 = vadd.f32 %v4302, %v4575
    %v4586 = vadd.f32 %v4266, %v4539
    %v4587 = vadd.f32 %v4304, %v4577
    %v4588 = vadd.f32 %v4269, %v4542
    %v4589 = vadd.f32 %v4307, %v4580
    %v4590 = vadd.f32 %v4271, %v4544
    %v4591 = vadd.f32 %v4309, %v4582
    %v4592 = vadd.f32 %v4584, %v4586
    %v4593 = vadd.f32 %v4592, %v4588
    %v4594 = vadd.f32 %v4593, %v4590
    %v4595 = vrot.slane %v4594, 4
    %v4596 = vadd.f32 %v4594, %v4595
    %v4597 = vrot.slane %v4596, 2
    %v4598 = vadd.f32 %v4596, %v4597
    %v4599 = vrot.slane %v4598, 1
    %v4600 = vadd.f32 %v4598, %v4599
    %v4601 = vadd.f32 %v4585, %v4587
    %v4602 = vadd.f32 %v4601, %v4589
    %v4603 = vadd.f32 %v4602, %v4591
    %v4604 = vrot.slane %v4603, 4
    %v4605 = vadd.f32 %v4603, %v4604
    %v4606 = vrot.slane %v4605, 2
    %v4607 = vadd.f32 %v4605, %v4606
    %v4608 = vrot.slane %v4607, 1
    %v4609 = vadd.f32 %v4607, %v4608
    %4610 = vmatpush.msra.mxu0 %v190
    %4611 = vmatpush.msra.mxu0 %v188
    %4612 = vmatpush.msra.mxu0 %v186
    %4613 = vmatpush.msra.mxu0 %v184
    %4614 = vmatpush.msra.mxu0 %v182
    %4615 = vmatpush.msra.mxu0 %v180
    %4616 = vmatpush.msra.mxu0 %v178
    %4617 = vmatpush.msra.mxu0 %v176
    %4618 = vmatpush.msra.mxu0 %v174
    %4619 = vmatpush.msra.mxu0 %v172
    %4620 = vmatpush.msra.mxu0 %v170
    %4621 = vmatpush.msra.mxu0 %v168
    %4622 = vmatpush.msra.mxu0 %v166
    %4623 = vmatpush.msra.mxu0 %v164
    %4624 = vmatpush.msra.mxu0 %v162
    %4625 = vmatpush.msra.mxu0 %v160
    %4626 = vmatmul.f32.gmra.mxu0 %v4600
    %v4627 = vpop.f32.mrf.mxu0
    %v4628 = vadd.f32 0.0, %v4627
    %4629 = vdwg.mxu0
    %4630 = vmatpush.msra.mxu0 %v222
    %4631 = vmatpush.msra.mxu0 %v220
    %4632 = vmatpush.msra.mxu0 %v218
    %4633 = vmatpush.msra.mxu0 %v216
    %4634 = vmatpush.msra.mxu0 %v214
    %4635 = vmatpush.msra.mxu0 %v212
    %4636 = vmatpush.msra.mxu0 %v210
    %4637 = vmatpush.msra.mxu0 %v208
    %4638 = vmatpush.msra.mxu0 %v206
    %4639 = vmatpush.msra.mxu0 %v204
    %4640 = vmatpush.msra.mxu0 %v202
    %4641 = vmatpush.msra.mxu0 %v200
    %4642 = vmatpush.msra.mxu0 %v198
    %4643 = vmatpush.msra.mxu0 %v196
    %4644 = vmatpush.msra.mxu0 %v194
    %4645 = vmatpush.msra.mxu0 %v192
    %4646 = vmatmul.f32.gmra.mxu0 %v4609
    %v4647 = vpop.f32.mrf.mxu0
    %v4648 = vadd.f32 %v4628, %v4647
    %4649 = vdwg.mxu0
    %4650 = vmatpush.msra.mxu0 %v191
    %4651 = vmatpush.msra.mxu0 %v189
    %4652 = vmatpush.msra.mxu0 %v187
    %4653 = vmatpush.msra.mxu0 %v185
    %4654 = vmatpush.msra.mxu0 %v183
    %4655 = vmatpush.msra.mxu0 %v181
    %4656 = vmatpush.msra.mxu0 %v179
    %4657 = vmatpush.msra.mxu0 %v177
    %4658 = vmatpush.msra.mxu0 %v175
    %4659 = vmatpush.msra.mxu0 %v173
    %4660 = vmatpush.msra.mxu0 %v171
    %4661 = vmatpush.msra.mxu0 %v169
    %4662 = vmatpush.msra.mxu0 %v167
    %4663 = vmatpush.msra.mxu0 %v165
    %4664 = vmatpush.msra.mxu0 %v163
    %4665 = vmatpush.msra.mxu0 %v161
    %4666 = vmatmul.f32.gmra.mxu0 %v4600
    %v4667 = vpop.f32.mrf.mxu0
    %v4668 = vadd.f32 0.0, %v4667
    %4669 = vdwg.mxu0
    %4670 = vmatpush.msra.mxu0 %v223
    %4671 = vmatpush.msra.mxu0 %v221
    %4672 = vmatpush.msra.mxu0 %v219
    %4673 = vmatpush.msra.mxu0 %v217
    %4674 = vmatpush.msra.mxu0 %v215
    %4675 = vmatpush.msra.mxu0 %v213
    %4676 = vmatpush.msra.mxu0 %v211
    %4677 = vmatpush.msra.mxu0 %v209
    %4678 = vmatpush.msra.mxu0 %v207
    %4679 = vmatpush.msra.mxu0 %v205
    %4680 = vmatpush.msra.mxu0 %v203
    %4681 = vmatpush.msra.mxu0 %v201
    %4682 = vmatpush.msra.mxu0 %v199
    %4683 = vmatpush.msra.mxu0 %v197
    %4684 = vmatpush.msra.mxu0 %v195
    %4685 = vmatpush.msra.mxu0 %v193
    %4686 = vmatmul.f32.gmra.mxu0 %v4609
    %v4687 = vpop.f32.mrf.mxu0
    %v4688 = vadd.f32 %v4668, %v4687
    %4689 = vdwg.mxu0
    %v4690 = vmul.f32 %v4648, 0.001953125
    %v4691 = vmul.f32 %v4688, 0.001953125
    %v4692 = vperm.slane %v4690, 0
    %v4693 = vperm.slane %v4691, 0
    %v4694 = vsub.f32 %v4584, %v4692
    %v4695 = vsub.f32 %v4585, %v4693
    %v4696 = vsub.f32 %v4586, %v4692
    %v4697 = vsub.f32 %v4587, %v4693
    %v4698 = vsub.f32 %v4588, %v4692
    %v4699 = vsub.f32 %v4589, %v4693
    %v4700 = vsub.f32 %v4590, %v4692
    %v4701 = vsub.f32 %v4591, %v4693
    %v4702 = vmul.f32 %v4694, %v4694
    %v4703 = vmul.f32 %v4695, %v4695
    %v4704 = vmul.f32 %v4696, %v4696
    %v4705 = vmul.f32 %v4697, %v4697
    %v4706 = vmul.f32 %v4698, %v4698
    %v4707 = vmul.f32 %v4699, %v4699
    %v4708 = vmul.f32 %v4700, %v4700
    %v4709 = vmul.f32 %v4701, %v4701
    %v4710 = vadd.f32 %v4702, %v4704
    %v4711 = vadd.f32 %v4710, %v4706
    %v4712 = vadd.f32 %v4711, %v4708
    %v4713 = vrot.slane %v4712, 4
    %v4714 = vadd.f32 %v4712, %v4713
    %v4715 = vrot.slane %v4714, 2
    %v4716 = vadd.f32 %v4714, %v4715
    %v4717 = vrot.slane %v4716, 1
    %v4718 = vadd.f32 %v4716, %v4717
    %v4719 = vadd.f32 %v4703, %v4705
    %v4720 = vadd.f32 %v4719, %v4707
    %v4721 = vadd.f32 %v4720, %v4709
    %v4722 = vrot.slane %v4721, 4
    %v4723 = vadd.f32 %v4721, %v4722
    %v4724 = vrot.slane %v4723, 2
    %v4725 = vadd.f32 %v4723, %v4724
    %v4726 = vrot.slane %v4725, 1
    %v4727 = vadd.f32 %v4725, %v4726
    %4728 = vmatpush.msra.mxu0 %v190
    %4729 = vmatpush.msra.mxu0 %v188
    %4730 = vmatpush.msra.mxu0 %v186
    %4731 = vmatpush.msra.mxu0 %v184
    %4732 = vmatpush.msra.mxu0 %v182
    %4733 = vmatpush.msra.mxu0 %v180
    %4734 = vmatpush.msra.mxu0 %v178
    %4735 = vmatpush.msra.mxu0 %v176
    %4736 = vmatpush.msra.mxu0 %v174
    %4737 = vmatpush.msra.mxu0 %v172
    %4738 = vmatpush.msra.mxu0 %v170
    %4739 = vmatpush.msra.mxu0 %v168
    %4740 = vmatpush.msra.mxu0 %v166
    %4741 = vmatpush.msra.mxu0 %v164
    %4742 = vmatpush.msra.mxu0 %v162
    %4743 = vmatpush.msra.mxu0 %v160
    %4744 = vmatmul.f32.gmra.mxu0 %v4718
    %v4745 = vpop.f32.mrf.mxu0
    %v4746 = vadd.f32 0.0, %v4745
    %4747 = vdwg.mxu0
    %4748 = vmatpush.msra.mxu0 %v222
    %4749 = vmatpush.msra.mxu0 %v220
    %4750 = vmatpush.msra.mxu0 %v218
    %4751 = vmatpush.msra.mxu0 %v216
    %4752 = vmatpush.msra.mxu0 %v214
    %4753 = vmatpush.msra.mxu0 %v212
    %4754 = vmatpush.msra.mxu0 %v210
    %4755 = vmatpush.msra.mxu0 %v208
    %4756 = vmatpush.msra.mxu0 %v206
    %4757 = vmatpush.msra.mxu0 %v204
    %4758 = vmatpush.msra.mxu0 %v202
    %4759 = vmatpush.msra.mxu0 %v200
    %4760 = vmatpush.msra.mxu0 %v198
    %4761 = vmatpush.msra.mxu0 %v196
    %4762 = vmatpush.msra.mxu0 %v194
    %4763 = vmatpush.msra.mxu0 %v192
    %4764 = vmatmul.f32.gmra.mxu0 %v4727
    %v4765 = vpop.f32.mrf.mxu0
    %v4766 = vadd.f32 %v4746, %v4765
    %4767 = vdwg.mxu0
    %4768 = vmatpush.msra.mxu0 %v191
    %4769 = vmatpush.msra.mxu0 %v189
    %4770 = vmatpush.msra.mxu0 %v187
    %4771 = vmatpush.msra.mxu0 %v185
    %4772 = vmatpush.msra.mxu0 %v183
    %4773 = vmatpush.msra.mxu0 %v181
    %4774 = vmatpush.msra.mxu0 %v179
    %4775 = vmatpush.msra.mxu0 %v177
    %4776 = vmatpush.msra.mxu0 %v175
    %4777 = vmatpush.msra.mxu0 %v173
    %4778 = vmatpush.msra.mxu0 %v171
    %4779 = vmatpush.msra.mxu0 %v169
    %4780 = vmatpush.msra.mxu0 %v167
    %4781 = vmatpush.msra.mxu0 %v165
    %4782 = vmatpush.msra.mxu0 %v163
    %4783 = vmatpush.msra.mxu0 %v161
    %4784 = vmatmul.f32.gmra.mxu0 %v4718
    %v4785 = vpop.f32.mrf.mxu0
    %v4786 = vadd.f32 0.0, %v4785
    %4787 = vdwg.mxu0
    %4788 = vmatpush.msra.mxu0 %v223
    %4789 = vmatpush.msra.mxu0 %v221
    %4790 = vmatpush.msra.mxu0 %v219
    %4791 = vmatpush.msra.mxu0 %v217
    %4792 = vmatpush.msra.mxu0 %v215
    %4793 = vmatpush.msra.mxu0 %v213
    %4794 = vmatpush.msra.mxu0 %v211
    %4795 = vmatpush.msra.mxu0 %v209
    %4796 = vmatpush.msra.mxu0 %v207
    %4797 = vmatpush.msra.mxu0 %v205
    %4798 = vmatpush.msra.mxu0 %v203
    %4799 = vmatpush.msra.mxu0 %v201
    %4800 = vmatpush.msra.mxu0 %v199
    %4801 = vmatpush.msra.mxu0 %v197
    %4802 = vmatpush.msra.mxu0 %v195
    %4803 = vmatpush.msra.mxu0 %v193
    %4804 = vmatmul.f32.gmra.mxu0 %v4727
    %v4805 = vpop.f32.mrf.mxu0
    %v4806 = vadd.f32 %v4786, %v4805
    %4807 = vdwg.mxu0
    %v4808 = vmul.f32 %v4766, 0.001953125
    %v4809 = vmul.f32 %v4806, 0.001953125
    %s4810 = scalar_lea.vmem [#allocation7], 6
    %v4811 = vld [vmem:[%s4810] sm:$0x3]
    %v4812 = vadd.f32 %v4808, 1e-05
    %v4813 = vadd.f32 %v4809, 1e-05
    %v4814 = vrsqrt.pop %v4812
    %v4815 = vmul.f32 %v4814, %v4812
    %v4816 = vmul.f32 %v4815, %v4814
    %v4817 = vmul.f32 0.5, %v4816
    %v4818 = vsub.f32 1.5, %v4817
    %v4819 = vmul.f32 %v4814, %v4818
    %vm4820 = vweird.f32 %v4812
    %vm4821 = vweird.f32 %v4814
    %vm4822 = vmor %vm4820, %vm4821
    %v4823 = vsel %vm4822, %v4814, %v4819
    %v4824 = vrsqrt.pop %v4813
    %v4825 = vmul.f32 %v4824, %v4813
    %v4826 = vmul.f32 %v4825, %v4824
    %v4827 = vmul.f32 0.5, %v4826
    %v4828 = vsub.f32 1.5, %v4827
    %v4829 = vmul.f32 %v4824, %v4828
    %vm4830 = vweird.f32 %v4813
    %vm4831 = vweird.f32 %v4824
    %vm4832 = vmor %vm4830, %vm4831
    %v4833 = vsel %vm4832, %v4824, %v4829
    %v4836 = vrot.slane %v4833, 7
    %v4837 = vsel %vm1352, %v4823, %v4836
    %v4839 = vmul.f32 %v4811, %v4837
    %v4841 = vperm.slane %v4839, 0
    %v4842 = vperm.slane %v4839, 1
    %v4845 = vmul.f32 %v4694, %v4841
    %v4846 = vmul.f32 %v4695, %v4842
    %v4847 = vmul.f32 %v4696, %v4841
    %v4848 = vmul.f32 %v4697, %v4842
    %v4849 = vmul.f32 %v4698, %v4841
    %v4850 = vmul.f32 %v4699, %v4842
    %v4851 = vmul.f32 %v4700, %v4841
    %v4852 = vmul.f32 %v4701, %v4842
    %s4853 = scalar_lea.vmem [#allocation8], 6
    %v4854 = vld [vmem:[%s4853] sm:$0x3]
    %v4856 = vperm.slane %v4854, 0
    %v4857 = vperm.slane %v4854, 1
    %v4860 = vadd.f32 %v4845, %v4856
    %v4861 = vadd.f32 %v4846, %v4857
    %v4862 = vadd.f32 %v4847, %v4856
    %v4863 = vadd.f32 %v4848, %v4857
    %v4864 = vadd.f32 %v4849, %v4856
    %v4865 = vadd.f32 %v4850, %v4857
    %v4866 = vadd.f32 %v4851, %v4856
    %v4867 = vadd.f32 %v4852, %v4857
    %v4868 = vadd.f32 %v4860, %v2550
    %v4869 = vadd.f32 %v4861, %v2551
    %v4870 = vadd.f32 %v4862, %v2552
    %v4871 = vadd.f32 %v4863, %v2553
    %v4872 = vadd.f32 %v4864, %v2554
    %v4873 = vadd.f32 %v4865, %v2555
    %v4874 = vadd.f32 %v4866, %v2556
    %v4875 = vadd.f32 %v4867, %v2557
    %v4876 = vmax.f32 %v4868, 0.0
    %v4877 = vmax.f32 %v4869, 0.0
    %v4878 = vmax.f32 %v4870, 0.0
    %v4879 = vmax.f32 %v4871, 0.0
    %v4880 = vmax.f32 %v4872, 0.0
    %v4881 = vmax.f32 %v4873, 0.0
    %v4882 = vmax.f32 %v4874, 0.0
    %v4883 = vmax.f32 %v4875, 0.0
    %4884 = vst [vmem:[#allocation11] sm:$0xff] %v4876
    %4885 = vst [vmem:[#allocation11 + $0x8] sm:$0xff] %v4877
    %4886 = vst [vmem:[#allocation11 + $0x10] sm:$0xff] %v4878
    %4887 = vst [vmem:[#allocation11 + $0x18] sm:$0xff] %v4879
    %4888 = vst [vmem:[#allocation11 + $0x20] sm:$0xff] %v4880
    %4889 = vst [vmem:[#allocation11 + $0x28] sm:$0xff] %v4881
    %4890 = vst [vmem:[#allocation11 + $0x30] sm:$0xff] %v4882
    %4891 = vst [vmem:[#allocation11 + $0x38] sm:$0xff] %v4883
    // Predicated region
    $region42: #{tpu_custom_call.1} parent=1 // pred_check
      _
    $region43: #{tpu_custom_call.1} parent=1 // pred_check_branch
      %4893 = sbr.rel (0) target = $region45
    $region44: #{tpu_custom_call.1} parent=1 // pred_region
      %4895 = vsyncadd [#allocation4], 0
      %s4896 = sshll.u32 [#allocation11], 4
      %s4897 = int_to_ptr.vmem [resolvable:$true] %s4896
      %s4898 = sshll.u32 %s5, 4
      %s4899 = int_to_ptr.hbm [resolvable:$true] %s4898
      %4904 = dma.vmem_to_hbm [thread:$0]  %s4897, 1024, %s4899, [#allocation4], 256, 256, 16
    $region45: #{tpu_custom_call.1} parent=1 // pred_fallthru
      _
    // Predicated region
    $region46: #{tpu_custom_call.1} parent=1 // pred_check
      _
    $region47: #{tpu_custom_call.1} parent=1 // pred_check_branch
      %4906 = sbr.rel (0) target = $region49
    $region48: #{tpu_custom_call.1} parent=1 // pred_region
      %4908 = dma.done [#allocation4], 1024
    $region49: #{tpu_custom_call.1} parent=1 // pred_fallthru
      _
    %4909 = vsyncpa [#allocation3], 1
    %4910 = vsyncpa [#allocation6], 1
    %4911 = vsyncpa [#allocation9], 1
    %4912 = vsyncpa [#allocation4], 1

</llo_original>
